<compile_context>
chip_gen: v5e
topology: v5e:2x2
jax: 0.10.0
libtpu: 0.0.40
codegen_flags: <defaults>
</compile_context>

<pallas_src>
import jax
import jax.numpy as jnp
from jax.experimental import pallas as pl
from jax.experimental.pallas import tpu as pltpu

LANE = 128


# ------------------------------ fused kernel --------------------------------
def make_fused_net_kernel(T, B, H, n_layers, KP, W, PAD):
    """Kernel args (scalar prefetch first):
         tok_ref : SMEM (B*T,) int32, index b*T + t
         emb_ref : VMEM (vocab_pad, KP) f32  zero-padded embedding table
         w_ref   : VMEM (n_layers*(KP+2H)+KP, W) bf16 packed weight slab
         b_ref   : VMEM (8, W) f32 packed bias slab
         o_ref   : VMEM (T*B, PAD) f32 log-probs, time-major rows (t*B + b)
         slab0/1 : VMEM (T*B, KP) f32 ping-pong activation slabs
    """
    H2, H3, H4, H8 = 2 * H, 3 * H, 4 * H, 8 * H

    def lstm_bidir_layer(x_f32, wih_bf, bias, whh_bf, y_ref):
        # Hoisted input projection for BOTH directions: one (T*B,KP)x(KP,8H) GEMM.
        gx = jnp.dot(x_f32.astype(jnp.bfloat16), wih_bf,
                     preferred_element_type=jnp.float32) + bias        # (T*B, 8H)
        h_cat = jnp.zeros((B, H2), jnp.float32)
        c_f = jnp.zeros((B, H), jnp.float32)
        c_b = jnp.zeros((B, H), jnp.float32)
        for s in range(T):                                  # static unroll (T small)
            tf, tb = s, T - 1 - s
            gf = gx[tf * B:(tf + 1) * B, :H4]
            gb = gx[tb * B:(tb + 1) * B, H4:H8]
            if s > 0:
                # ONE fused recurrent matmul per step (block-diagonal W_hh).
                rec = jnp.dot(h_cat.astype(jnp.bfloat16), whh_bf,
                              preferred_element_type=jnp.float32)      # (B, 8H)
                gf = gf + rec[:, :H4]
                gb = gb + rec[:, H4:H8]
            # Gate order inside each 4H block: (i, f, o, g). f32 elementwise.
            sf = jax.nn.sigmoid(gf[:, :H3])
            ggf = jnp.tanh(gf[:, H3:])
            c_f = sf[:, H:H2] * c_f + sf[:, :H] * ggf
            h_f = sf[:, H2:] * jnp.tanh(c_f)
            sb = jax.nn.sigmoid(gb[:, :H3])
            ggb = jnp.tanh(gb[:, H3:])
            c_b = sb[:, H:H2] * c_b + sb[:, :H] * ggb
            h_b = sb[:, H2:] * jnp.tanh(c_b)
            h_cat = jnp.concatenate([h_f, h_b], axis=1)
            # Store straight into the lane-padded activation slab (no concats).
            y_ref[tf * B:(tf + 1) * B, 0:H] = h_f
            y_ref[tb * B:(tb + 1) * B, H:H2] = h_b

    def kernel(tok_ref, emb_ref, w_ref, b_ref, o_ref, slab0, slab1):
        # slab1's lanes [2H:KP] are read (against zero weight rows) but never
        # written -> zero once so stale VMEM NaNs can't poison the matmul.
        slab1[...] = jnp.zeros_like(slab1)

        # Fused embedding gather; slab rows are time-major: row = t*B + b.
        for t in range(T):
            for b in range(B):
                tok = tok_ref[b * T + t]
                r = t * B + b
                slab0[r:r + 1, :] = emb_ref[pl.ds(tok, 1), :]

        x_ref, y_ref = slab0, slab1
        for l in range(n_layers):
            off = l * (KP + H2)
            wih = w_ref[off:off + KP, :]                    # (KP, 8H) bf16
            whh = w_ref[off + KP:off + KP + H2, :]          # (2H, 8H) bf16
            bias = b_ref[l:l + 1, :]                        # (1, 8H)  f32
            lstm_bidir_layer(x_ref[...], wih, bias, whh, y_ref)
            x_ref, y_ref = y_ref, x_ref

        # FC + log_softmax on time-major rows (row-wise ops commute with the
        # batch-major reorder done in the wrapper).
        fc_off = n_layers * (KP + H2)
        fcw = w_ref[fc_off:fc_off + KP, :PAD]               # (KP, PAD) bf16
        fcb = b_ref[n_layers:n_layers + 1, :PAD]            # (1, PAD)  f32
        feat = x_ref[...].astype(jnp.bfloat16)              # (T*B, KP)
        logits = jnp.dot(feat, fcw, preferred_element_type=jnp.float32) + fcb
        m = jnp.max(logits, axis=1, keepdims=True)
        z = logits - m
        lse = jnp.log(jnp.sum(jnp.exp(z), axis=1, keepdims=True))
        o_ref[...] = z - lse                                # (T*B, PAD) lane-dense

    return kernel


# --------------------------------- wrapper -----------------------------------
def net_forward(tokens, params):
    """tokens: (B, T) int32 -> (B*T, n_tags) f32 log-probs (PyTorch row order)."""
    B, T = tokens.shape
    H, n_layers, n_tags = params["H"], params["n_layers"], params["n_tags"]
    KP, W, PAD = params["KP"], params["W"], params["PAD"]
    emb_pad, wslab, bslab = params["emb_pad"], params["wslab"], params["bslab"]

    kernel = make_fused_net_kernel(T, B, H, n_layers, KP, W, PAD)
    grid_spec = pltpu.PrefetchScalarGridSpec(
        num_scalar_prefetch=1,
        grid=(1,),
        in_specs=[
            pl.BlockSpec(emb_pad.shape, lambda i, tok: (0, 0)),
            pl.BlockSpec(wslab.shape, lambda i, tok: (0, 0)),
            pl.BlockSpec(bslab.shape, lambda i, tok: (0, 0)),
        ],
        out_specs=pl.BlockSpec((T * B, PAD), lambda i, tok: (0, 0)),
        scratch_shapes=[pltpu.VMEM((T * B, KP), jnp.float32),
                        pltpu.VMEM((T * B, KP), jnp.float32)],
    )
    out_tm = pl.pallas_call(
        kernel,
        out_shape=jax.ShapeDtypeStruct((T * B, PAD), jnp.float32),
        grid_spec=grid_spec,
        compiler_params=pltpu.CompilerParams(
            dimension_semantics=("arbitrary",)),
    )(tokens.reshape(-1).astype(jnp.int32), emb_pad, wslab, bslab)

    # time-major (t*B+b) -> batch-major (b*T+t); XLA fuses this with the slice.
    out = out_tm.reshape(T, B, PAD).transpose(1, 0, 2).reshape(B * T, PAD)
    return out[:, :n_tags]


# ------------------------------ parameter prep -------------------------------
def _gate_perm(H):
    # PyTorch packs LSTM gates as (i, f, g, o); kernel uses (i, f, o, g).
    return jnp.concatenate([jnp.arange(0, 2 * H),
                            jnp.arange(3 * H, 4 * H),
                            jnp.arange(2 * H, 3 * H)])


def init_raw_params(key, vocab_size, embedding_dim, hidden, n_tags, n_stack=2):
    """PyTorch-layout f32 parameters (also used by the pure-JAX reference)."""
    scale = 0.1
    keys = iter(jax.random.split(key, 3 + 8 * n_stack))

    def nrm(shape):
        return scale * jax.random.normal(next(keys), shape, jnp.float32)

    raw = {"embedding": nrm((vocab_size, embedding_dim))}
    lstm = []
    in_dim = embedding_dim
    for _ in range(n_stack):
        layer = {}
        for d in ("fwd", "bwd"):
            layer[d] = dict(wih=nrm((4 * hidden, in_dim)),
                            whh=nrm((4 * hidden, hidden)),
                            bih=nrm((4 * hidden,)),
                            bhh=nrm((4 * hidden,)))
        lstm.append(layer)
        in_dim = 2 * hidden
    raw["lstm"] = lstm
    raw["fc_w"] = nrm((n_tags, 2 * hidden))
    raw["fc_b"] = nrm((n_tags,))
    return raw


def pack_params(raw, hidden, n_tags):
    """Pack PyTorch-layout params into the kernel's 2 slabs + padded emb table."""
    H = hidden
    E = raw["embedding"].shape[1]
    n_layers = len(raw["lstm"])
    KP = LANE                      # lane-padded contraction dim for every GEMM
    W = 8 * H                      # fused gate width (both directions)
    PAD = pl.cdiv(n_tags, LANE) * LANE
    assert E <= KP and 2 * H <= KP and PAD <= W and W % LANE == 0
    assert n_layers + 1 <= 8
    gperm = _gate_perm(H)

    blocks, biases = [], []
    in_dim = E
    for layer in raw["lstm"]:
        wih_blk = jnp.zeros((KP, W), jnp.float32)
        whh_blk = jnp.zeros((2 * H, W), jnp.float32)       # block-diagonal W_hh
        bias = jnp.zeros((W,), jnp.float32)
        for k, d in enumerate(("fwd", "bwd")):
            p = layer[d]
            wih_t = p["wih"][gperm].T                      # (in_dim, 4H)
            whh_t = p["whh"][gperm].T                      # (H, 4H)
            b = (p["bih"] + p["bhh"])[gperm]               # (4H,)
            c0 = 4 * H * k
            wih_blk = wih_blk.at[:in_dim, c0:c0 + 4 * H].set(wih_t)
            whh_blk = whh_blk.at[k * H:(k + 1) * H, c0:c0 + 4 * H].set(whh_t)
            bias = bias.at[c0:c0 + 4 * H].set(b)
        blocks += [wih_blk, whh_blk]
        biases.append(bias)
        in_dim = 2 * H

    # FC block: zero-padded rows beyond 2H / cols beyond n_tags; pad bias is
    # -1e30 so padded logits carry no softmax mass (sliced off in the wrapper).
    fc_blk = jnp.zeros((KP, W), jnp.float32).at[:2 * H, :n_tags].set(raw["fc_w"].T)
    fc_bias = (jnp.zeros((W,), jnp.float32)
               .at[:PAD].set(-1e30)
               .at[:n_tags].set(raw["fc_b"]))
    blocks.append(fc_blk)
    biases.append(fc_bias)

    wslab = jnp.concatenate(blocks, axis=0).astype(jnp.bfloat16)
    bslab = jnp.zeros((8, W), jnp.float32)
    for i, b in enumerate(biases):
        bslab = bslab.at[i, :].set(b)

    vocab = raw["embedding"].shape[0]
    vocab_pad = pl.cdiv(vocab, 8) * 8
    emb_pad = (jnp.zeros((vocab_pad, KP), jnp.float32)
               .at[:vocab, :E].set(raw["embedding"]))

    return dict(emb_pad=emb_pad, wslab=wslab, bslab=bslab,
                H=H, n_layers=n_layers, n_tags=n_tags, KP=KP, W=W, PAD=PAD)


# ----------------------------- pure-JAX reference ----------------------------
def net_reference(tokens, raw, n_tags):
    x = raw["embedding"][tokens]                            # (B, T, E)
    B, T = tokens.shape
    for layer in raw["lstm"]:
        outs = []
        for d, rev in (("fwd", False), ("bwd", True)):
            p = layer[d]
            Hd = p["whh"].shape[1]
            h = jnp.zeros((B, Hd), jnp.float32)
            c = jnp.zeros((B, Hd), jnp.float32)
            hs = [None] * T
            order = range(T - 1, -1, -1) if rev else range(T)
            for t in order:
                g = x[:, t, :] @ p["wih"].T + p["bih"] + h @ p["whh"].T + p["bhh"]
                i, f, gg, o = jnp.split(g, 4, axis=1)
                c = jax.nn.sigmoid(f) * c + jax.nn.sigmoid(i) * jnp.tanh(gg)
                h = jax.nn.sigmoid(o) * jnp.tanh(c)
                hs[t] = h
            outs.append(jnp.stack(hs, axis=1))              # (B, T, H)
        x = jnp.concatenate(outs, axis=2)                   # (B, T, 2H)
    feat = x.reshape(-1, x.shape[-1])                       # batch_first reshape
    logits = feat @ raw["fc_w"].T + raw["fc_b"]
    return jax.nn.log_softmax(logits, axis=1)


# ----------------------------------- main ------------------------------------
if __name__ == "__main__":
    vocab_size, embedding_dim, lstm_hidden_dim, number_of_tags = 50, 32, 32, 8
    B, T = 2, 8

    key = jax.random.PRNGKey(0)
    kp, kx = jax.random.split(key)
    raw = init_raw_params(kp, vocab_size, embedding_dim, lstm_hidden_dim,
                          number_of_tags, n_stack=2)
    params = pack_params(raw, lstm_hidden_dim, number_of_tags)
    tokens = jax.random.randint(kx, (B, T), 0, vocab_size, dtype=jnp.int32)

    out = net_forward(tokens, params)
    out = jax.block_until_ready(out)

    assert out.shape == (B * T, number_of_tags)
    assert out.dtype == jnp.float32
    # rows of log_softmax must exp-sum to 1
    assert bool(jnp.allclose(jnp.sum(jnp.exp(out), axis=1), 1.0, atol=1e-4))
    # compare against a pure-JAX f32 reference (bf16 MXU operands -> loose tol)
    ref = net_reference(tokens, raw, number_of_tags)
    max_err = float(jnp.max(jnp.abs(out - ref)))
    assert max_err < 5e-2, f"max |kernel - reference| = {max_err}"
    print("KERNEL_OK")
</pallas_src>

<mosaic_0001>
module attributes {stable_mosaic.version = 11 : i64} {
  func.func @kernel(%arg0: i32, %arg1: memref<16xi32, #tpu.memory_space<smem>>, %arg2: memref<56x128xf32, #tpu.memory_space<vmem>>, %arg3: memref<512x256xbf16, #tpu.memory_space<vmem>>, %arg4: memref<8x256xf32, #tpu.memory_space<vmem>>, %arg5: memref<16x128xf32, #tpu.memory_space<vmem>>, %arg6: memref<16x128xf32, #tpu.memory_space<vmem>>, %arg7: memref<16x128xf32, #tpu.memory_space<vmem>>) attributes {dimension_semantics = [#tpu.dimension_semantics<arbitrary>], iteration_bounds = array<i64: 1>, scalar_prefetch = 1 : i64, scratch_operands = 2 : i64, tpu.core_type = #tpu.core_type<tc>, window_params = [{pipeline_mode = #tpu.pipeline_mode<synchronous>, transform_indices = @transform_0, window_bounds = array<i64: 56, 128>}, {pipeline_mode = #tpu.pipeline_mode<synchronous>, transform_indices = @transform_1, window_bounds = array<i64: 512, 256>}, {pipeline_mode = #tpu.pipeline_mode<synchronous>, transform_indices = @transform_2, window_bounds = array<i64: 8, 256>}, {pipeline_mode = #tpu.pipeline_mode<synchronous>, transform_indices = @transform_3, window_bounds = array<i64: 16, 128>}]} {
    %cst = arith.constant 0.000000e+00 : f32
    %0 = vector.broadcast %cst : f32 to vector<16x128xf32>
    %c0 = arith.constant 0 : index
    %c0_0 = arith.constant 0 : index
    %1 = vector.load %arg7[%c0, %c0_0] : memref<16x128xf32, #tpu.memory_space<vmem>>, vector<16x128xf32>
    tpu.vector_store %arg7[%c0, %c0_0], %0 {strides = array<i32>} : memref<16x128xf32, #tpu.memory_space<vmem>>, vector<16x128xf32>,
    %c0_1 = arith.constant 0 : index
    %2 = memref.load %arg1[%c0_1] : memref<16xi32, #tpu.memory_space<smem>>
    %3 = arith.index_cast %2 : i32 to index
    %c0_2 = arith.constant 0 : index
    %4 = vector.load %arg2[%3, %c0_2] : memref<56x128xf32, #tpu.memory_space<vmem>>, vector<1x128xf32>
    %c0_3 = arith.constant 0 : index
    %c0_4 = arith.constant 0 : index
    %5 = vector.load %arg6[%c0_3, %c0_4] : memref<16x128xf32, #tpu.memory_space<vmem>>, vector<1x128xf32>
    tpu.vector_store %arg6[%c0_3, %c0_4], %4 {strides = array<i32>} : memref<16x128xf32, #tpu.memory_space<vmem>>, vector<1x128xf32>,
    %c8 = arith.constant 8 : index
    %6 = memref.load %arg1[%c8] : memref<16xi32, #tpu.memory_space<smem>>
    %7 = arith.index_cast %6 : i32 to index
    %c0_5 = arith.constant 0 : index
    %8 = vector.load %arg2[%7, %c0_5] : memref<56x128xf32, #tpu.memory_space<vmem>>, vector<1x128xf32>
    %c1 = arith.constant 1 : index
    %c0_6 = arith.constant 0 : index
    %9 = vector.load %arg6[%c1, %c0_6] : memref<16x128xf32, #tpu.memory_space<vmem>>, vector<1x128xf32>
    tpu.vector_store %arg6[%c1, %c0_6], %8 {strides = array<i32>} : memref<16x128xf32, #tpu.memory_space<vmem>>, vector<1x128xf32>,
    %c1_7 = arith.constant 1 : index
    %10 = memref.load %arg1[%c1_7] : memref<16xi32, #tpu.memory_space<smem>>
    %11 = arith.index_cast %10 : i32 to index
    %c0_8 = arith.constant 0 : index
    %12 = vector.load %arg2[%11, %c0_8] : memref<56x128xf32, #tpu.memory_space<vmem>>, vector<1x128xf32>
    %c2 = arith.constant 2 : index
    %c0_9 = arith.constant 0 : index
    %13 = vector.load %arg6[%c2, %c0_9] : memref<16x128xf32, #tpu.memory_space<vmem>>, vector<1x128xf32>
    tpu.vector_store %arg6[%c2, %c0_9], %12 {strides = array<i32>} : memref<16x128xf32, #tpu.memory_space<vmem>>, vector<1x128xf32>,
    %c9 = arith.constant 9 : index
    %14 = memref.load %arg1[%c9] : memref<16xi32, #tpu.memory_space<smem>>
    %15 = arith.index_cast %14 : i32 to index
    %c0_10 = arith.constant 0 : index
    %16 = vector.load %arg2[%15, %c0_10] : memref<56x128xf32, #tpu.memory_space<vmem>>, vector<1x128xf32>
    %c3 = arith.constant 3 : index
    %c0_11 = arith.constant 0 : index
    %17 = vector.load %arg6[%c3, %c0_11] : memref<16x128xf32, #tpu.memory_space<vmem>>, vector<1x128xf32>
    tpu.vector_store %arg6[%c3, %c0_11], %16 {strides = array<i32>} : memref<16x128xf32, #tpu.memory_space<vmem>>, vector<1x128xf32>,
    %c2_12 = arith.constant 2 : index
    %18 = memref.load %arg1[%c2_12] : memref<16xi32, #tpu.memory_space<smem>>
    %19 = arith.index_cast %18 : i32 to index
    %c0_13 = arith.constant 0 : index
    %20 = vector.load %arg2[%19, %c0_13] : memref<56x128xf32, #tpu.memory_space<vmem>>, vector<1x128xf32>
    %c4 = arith.constant 4 : index
    %c0_14 = arith.constant 0 : index
    %21 = vector.load %arg6[%c4, %c0_14] : memref<16x128xf32, #tpu.memory_space<vmem>>, vector<1x128xf32>
    tpu.vector_store %arg6[%c4, %c0_14], %20 {strides = array<i32>} : memref<16x128xf32, #tpu.memory_space<vmem>>, vector<1x128xf32>,
    %c10 = arith.constant 10 : index
    %22 = memref.load %arg1[%c10] : memref<16xi32, #tpu.memory_space<smem>>
    %23 = arith.index_cast %22 : i32 to index
    %c0_15 = arith.constant 0 : index
    %24 = vector.load %arg2[%23, %c0_15] : memref<56x128xf32, #tpu.memory_space<vmem>>, vector<1x128xf32>
    %c5 = arith.constant 5 : index
    %c0_16 = arith.constant 0 : index
    %25 = vector.load %arg6[%c5, %c0_16] : memref<16x128xf32, #tpu.memory_space<vmem>>, vector<1x128xf32>
    tpu.vector_store %arg6[%c5, %c0_16], %24 {strides = array<i32>} : memref<16x128xf32, #tpu.memory_space<vmem>>, vector<1x128xf32>,
    %c3_17 = arith.constant 3 : index
    %26 = memref.load %arg1[%c3_17] : memref<16xi32, #tpu.memory_space<smem>>
    %27 = arith.index_cast %26 : i32 to index
    %c0_18 = arith.constant 0 : index
    %28 = vector.load %arg2[%27, %c0_18] : memref<56x128xf32, #tpu.memory_space<vmem>>, vector<1x128xf32>
    %c6 = arith.constant 6 : index
    %c0_19 = arith.constant 0 : index
    %29 = vector.load %arg6[%c6, %c0_19] : memref<16x128xf32, #tpu.memory_space<vmem>>, vector<1x128xf32>
    tpu.vector_store %arg6[%c6, %c0_19], %28 {strides = array<i32>} : memref<16x128xf32, #tpu.memory_space<vmem>>, vector<1x128xf32>,
    %c11 = arith.constant 11 : index
    %30 = memref.load %arg1[%c11] : memref<16xi32, #tpu.memory_space<smem>>
    %31 = arith.index_cast %30 : i32 to index
    %c0_20 = arith.constant 0 : index
    %32 = vector.load %arg2[%31, %c0_20] : memref<56x128xf32, #tpu.memory_space<vmem>>, vector<1x128xf32>
    %c7 = arith.constant 7 : index
    %c0_21 = arith.constant 0 : index
    %33 = vector.load %arg6[%c7, %c0_21] : memref<16x128xf32, #tpu.memory_space<vmem>>, vector<1x128xf32>
    tpu.vector_store %arg6[%c7, %c0_21], %32 {strides = array<i32>} : memref<16x128xf32, #tpu.memory_space<vmem>>, vector<1x128xf32>,
    %c4_22 = arith.constant 4 : index
    %34 = memref.load %arg1[%c4_22] : memref<16xi32, #tpu.memory_space<smem>>
    %35 = arith.index_cast %34 : i32 to index
    %c0_23 = arith.constant 0 : index
    %36 = vector.load %arg2[%35, %c0_23] : memref<56x128xf32, #tpu.memory_space<vmem>>, vector<1x128xf32>
    %c8_24 = arith.constant 8 : index
    %c0_25 = arith.constant 0 : index
    %37 = vector.load %arg6[%c8_24, %c0_25] : memref<16x128xf32, #tpu.memory_space<vmem>>, vector<1x128xf32>
    tpu.vector_store %arg6[%c8_24, %c0_25], %36 {strides = array<i32>} : memref<16x128xf32, #tpu.memory_space<vmem>>, vector<1x128xf32>,
    %c12 = arith.constant 12 : index
    %38 = memref.load %arg1[%c12] : memref<16xi32, #tpu.memory_space<smem>>
    %39 = arith.index_cast %38 : i32 to index
    %c0_26 = arith.constant 0 : index
    %40 = vector.load %arg2[%39, %c0_26] : memref<56x128xf32, #tpu.memory_space<vmem>>, vector<1x128xf32>
    %c9_27 = arith.constant 9 : index
    %c0_28 = arith.constant 0 : index
    %41 = vector.load %arg6[%c9_27, %c0_28] : memref<16x128xf32, #tpu.memory_space<vmem>>, vector<1x128xf32>
    tpu.vector_store %arg6[%c9_27, %c0_28], %40 {strides = array<i32>} : memref<16x128xf32, #tpu.memory_space<vmem>>, vector<1x128xf32>,
    %c5_29 = arith.constant 5 : index
    %42 = memref.load %arg1[%c5_29] : memref<16xi32, #tpu.memory_space<smem>>
    %43 = arith.index_cast %42 : i32 to index
    %c0_30 = arith.constant 0 : index
    %44 = vector.load %arg2[%43, %c0_30] : memref<56x128xf32, #tpu.memory_space<vmem>>, vector<1x128xf32>
    %c10_31 = arith.constant 10 : index
    %c0_32 = arith.constant 0 : index
    %45 = vector.load %arg6[%c10_31, %c0_32] : memref<16x128xf32, #tpu.memory_space<vmem>>, vector<1x128xf32>
    tpu.vector_store %arg6[%c10_31, %c0_32], %44 {strides = array<i32>} : memref<16x128xf32, #tpu.memory_space<vmem>>, vector<1x128xf32>,
    %c13 = arith.constant 13 : index
    %46 = memref.load %arg1[%c13] : memref<16xi32, #tpu.memory_space<smem>>
    %47 = arith.index_cast %46 : i32 to index
    %c0_33 = arith.constant 0 : index
    %48 = vector.load %arg2[%47, %c0_33] : memref<56x128xf32, #tpu.memory_space<vmem>>, vector<1x128xf32>
    %c11_34 = arith.constant 11 : index
    %c0_35 = arith.constant 0 : index
    %49 = vector.load %arg6[%c11_34, %c0_35] : memref<16x128xf32, #tpu.memory_space<vmem>>, vector<1x128xf32>
    tpu.vector_store %arg6[%c11_34, %c0_35], %48 {strides = array<i32>} : memref<16x128xf32, #tpu.memory_space<vmem>>, vector<1x128xf32>,
    %c6_36 = arith.constant 6 : index
    %50 = memref.load %arg1[%c6_36] : memref<16xi32, #tpu.memory_space<smem>>
    %51 = arith.index_cast %50 : i32 to index
    %c0_37 = arith.constant 0 : index
    %52 = vector.load %arg2[%51, %c0_37] : memref<56x128xf32, #tpu.memory_space<vmem>>, vector<1x128xf32>
    %c12_38 = arith.constant 12 : index
    %c0_39 = arith.constant 0 : index
    %53 = vector.load %arg6[%c12_38, %c0_39] : memref<16x128xf32, #tpu.memory_space<vmem>>, vector<1x128xf32>
    tpu.vector_store %arg6[%c12_38, %c0_39], %52 {strides = array<i32>} : memref<16x128xf32, #tpu.memory_space<vmem>>, vector<1x128xf32>,
    %c14 = arith.constant 14 : index
    %54 = memref.load %arg1[%c14] : memref<16xi32, #tpu.memory_space<smem>>
    %55 = arith.index_cast %54 : i32 to index
    %c0_40 = arith.constant 0 : index
    %56 = vector.load %arg2[%55, %c0_40] : memref<56x128xf32, #tpu.memory_space<vmem>>, vector<1x128xf32>
    %c13_41 = arith.constant 13 : index
    %c0_42 = arith.constant 0 : index
    %57 = vector.load %arg6[%c13_41, %c0_42] : memref<16x128xf32, #tpu.memory_space<vmem>>, vector<1x128xf32>
    tpu.vector_store %arg6[%c13_41, %c0_42], %56 {strides = array<i32>} : memref<16x128xf32, #tpu.memory_space<vmem>>, vector<1x128xf32>,
    %c7_43 = arith.constant 7 : index
    %58 = memref.load %arg1[%c7_43] : memref<16xi32, #tpu.memory_space<smem>>
    %59 = arith.index_cast %58 : i32 to index
    %c0_44 = arith.constant 0 : index
    %60 = vector.load %arg2[%59, %c0_44] : memref<56x128xf32, #tpu.memory_space<vmem>>, vector<1x128xf32>
    %c14_45 = arith.constant 14 : index
    %c0_46 = arith.constant 0 : index
    %61 = vector.load %arg6[%c14_45, %c0_46] : memref<16x128xf32, #tpu.memory_space<vmem>>, vector<1x128xf32>
    tpu.vector_store %arg6[%c14_45, %c0_46], %60 {strides = array<i32>} : memref<16x128xf32, #tpu.memory_space<vmem>>, vector<1x128xf32>,
    %c15 = arith.constant 15 : index
    %62 = memref.load %arg1[%c15] : memref<16xi32, #tpu.memory_space<smem>>
    %63 = arith.index_cast %62 : i32 to index
    %c0_47 = arith.constant 0 : index
    %64 = vector.load %arg2[%63, %c0_47] : memref<56x128xf32, #tpu.memory_space<vmem>>, vector<1x128xf32>
    %c15_48 = arith.constant 15 : index
    %c0_49 = arith.constant 0 : index
    %65 = vector.load %arg6[%c15_48, %c0_49] : memref<16x128xf32, #tpu.memory_space<vmem>>, vector<1x128xf32>
    tpu.vector_store %arg6[%c15_48, %c0_49], %64 {strides = array<i32>} : memref<16x128xf32, #tpu.memory_space<vmem>>, vector<1x128xf32>,
    %c0_50 = arith.constant 0 : index
    %c0_51 = arith.constant 0 : index
    %66 = vector.load %arg3[%c0_50, %c0_51] : memref<512x256xbf16, #tpu.memory_space<vmem>>, vector<128x256xbf16>
    %c128 = arith.constant 128 : index
    %c0_52 = arith.constant 0 : index
    %67 = vector.load %arg3[%c128, %c0_52] : memref<512x256xbf16, #tpu.memory_space<vmem>>, vector<64x256xbf16>
    %c0_53 = arith.constant 0 : index
    %c0_54 = arith.constant 0 : index
    %68 = vector.load %arg4[%c0_53, %c0_54] : memref<8x256xf32, #tpu.memory_space<vmem>>, vector<1x256xf32>
    %c0_55 = arith.constant 0 : index
    %c0_56 = arith.constant 0 : index
    %69 = vector.load %arg6[%c0_55, %c0_56] : memref<16x128xf32, #tpu.memory_space<vmem>>, vector<16x128xf32>
    %70 = arith.truncf %69 : vector<16x128xf32> to vector<16x128xbf16>
    %cst_57 = arith.constant dense<0.000000e+00> : vector<16x256xf32>
    %71 = tpu.matmul %70, %66, %cst_57 {dimension_numbers = #tpu.dot_dimension_numbers<[1], [0], [0], [1], [0, 0, 1, 1], [], []>} : vector<16x128xbf16>, vector<128x256xbf16>, vector<16x256xf32> -> vector<16x256xf32>
    %72 = vector.broadcast %68 : vector<1x256xf32> to vector<16x256xf32>
    %73 = arith.addf %71, %72 : vector<16x256xf32>
    %cst_58 = arith.constant 0.000000e+00 : f32
    %74 = vector.broadcast %cst_58 : f32 to vector<2x32xf32>
    %cst_59 = arith.constant 0.000000e+00 : f32
    %75 = vector.broadcast %cst_59 : f32 to vector<2x32xf32>
    %76 = vector.extract_strided_slice %73 {offsets = [0, 0], sizes = [2, 128], strides = [1, 1]} : vector<16x256xf32> to vector<2x128xf32>
    %77 = vector.extract_strided_slice %73 {offsets = [14, 128], sizes = [2, 128], strides = [1, 1]} : vector<16x256xf32> to vector<2x128xf32>
    %78 = vector.extract_strided_slice %76 {offsets = [0, 0], sizes = [2, 96], strides = [1, 1]} : vector<2x128xf32> to vector<2x96xf32>
    %79 = arith.negf %78 : vector<2x96xf32>
    %80 = math.exp %79 : vector<2x96xf32>
    %cst_60 = arith.constant 1.000000e+00 : f32
    %81 = vector.broadcast %cst_60 : f32 to vector<2x96xf32>
    %82 = arith.addf %81, %80 : vector<2x96xf32>
    %83 = arith.divf %81, %82 : vector<2x96xf32>
    %84 = vector.extract_strided_slice %76 {offsets = [0, 96], sizes = [2, 32], strides = [1, 1]} : vector<2x128xf32> to vector<2x32xf32>
    %85 = math.tanh %84 : vector<2x32xf32>
    %86 = vector.extract_strided_slice %83 {offsets = [0, 32], sizes = [2, 32], strides = [1, 1]} : vector<2x96xf32> to vector<2x32xf32>
    %87 = arith.mulf %86, %74 : vector<2x32xf32>
    %88 = vector.extract_strided_slice %83 {offsets = [0, 0], sizes = [2, 32], strides = [1, 1]} : vector<2x96xf32> to vector<2x32xf32>
    %89 = arith.mulf %88, %85 : vector<2x32xf32>
    %90 = arith.addf %87, %89 : vector<2x32xf32>
    %91 = vector.extract_strided_slice %83 {offsets = [0, 64], sizes = [2, 32], strides = [1, 1]} : vector<2x96xf32> to vector<2x32xf32>
    %92 = math.tanh %90 : vector<2x32xf32>
    %93 = arith.mulf %91, %92 : vector<2x32xf32>
    %94 = vector.extract_strided_slice %77 {offsets = [0, 0], sizes = [2, 96], strides = [1, 1]} : vector<2x128xf32> to vector<2x96xf32>
    %95 = arith.negf %94 : vector<2x96xf32>
    %96 = math.exp %95 : vector<2x96xf32>
    %cst_61 = arith.constant 1.000000e+00 : f32
    %97 = vector.broadcast %cst_61 : f32 to vector<2x96xf32>
    %98 = arith.addf %97, %96 : vector<2x96xf32>
    %99 = arith.divf %97, %98 : vector<2x96xf32>
    %100 = vector.extract_strided_slice %77 {offsets = [0, 96], sizes = [2, 32], strides = [1, 1]} : vector<2x128xf32> to vector<2x32xf32>
    %101 = math.tanh %100 : vector<2x32xf32>
    %102 = vector.extract_strided_slice %99 {offsets = [0, 32], sizes = [2, 32], strides = [1, 1]} : vector<2x96xf32> to vector<2x32xf32>
    %103 = arith.mulf %102, %75 : vector<2x32xf32>
    %104 = vector.extract_strided_slice %99 {offsets = [0, 0], sizes = [2, 32], strides = [1, 1]} : vector<2x96xf32> to vector<2x32xf32>
    %105 = arith.mulf %104, %101 : vector<2x32xf32>
    %106 = arith.addf %103, %105 : vector<2x32xf32>
    %107 = vector.extract_strided_slice %99 {offsets = [0, 64], sizes = [2, 32], strides = [1, 1]} : vector<2x96xf32> to vector<2x32xf32>
    %108 = math.tanh %106 : vector<2x32xf32>
    %109 = arith.mulf %107, %108 : vector<2x32xf32>
    %110 = tpu.concatenate %93, %109 in 1 : vector<2x32xf32>, vector<2x32xf32> -> vector<2x64xf32>
    %c0_62 = arith.constant 0 : index
    %c0_63 = arith.constant 0 : index
    %111 = vector.load %arg7[%c0_62, %c0_63] : memref<16x128xf32, #tpu.memory_space<vmem>>, vector<2x32xf32>
    tpu.vector_store %arg7[%c0_62, %c0_63], %93 {strides = array<i32>} : memref<16x128xf32, #tpu.memory_space<vmem>>, vector<2x32xf32>,
    %c14_64 = arith.constant 14 : index
    %c32 = arith.constant 32 : index
    %112 = vector.load %arg7[%c14_64, %c32] : memref<16x128xf32, #tpu.memory_space<vmem>>, vector<2x32xf32>
    tpu.vector_store %arg7[%c14_64, %c32], %109 {strides = array<i32>} : memref<16x128xf32, #tpu.memory_space<vmem>>, vector<2x32xf32>,
    %113 = vector.extract_strided_slice %73 {offsets = [2, 0], sizes = [2, 128], strides = [1, 1]} : vector<16x256xf32> to vector<2x128xf32>
    %114 = vector.extract_strided_slice %73 {offsets = [12, 128], sizes = [2, 128], strides = [1, 1]} : vector<16x256xf32> to vector<2x128xf32>
    %115 = arith.truncf %110 : vector<2x64xf32> to vector<2x64xbf16>
    %cst_65 = arith.constant dense<0.000000e+00> : vector<2x256xf32>
    %116 = tpu.matmul %115, %67, %cst_65 {dimension_numbers = #tpu.dot_dimension_numbers<[1], [0], [0], [1], [0, 0, 1, 1], [], []>} : vector<2x64xbf16>, vector<64x256xbf16>, vector<2x256xf32> -> vector<2x256xf32>
    %117 = vector.extract_strided_slice %116 {offsets = [0, 0], sizes = [2, 128], strides = [1, 1]} : vector<2x256xf32> to vector<2x128xf32>
    %118 = arith.addf %113, %117 : vector<2x128xf32>
    %119 = vector.extract_strided_slice %116 {offsets = [0, 128], sizes = [2, 128], strides = [1, 1]} : vector<2x256xf32> to vector<2x128xf32>
    %120 = arith.addf %114, %119 : vector<2x128xf32>
    %121 = vector.extract_strided_slice %118 {offsets = [0, 0], sizes = [2, 96], strides = [1, 1]} : vector<2x128xf32> to vector<2x96xf32>
    %122 = arith.negf %121 : vector<2x96xf32>
    %123 = math.exp %122 : vector<2x96xf32>
    %cst_66 = arith.constant 1.000000e+00 : f32
    %124 = vector.broadcast %cst_66 : f32 to vector<2x96xf32>
    %125 = arith.addf %124, %123 : vector<2x96xf32>
    %126 = arith.divf %124, %125 : vector<2x96xf32>
    %127 = vector.extract_strided_slice %118 {offsets = [0, 96], sizes = [2, 32], strides = [1, 1]} : vector<2x128xf32> to vector<2x32xf32>
    %128 = math.tanh %127 : vector<2x32xf32>
    %129 = vector.extract_strided_slice %126 {offsets = [0, 32], sizes = [2, 32], strides = [1, 1]} : vector<2x96xf32> to vector<2x32xf32>
    %130 = arith.mulf %129, %90 : vector<2x32xf32>
    %131 = vector.extract_strided_slice %126 {offsets = [0, 0], sizes = [2, 32], strides = [1, 1]} : vector<2x96xf32> to vector<2x32xf32>
    %132 = arith.mulf %131, %128 : vector<2x32xf32>
    %133 = arith.addf %130, %132 : vector<2x32xf32>
    %134 = vector.extract_strided_slice %126 {offsets = [0, 64], sizes = [2, 32], strides = [1, 1]} : vector<2x96xf32> to vector<2x32xf32>
    %135 = math.tanh %133 : vector<2x32xf32>
    %136 = arith.mulf %134, %135 : vector<2x32xf32>
    %137 = vector.extract_strided_slice %120 {offsets = [0, 0], sizes = [2, 96], strides = [1, 1]} : vector<2x128xf32> to vector<2x96xf32>
    %138 = arith.negf %137 : vector<2x96xf32>
    %139 = math.exp %138 : vector<2x96xf32>
    %cst_67 = arith.constant 1.000000e+00 : f32
    %140 = vector.broadcast %cst_67 : f32 to vector<2x96xf32>
    %141 = arith.addf %140, %139 : vector<2x96xf32>
    %142 = arith.divf %140, %141 : vector<2x96xf32>
    %143 = vector.extract_strided_slice %120 {offsets = [0, 96], sizes = [2, 32], strides = [1, 1]} : vector<2x128xf32> to vector<2x32xf32>
    %144 = math.tanh %143 : vector<2x32xf32>
    %145 = vector.extract_strided_slice %142 {offsets = [0, 32], sizes = [2, 32], strides = [1, 1]} : vector<2x96xf32> to vector<2x32xf32>
    %146 = arith.mulf %145, %106 : vector<2x32xf32>
    %147 = vector.extract_strided_slice %142 {offsets = [0, 0], sizes = [2, 32], strides = [1, 1]} : vector<2x96xf32> to vector<2x32xf32>
    %148 = arith.mulf %147, %144 : vector<2x32xf32>
    %149 = arith.addf %146, %148 : vector<2x32xf32>
    %150 = vector.extract_strided_slice %142 {offsets = [0, 64], sizes = [2, 32], strides = [1, 1]} : vector<2x96xf32> to vector<2x32xf32>
    %151 = math.tanh %149 : vector<2x32xf32>
    %152 = arith.mulf %150, %151 : vector<2x32xf32>
    %153 = tpu.concatenate %136, %152 in 1 : vector<2x32xf32>, vector<2x32xf32> -> vector<2x64xf32>
    %c2_68 = arith.constant 2 : index
    %c0_69 = arith.constant 0 : index
    %154 = vector.load %arg7[%c2_68, %c0_69] : memref<16x128xf32, #tpu.memory_space<vmem>>, vector<2x32xf32>
    tpu.vector_store %arg7[%c2_68, %c0_69], %136 {strides = array<i32>} : memref<16x128xf32, #tpu.memory_space<vmem>>, vector<2x32xf32>,
    %c12_70 = arith.constant 12 : index
    %c32_71 = arith.constant 32 : index
    %155 = vector.load %arg7[%c12_70, %c32_71] : memref<16x128xf32, #tpu.memory_space<vmem>>, vector<2x32xf32>
    tpu.vector_store %arg7[%c12_70, %c32_71], %152 {strides = array<i32>} : memref<16x128xf32, #tpu.memory_space<vmem>>, vector<2x32xf32>,
    %156 = vector.extract_strided_slice %73 {offsets = [4, 0], sizes = [2, 128], strides = [1, 1]} : vector<16x256xf32> to vector<2x128xf32>
    %157 = vector.extract_strided_slice %73 {offsets = [10, 128], sizes = [2, 128], strides = [1, 1]} : vector<16x256xf32> to vector<2x128xf32>
    %158 = arith.truncf %153 : vector<2x64xf32> to vector<2x64xbf16>
    %cst_72 = arith.constant dense<0.000000e+00> : vector<2x256xf32>
    %159 = tpu.matmul %158, %67, %cst_72 {dimension_numbers = #tpu.dot_dimension_numbers<[1], [0], [0], [1], [0, 0, 1, 1], [], []>} : vector<2x64xbf16>, vector<64x256xbf16>, vector<2x256xf32> -> vector<2x256xf32>
    %160 = vector.extract_strided_slice %159 {offsets = [0, 0], sizes = [2, 128], strides = [1, 1]} : vector<2x256xf32> to vector<2x128xf32>
    %161 = arith.addf %156, %160 : vector<2x128xf32>
    %162 = vector.extract_strided_slice %159 {offsets = [0, 128], sizes = [2, 128], strides = [1, 1]} : vector<2x256xf32> to vector<2x128xf32>
    %163 = arith.addf %157, %162 : vector<2x128xf32>
    %164 = vector.extract_strided_slice %161 {offsets = [0, 0], sizes = [2, 96], strides = [1, 1]} : vector<2x128xf32> to vector<2x96xf32>
    %165 = arith.negf %164 : vector<2x96xf32>
    %166 = math.exp %165 : vector<2x96xf32>
    %cst_73 = arith.constant 1.000000e+00 : f32
    %167 = vector.broadcast %cst_73 : f32 to vector<2x96xf32>
    %168 = arith.addf %167, %166 : vector<2x96xf32>
    %169 = arith.divf %167, %168 : vector<2x96xf32>
    %170 = vector.extract_strided_slice %161 {offsets = [0, 96], sizes = [2, 32], strides = [1, 1]} : vector<2x128xf32> to vector<2x32xf32>
    %171 = math.tanh %170 : vector<2x32xf32>
    %172 = vector.extract_strided_slice %169 {offsets = [0, 32], sizes = [2, 32], strides = [1, 1]} : vector<2x96xf32> to vector<2x32xf32>
    %173 = arith.mulf %172, %133 : vector<2x32xf32>
    %174 = vector.extract_strided_slice %169 {offsets = [0, 0], sizes = [2, 32], strides = [1, 1]} : vector<2x96xf32> to vector<2x32xf32>
    %175 = arith.mulf %174, %171 : vector<2x32xf32>
    %176 = arith.addf %173, %175 : vector<2x32xf32>
    %177 = vector.extract_strided_slice %169 {offsets = [0, 64], sizes = [2, 32], strides = [1, 1]} : vector<2x96xf32> to vector<2x32xf32>
    %178 = math.tanh %176 : vector<2x32xf32>
    %179 = arith.mulf %177, %178 : vector<2x32xf32>
    %180 = vector.extract_strided_slice %163 {offsets = [0, 0], sizes = [2, 96], strides = [1, 1]} : vector<2x128xf32> to vector<2x96xf32>
    %181 = arith.negf %180 : vector<2x96xf32>
    %182 = math.exp %181 : vector<2x96xf32>
    %cst_74 = arith.constant 1.000000e+00 : f32
    %183 = vector.broadcast %cst_74 : f32 to vector<2x96xf32>
    %184 = arith.addf %183, %182 : vector<2x96xf32>
    %185 = arith.divf %183, %184 : vector<2x96xf32>
    %186 = vector.extract_strided_slice %163 {offsets = [0, 96], sizes = [2, 32], strides = [1, 1]} : vector<2x128xf32> to vector<2x32xf32>
    %187 = math.tanh %186 : vector<2x32xf32>
    %188 = vector.extract_strided_slice %185 {offsets = [0, 32], sizes = [2, 32], strides = [1, 1]} : vector<2x96xf32> to vector<2x32xf32>
    %189 = arith.mulf %188, %149 : vector<2x32xf32>
    %190 = vector.extract_strided_slice %185 {offsets = [0, 0], sizes = [2, 32], strides = [1, 1]} : vector<2x96xf32> to vector<2x32xf32>
    %191 = arith.mulf %190, %187 : vector<2x32xf32>
    %192 = arith.addf %189, %191 : vector<2x32xf32>
    %193 = vector.extract_strided_slice %185 {offsets = [0, 64], sizes = [2, 32], strides = [1, 1]} : vector<2x96xf32> to vector<2x32xf32>
    %194 = math.tanh %192 : vector<2x32xf32>
    %195 = arith.mulf %193, %194 : vector<2x32xf32>
    %196 = tpu.concatenate %179, %195 in 1 : vector<2x32xf32>, vector<2x32xf32> -> vector<2x64xf32>
    %c4_75 = arith.constant 4 : index
    %c0_76 = arith.constant 0 : index
    %197 = vector.load %arg7[%c4_75, %c0_76] : memref<16x128xf32, #tpu.memory_space<vmem>>, vector<2x32xf32>
    tpu.vector_store %arg7[%c4_75, %c0_76], %179 {strides = array<i32>} : memref<16x128xf32, #tpu.memory_space<vmem>>, vector<2x32xf32>,
    %c10_77 = arith.constant 10 : index
    %c32_78 = arith.constant 32 : index
    %198 = vector.load %arg7[%c10_77, %c32_78] : memref<16x128xf32, #tpu.memory_space<vmem>>, vector<2x32xf32>
    tpu.vector_store %arg7[%c10_77, %c32_78], %195 {strides = array<i32>} : memref<16x128xf32, #tpu.memory_space<vmem>>, vector<2x32xf32>,
    %199 = vector.extract_strided_slice %73 {offsets = [6, 0], sizes = [2, 128], strides = [1, 1]} : vector<16x256xf32> to vector<2x128xf32>
    %200 = vector.extract_strided_slice %73 {offsets = [8, 128], sizes = [2, 128], strides = [1, 1]} : vector<16x256xf32> to vector<2x128xf32>
    %201 = arith.truncf %196 : vector<2x64xf32> to vector<2x64xbf16>
    %cst_79 = arith.constant dense<0.000000e+00> : vector<2x256xf32>
    %202 = tpu.matmul %201, %67, %cst_79 {dimension_numbers = #tpu.dot_dimension_numbers<[1], [0], [0], [1], [0, 0, 1, 1], [], []>} : vector<2x64xbf16>, vector<64x256xbf16>, vector<2x256xf32> -> vector<2x256xf32>
    %203 = vector.extract_strided_slice %202 {offsets = [0, 0], sizes = [2, 128], strides = [1, 1]} : vector<2x256xf32> to vector<2x128xf32>
    %204 = arith.addf %199, %203 : vector<2x128xf32>
    %205 = vector.extract_strided_slice %202 {offsets = [0, 128], sizes = [2, 128], strides = [1, 1]} : vector<2x256xf32> to vector<2x128xf32>
    %206 = arith.addf %200, %205 : vector<2x128xf32>
    %207 = vector.extract_strided_slice %204 {offsets = [0, 0], sizes = [2, 96], strides = [1, 1]} : vector<2x128xf32> to vector<2x96xf32>
    %208 = arith.negf %207 : vector<2x96xf32>
    %209 = math.exp %208 : vector<2x96xf32>
    %cst_80 = arith.constant 1.000000e+00 : f32
    %210 = vector.broadcast %cst_80 : f32 to vector<2x96xf32>
    %211 = arith.addf %210, %209 : vector<2x96xf32>
    %212 = arith.divf %210, %211 : vector<2x96xf32>
    %213 = vector.extract_strided_slice %204 {offsets = [0, 96], sizes = [2, 32], strides = [1, 1]} : vector<2x128xf32> to vector<2x32xf32>
    %214 = math.tanh %213 : vector<2x32xf32>
    %215 = vector.extract_strided_slice %212 {offsets = [0, 32], sizes = [2, 32], strides = [1, 1]} : vector<2x96xf32> to vector<2x32xf32>
    %216 = arith.mulf %215, %176 : vector<2x32xf32>
    %217 = vector.extract_strided_slice %212 {offsets = [0, 0], sizes = [2, 32], strides = [1, 1]} : vector<2x96xf32> to vector<2x32xf32>
    %218 = arith.mulf %217, %214 : vector<2x32xf32>
    %219 = arith.addf %216, %218 : vector<2x32xf32>
    %220 = vector.extract_strided_slice %212 {offsets = [0, 64], sizes = [2, 32], strides = [1, 1]} : vector<2x96xf32> to vector<2x32xf32>
    %221 = math.tanh %219 : vector<2x32xf32>
    %222 = arith.mulf %220, %221 : vector<2x32xf32>
    %223 = vector.extract_strided_slice %206 {offsets = [0, 0], sizes = [2, 96], strides = [1, 1]} : vector<2x128xf32> to vector<2x96xf32>
    %224 = arith.negf %223 : vector<2x96xf32>
    %225 = math.exp %224 : vector<2x96xf32>
    %cst_81 = arith.constant 1.000000e+00 : f32
    %226 = vector.broadcast %cst_81 : f32 to vector<2x96xf32>
    %227 = arith.addf %226, %225 : vector<2x96xf32>
    %228 = arith.divf %226, %227 : vector<2x96xf32>
    %229 = vector.extract_strided_slice %206 {offsets = [0, 96], sizes = [2, 32], strides = [1, 1]} : vector<2x128xf32> to vector<2x32xf32>
    %230 = math.tanh %229 : vector<2x32xf32>
    %231 = vector.extract_strided_slice %228 {offsets = [0, 32], sizes = [2, 32], strides = [1, 1]} : vector<2x96xf32> to vector<2x32xf32>
    %232 = arith.mulf %231, %192 : vector<2x32xf32>
    %233 = vector.extract_strided_slice %228 {offsets = [0, 0], sizes = [2, 32], strides = [1, 1]} : vector<2x96xf32> to vector<2x32xf32>
    %234 = arith.mulf %233, %230 : vector<2x32xf32>
    %235 = arith.addf %232, %234 : vector<2x32xf32>
    %236 = vector.extract_strided_slice %228 {offsets = [0, 64], sizes = [2, 32], strides = [1, 1]} : vector<2x96xf32> to vector<2x32xf32>
    %237 = math.tanh %235 : vector<2x32xf32>
    %238 = arith.mulf %236, %237 : vector<2x32xf32>
    %239 = tpu.concatenate %222, %238 in 1 : vector<2x32xf32>, vector<2x32xf32> -> vector<2x64xf32>
    %c6_82 = arith.constant 6 : index
    %c0_83 = arith.constant 0 : index
    %240 = vector.load %arg7[%c6_82, %c0_83] : memref<16x128xf32, #tpu.memory_space<vmem>>, vector<2x32xf32>
    tpu.vector_store %arg7[%c6_82, %c0_83], %222 {strides = array<i32>} : memref<16x128xf32, #tpu.memory_space<vmem>>, vector<2x32xf32>,
    %c8_84 = arith.constant 8 : index
    %c32_85 = arith.constant 32 : index
    %241 = vector.load %arg7[%c8_84, %c32_85] : memref<16x128xf32, #tpu.memory_space<vmem>>, vector<2x32xf32>
    tpu.vector_store %arg7[%c8_84, %c32_85], %238 {strides = array<i32>} : memref<16x128xf32, #tpu.memory_space<vmem>>, vector<2x32xf32>,
    %242 = vector.extract_strided_slice %73 {offsets = [8, 0], sizes = [2, 128], strides = [1, 1]} : vector<16x256xf32> to vector<2x128xf32>
    %243 = vector.extract_strided_slice %73 {offsets = [6, 128], sizes = [2, 128], strides = [1, 1]} : vector<16x256xf32> to vector<2x128xf32>
    %244 = arith.truncf %239 : vector<2x64xf32> to vector<2x64xbf16>
    %cst_86 = arith.constant dense<0.000000e+00> : vector<2x256xf32>
    %245 = tpu.matmul %244, %67, %cst_86 {dimension_numbers = #tpu.dot_dimension_numbers<[1], [0], [0], [1], [0, 0, 1, 1], [], []>} : vector<2x64xbf16>, vector<64x256xbf16>, vector<2x256xf32> -> vector<2x256xf32>
    %246 = vector.extract_strided_slice %245 {offsets = [0, 0], sizes = [2, 128], strides = [1, 1]} : vector<2x256xf32> to vector<2x128xf32>
    %247 = arith.addf %242, %246 : vector<2x128xf32>
    %248 = vector.extract_strided_slice %245 {offsets = [0, 128], sizes = [2, 128], strides = [1, 1]} : vector<2x256xf32> to vector<2x128xf32>
    %249 = arith.addf %243, %248 : vector<2x128xf32>
    %250 = vector.extract_strided_slice %247 {offsets = [0, 0], sizes = [2, 96], strides = [1, 1]} : vector<2x128xf32> to vector<2x96xf32>
    %251 = arith.negf %250 : vector<2x96xf32>
    %252 = math.exp %251 : vector<2x96xf32>
    %cst_87 = arith.constant 1.000000e+00 : f32
    %253 = vector.broadcast %cst_87 : f32 to vector<2x96xf32>
    %254 = arith.addf %253, %252 : vector<2x96xf32>
    %255 = arith.divf %253, %254 : vector<2x96xf32>
    %256 = vector.extract_strided_slice %247 {offsets = [0, 96], sizes = [2, 32], strides = [1, 1]} : vector<2x128xf32> to vector<2x32xf32>
    %257 = math.tanh %256 : vector<2x32xf32>
    %258 = vector.extract_strided_slice %255 {offsets = [0, 32], sizes = [2, 32], strides = [1, 1]} : vector<2x96xf32> to vector<2x32xf32>
    %259 = arith.mulf %258, %219 : vector<2x32xf32>
    %260 = vector.extract_strided_slice %255 {offsets = [0, 0], sizes = [2, 32], strides = [1, 1]} : vector<2x96xf32> to vector<2x32xf32>
    %261 = arith.mulf %260, %257 : vector<2x32xf32>
    %262 = arith.addf %259, %261 : vector<2x32xf32>
    %263 = vector.extract_strided_slice %255 {offsets = [0, 64], sizes = [2, 32], strides = [1, 1]} : vector<2x96xf32> to vector<2x32xf32>
    %264 = math.tanh %262 : vector<2x32xf32>
    %265 = arith.mulf %263, %264 : vector<2x32xf32>
    %266 = vector.extract_strided_slice %249 {offsets = [0, 0], sizes = [2, 96], strides = [1, 1]} : vector<2x128xf32> to vector<2x96xf32>
    %267 = arith.negf %266 : vector<2x96xf32>
    %268 = math.exp %267 : vector<2x96xf32>
    %cst_88 = arith.constant 1.000000e+00 : f32
    %269 = vector.broadcast %cst_88 : f32 to vector<2x96xf32>
    %270 = arith.addf %269, %268 : vector<2x96xf32>
    %271 = arith.divf %269, %270 : vector<2x96xf32>
    %272 = vector.extract_strided_slice %249 {offsets = [0, 96], sizes = [2, 32], strides = [1, 1]} : vector<2x128xf32> to vector<2x32xf32>
    %273 = math.tanh %272 : vector<2x32xf32>
    %274 = vector.extract_strided_slice %271 {offsets = [0, 32], sizes = [2, 32], strides = [1, 1]} : vector<2x96xf32> to vector<2x32xf32>
    %275 = arith.mulf %274, %235 : vector<2x32xf32>
    %276 = vector.extract_strided_slice %271 {offsets = [0, 0], sizes = [2, 32], strides = [1, 1]} : vector<2x96xf32> to vector<2x32xf32>
    %277 = arith.mulf %276, %273 : vector<2x32xf32>
    %278 = arith.addf %275, %277 : vector<2x32xf32>
    %279 = vector.extract_strided_slice %271 {offsets = [0, 64], sizes = [2, 32], strides = [1, 1]} : vector<2x96xf32> to vector<2x32xf32>
    %280 = math.tanh %278 : vector<2x32xf32>
    %281 = arith.mulf %279, %280 : vector<2x32xf32>
    %282 = tpu.concatenate %265, %281 in 1 : vector<2x32xf32>, vector<2x32xf32> -> vector<2x64xf32>
    %c8_89 = arith.constant 8 : index
    %c0_90 = arith.constant 0 : index
    %283 = vector.load %arg7[%c8_89, %c0_90] : memref<16x128xf32, #tpu.memory_space<vmem>>, vector<2x32xf32>
    tpu.vector_store %arg7[%c8_89, %c0_90], %265 {strides = array<i32>} : memref<16x128xf32, #tpu.memory_space<vmem>>, vector<2x32xf32>,
    %c6_91 = arith.constant 6 : index
    %c32_92 = arith.constant 32 : index
    %284 = vector.load %arg7[%c6_91, %c32_92] : memref<16x128xf32, #tpu.memory_space<vmem>>, vector<2x32xf32>
    tpu.vector_store %arg7[%c6_91, %c32_92], %281 {strides = array<i32>} : memref<16x128xf32, #tpu.memory_space<vmem>>, vector<2x32xf32>,
    %285 = vector.extract_strided_slice %73 {offsets = [10, 0], sizes = [2, 128], strides = [1, 1]} : vector<16x256xf32> to vector<2x128xf32>
    %286 = vector.extract_strided_slice %73 {offsets = [4, 128], sizes = [2, 128], strides = [1, 1]} : vector<16x256xf32> to vector<2x128xf32>
    %287 = arith.truncf %282 : vector<2x64xf32> to vector<2x64xbf16>
    %cst_93 = arith.constant dense<0.000000e+00> : vector<2x256xf32>
    %288 = tpu.matmul %287, %67, %cst_93 {dimension_numbers = #tpu.dot_dimension_numbers<[1], [0], [0], [1], [0, 0, 1, 1], [], []>} : vector<2x64xbf16>, vector<64x256xbf16>, vector<2x256xf32> -> vector<2x256xf32>
    %289 = vector.extract_strided_slice %288 {offsets = [0, 0], sizes = [2, 128], strides = [1, 1]} : vector<2x256xf32> to vector<2x128xf32>
    %290 = arith.addf %285, %289 : vector<2x128xf32>
    %291 = vector.extract_strided_slice %288 {offsets = [0, 128], sizes = [2, 128], strides = [1, 1]} : vector<2x256xf32> to vector<2x128xf32>
    %292 = arith.addf %286, %291 : vector<2x128xf32>
    %293 = vector.extract_strided_slice %290 {offsets = [0, 0], sizes = [2, 96], strides = [1, 1]} : vector<2x128xf32> to vector<2x96xf32>
    %294 = arith.negf %293 : vector<2x96xf32>
    %295 = math.exp %294 : vector<2x96xf32>
    %cst_94 = arith.constant 1.000000e+00 : f32
    %296 = vector.broadcast %cst_94 : f32 to vector<2x96xf32>
    %297 = arith.addf %296, %295 : vector<2x96xf32>
    %298 = arith.divf %296, %297 : vector<2x96xf32>
    %299 = vector.extract_strided_slice %290 {offsets = [0, 96], sizes = [2, 32], strides = [1, 1]} : vector<2x128xf32> to vector<2x32xf32>
    %300 = math.tanh %299 : vector<2x32xf32>
    %301 = vector.extract_strided_slice %298 {offsets = [0, 32], sizes = [2, 32], strides = [1, 1]} : vector<2x96xf32> to vector<2x32xf32>
    %302 = arith.mulf %301, %262 : vector<2x32xf32>
    %303 = vector.extract_strided_slice %298 {offsets = [0, 0], sizes = [2, 32], strides = [1, 1]} : vector<2x96xf32> to vector<2x32xf32>
    %304 = arith.mulf %303, %300 : vector<2x32xf32>
    %305 = arith.addf %302, %304 : vector<2x32xf32>
    %306 = vector.extract_strided_slice %298 {offsets = [0, 64], sizes = [2, 32], strides = [1, 1]} : vector<2x96xf32> to vector<2x32xf32>
    %307 = math.tanh %305 : vector<2x32xf32>
    %308 = arith.mulf %306, %307 : vector<2x32xf32>
    %309 = vector.extract_strided_slice %292 {offsets = [0, 0], sizes = [2, 96], strides = [1, 1]} : vector<2x128xf32> to vector<2x96xf32>
    %310 = arith.negf %309 : vector<2x96xf32>
    %311 = math.exp %310 : vector<2x96xf32>
    %cst_95 = arith.constant 1.000000e+00 : f32
    %312 = vector.broadcast %cst_95 : f32 to vector<2x96xf32>
    %313 = arith.addf %312, %311 : vector<2x96xf32>
    %314 = arith.divf %312, %313 : vector<2x96xf32>
    %315 = vector.extract_strided_slice %292 {offsets = [0, 96], sizes = [2, 32], strides = [1, 1]} : vector<2x128xf32> to vector<2x32xf32>
    %316 = math.tanh %315 : vector<2x32xf32>
    %317 = vector.extract_strided_slice %314 {offsets = [0, 32], sizes = [2, 32], strides = [1, 1]} : vector<2x96xf32> to vector<2x32xf32>
    %318 = arith.mulf %317, %278 : vector<2x32xf32>
    %319 = vector.extract_strided_slice %314 {offsets = [0, 0], sizes = [2, 32], strides = [1, 1]} : vector<2x96xf32> to vector<2x32xf32>
    %320 = arith.mulf %319, %316 : vector<2x32xf32>
    %321 = arith.addf %318, %320 : vector<2x32xf32>
    %322 = vector.extract_strided_slice %314 {offsets = [0, 64], sizes = [2, 32], strides = [1, 1]} : vector<2x96xf32> to vector<2x32xf32>
    %323 = math.tanh %321 : vector<2x32xf32>
    %324 = arith.mulf %322, %323 : vector<2x32xf32>
    %325 = tpu.concatenate %308, %324 in 1 : vector<2x32xf32>, vector<2x32xf32> -> vector<2x64xf32>
    %c10_96 = arith.constant 10 : index
    %c0_97 = arith.constant 0 : index
    %326 = vector.load %arg7[%c10_96, %c0_97] : memref<16x128xf32, #tpu.memory_space<vmem>>, vector<2x32xf32>
    tpu.vector_store %arg7[%c10_96, %c0_97], %308 {strides = array<i32>} : memref<16x128xf32, #tpu.memory_space<vmem>>, vector<2x32xf32>,
    %c4_98 = arith.constant 4 : index
    %c32_99 = arith.constant 32 : index
    %327 = vector.load %arg7[%c4_98, %c32_99] : memref<16x128xf32, #tpu.memory_space<vmem>>, vector<2x32xf32>
    tpu.vector_store %arg7[%c4_98, %c32_99], %324 {strides = array<i32>} : memref<16x128xf32, #tpu.memory_space<vmem>>, vector<2x32xf32>,
    %328 = vector.extract_strided_slice %73 {offsets = [12, 0], sizes = [2, 128], strides = [1, 1]} : vector<16x256xf32> to vector<2x128xf32>
    %329 = vector.extract_strided_slice %73 {offsets = [2, 128], sizes = [2, 128], strides = [1, 1]} : vector<16x256xf32> to vector<2x128xf32>
    %330 = arith.truncf %325 : vector<2x64xf32> to vector<2x64xbf16>
    %cst_100 = arith.constant dense<0.000000e+00> : vector<2x256xf32>
    %331 = tpu.matmul %330, %67, %cst_100 {dimension_numbers = #tpu.dot_dimension_numbers<[1], [0], [0], [1], [0, 0, 1, 1], [], []>} : vector<2x64xbf16>, vector<64x256xbf16>, vector<2x256xf32> -> vector<2x256xf32>
    %332 = vector.extract_strided_slice %331 {offsets = [0, 0], sizes = [2, 128], strides = [1, 1]} : vector<2x256xf32> to vector<2x128xf32>
    %333 = arith.addf %328, %332 : vector<2x128xf32>
    %334 = vector.extract_strided_slice %331 {offsets = [0, 128], sizes = [2, 128], strides = [1, 1]} : vector<2x256xf32> to vector<2x128xf32>
    %335 = arith.addf %329, %334 : vector<2x128xf32>
    %336 = vector.extract_strided_slice %333 {offsets = [0, 0], sizes = [2, 96], strides = [1, 1]} : vector<2x128xf32> to vector<2x96xf32>
    %337 = arith.negf %336 : vector<2x96xf32>
    %338 = math.exp %337 : vector<2x96xf32>
    %cst_101 = arith.constant 1.000000e+00 : f32
    %339 = vector.broadcast %cst_101 : f32 to vector<2x96xf32>
    %340 = arith.addf %339, %338 : vector<2x96xf32>
    %341 = arith.divf %339, %340 : vector<2x96xf32>
    %342 = vector.extract_strided_slice %333 {offsets = [0, 96], sizes = [2, 32], strides = [1, 1]} : vector<2x128xf32> to vector<2x32xf32>
    %343 = math.tanh %342 : vector<2x32xf32>
    %344 = vector.extract_strided_slice %341 {offsets = [0, 32], sizes = [2, 32], strides = [1, 1]} : vector<2x96xf32> to vector<2x32xf32>
    %345 = arith.mulf %344, %305 : vector<2x32xf32>
    %346 = vector.extract_strided_slice %341 {offsets = [0, 0], sizes = [2, 32], strides = [1, 1]} : vector<2x96xf32> to vector<2x32xf32>
    %347 = arith.mulf %346, %343 : vector<2x32xf32>
    %348 = arith.addf %345, %347 : vector<2x32xf32>
    %349 = vector.extract_strided_slice %341 {offsets = [0, 64], sizes = [2, 32], strides = [1, 1]} : vector<2x96xf32> to vector<2x32xf32>
    %350 = math.tanh %348 : vector<2x32xf32>
    %351 = arith.mulf %349, %350 : vector<2x32xf32>
    %352 = vector.extract_strided_slice %335 {offsets = [0, 0], sizes = [2, 96], strides = [1, 1]} : vector<2x128xf32> to vector<2x96xf32>
    %353 = arith.negf %352 : vector<2x96xf32>
    %354 = math.exp %353 : vector<2x96xf32>
    %cst_102 = arith.constant 1.000000e+00 : f32
    %355 = vector.broadcast %cst_102 : f32 to vector<2x96xf32>
    %356 = arith.addf %355, %354 : vector<2x96xf32>
    %357 = arith.divf %355, %356 : vector<2x96xf32>
    %358 = vector.extract_strided_slice %335 {offsets = [0, 96], sizes = [2, 32], strides = [1, 1]} : vector<2x128xf32> to vector<2x32xf32>
    %359 = math.tanh %358 : vector<2x32xf32>
    %360 = vector.extract_strided_slice %357 {offsets = [0, 32], sizes = [2, 32], strides = [1, 1]} : vector<2x96xf32> to vector<2x32xf32>
    %361 = arith.mulf %360, %321 : vector<2x32xf32>
    %362 = vector.extract_strided_slice %357 {offsets = [0, 0], sizes = [2, 32], strides = [1, 1]} : vector<2x96xf32> to vector<2x32xf32>
    %363 = arith.mulf %362, %359 : vector<2x32xf32>
    %364 = arith.addf %361, %363 : vector<2x32xf32>
    %365 = vector.extract_strided_slice %357 {offsets = [0, 64], sizes = [2, 32], strides = [1, 1]} : vector<2x96xf32> to vector<2x32xf32>
    %366 = math.tanh %364 : vector<2x32xf32>
    %367 = arith.mulf %365, %366 : vector<2x32xf32>
    %368 = tpu.concatenate %351, %367 in 1 : vector<2x32xf32>, vector<2x32xf32> -> vector<2x64xf32>
    %c12_103 = arith.constant 12 : index
    %c0_104 = arith.constant 0 : index
    %369 = vector.load %arg7[%c12_103, %c0_104] : memref<16x128xf32, #tpu.memory_space<vmem>>, vector<2x32xf32>
    tpu.vector_store %arg7[%c12_103, %c0_104], %351 {strides = array<i32>} : memref<16x128xf32, #tpu.memory_space<vmem>>, vector<2x32xf32>,
    %c2_105 = arith.constant 2 : index
    %c32_106 = arith.constant 32 : index
    %370 = vector.load %arg7[%c2_105, %c32_106] : memref<16x128xf32, #tpu.memory_space<vmem>>, vector<2x32xf32>
    tpu.vector_store %arg7[%c2_105, %c32_106], %367 {strides = array<i32>} : memref<16x128xf32, #tpu.memory_space<vmem>>, vector<2x32xf32>,
    %371 = vector.extract_strided_slice %73 {offsets = [14, 0], sizes = [2, 128], strides = [1, 1]} : vector<16x256xf32> to vector<2x128xf32>
    %372 = vector.extract_strided_slice %73 {offsets = [0, 128], sizes = [2, 128], strides = [1, 1]} : vector<16x256xf32> to vector<2x128xf32>
    %373 = arith.truncf %368 : vector<2x64xf32> to vector<2x64xbf16>
    %cst_107 = arith.constant dense<0.000000e+00> : vector<2x256xf32>
    %374 = tpu.matmul %373, %67, %cst_107 {dimension_numbers = #tpu.dot_dimension_numbers<[1], [0], [0], [1], [0, 0, 1, 1], [], []>} : vector<2x64xbf16>, vector<64x256xbf16>, vector<2x256xf32> -> vector<2x256xf32>
    %375 = vector.extract_strided_slice %374 {offsets = [0, 0], sizes = [2, 128], strides = [1, 1]} : vector<2x256xf32> to vector<2x128xf32>
    %376 = arith.addf %371, %375 : vector<2x128xf32>
    %377 = vector.extract_strided_slice %374 {offsets = [0, 128], sizes = [2, 128], strides = [1, 1]} : vector<2x256xf32> to vector<2x128xf32>
    %378 = arith.addf %372, %377 : vector<2x128xf32>
    %379 = vector.extract_strided_slice %376 {offsets = [0, 0], sizes = [2, 96], strides = [1, 1]} : vector<2x128xf32> to vector<2x96xf32>
    %380 = arith.negf %379 : vector<2x96xf32>
    %381 = math.exp %380 : vector<2x96xf32>
    %cst_108 = arith.constant 1.000000e+00 : f32
    %382 = vector.broadcast %cst_108 : f32 to vector<2x96xf32>
    %383 = arith.addf %382, %381 : vector<2x96xf32>
    %384 = arith.divf %382, %383 : vector<2x96xf32>
    %385 = vector.extract_strided_slice %376 {offsets = [0, 96], sizes = [2, 32], strides = [1, 1]} : vector<2x128xf32> to vector<2x32xf32>
    %386 = math.tanh %385 : vector<2x32xf32>
    %387 = vector.extract_strided_slice %384 {offsets = [0, 32], sizes = [2, 32], strides = [1, 1]} : vector<2x96xf32> to vector<2x32xf32>
    %388 = arith.mulf %387, %348 : vector<2x32xf32>
    %389 = vector.extract_strided_slice %384 {offsets = [0, 0], sizes = [2, 32], strides = [1, 1]} : vector<2x96xf32> to vector<2x32xf32>
    %390 = arith.mulf %389, %386 : vector<2x32xf32>
    %391 = arith.addf %388, %390 : vector<2x32xf32>
    %392 = vector.extract_strided_slice %384 {offsets = [0, 64], sizes = [2, 32], strides = [1, 1]} : vector<2x96xf32> to vector<2x32xf32>
    %393 = math.tanh %391 : vector<2x32xf32>
    %394 = arith.mulf %392, %393 : vector<2x32xf32>
    %395 = vector.extract_strided_slice %378 {offsets = [0, 0], sizes = [2, 96], strides = [1, 1]} : vector<2x128xf32> to vector<2x96xf32>
    %396 = arith.negf %395 : vector<2x96xf32>
    %397 = math.exp %396 : vector<2x96xf32>
    %cst_109 = arith.constant 1.000000e+00 : f32
    %398 = vector.broadcast %cst_109 : f32 to vector<2x96xf32>
    %399 = arith.addf %398, %397 : vector<2x96xf32>
    %400 = arith.divf %398, %399 : vector<2x96xf32>
    %401 = vector.extract_strided_slice %378 {offsets = [0, 96], sizes = [2, 32], strides = [1, 1]} : vector<2x128xf32> to vector<2x32xf32>
    %402 = math.tanh %401 : vector<2x32xf32>
    %403 = vector.extract_strided_slice %400 {offsets = [0, 32], sizes = [2, 32], strides = [1, 1]} : vector<2x96xf32> to vector<2x32xf32>
    %404 = arith.mulf %403, %364 : vector<2x32xf32>
    %405 = vector.extract_strided_slice %400 {offsets = [0, 0], sizes = [2, 32], strides = [1, 1]} : vector<2x96xf32> to vector<2x32xf32>
    %406 = arith.mulf %405, %402 : vector<2x32xf32>
    %407 = arith.addf %404, %406 : vector<2x32xf32>
    %408 = vector.extract_strided_slice %400 {offsets = [0, 64], sizes = [2, 32], strides = [1, 1]} : vector<2x96xf32> to vector<2x32xf32>
    %409 = math.tanh %407 : vector<2x32xf32>
    %410 = arith.mulf %408, %409 : vector<2x32xf32>
    %c14_110 = arith.constant 14 : index
    %c0_111 = arith.constant 0 : index
    %411 = vector.load %arg7[%c14_110, %c0_111] : memref<16x128xf32, #tpu.memory_space<vmem>>, vector<2x32xf32>
    tpu.vector_store %arg7[%c14_110, %c0_111], %394 {strides = array<i32>} : memref<16x128xf32, #tpu.memory_space<vmem>>, vector<2x32xf32>,
    %c0_112 = arith.constant 0 : index
    %c32_113 = arith.constant 32 : index
    %412 = vector.load %arg7[%c0_112, %c32_113] : memref<16x128xf32, #tpu.memory_space<vmem>>, vector<2x32xf32>
    tpu.vector_store %arg7[%c0_112, %c32_113], %410 {strides = array<i32>} : memref<16x128xf32, #tpu.memory_space<vmem>>, vector<2x32xf32>,
    %c192 = arith.constant 192 : index
    %c0_114 = arith.constant 0 : index
    %413 = vector.load %arg3[%c192, %c0_114] : memref<512x256xbf16, #tpu.memory_space<vmem>>, vector<128x256xbf16>
    %c320 = arith.constant 320 : index
    %c0_115 = arith.constant 0 : index
    %414 = vector.load %arg3[%c320, %c0_115] : memref<512x256xbf16, #tpu.memory_space<vmem>>, vector<64x256xbf16>
    %c1_116 = arith.constant 1 : index
    %c0_117 = arith.constant 0 : index
    %415 = vector.load %arg4[%c1_116, %c0_117] : memref<8x256xf32, #tpu.memory_space<vmem>>, vector<1x256xf32>
    %c0_118 = arith.constant 0 : index
    %c0_119 = arith.constant 0 : index
    %416 = vector.load %arg7[%c0_118, %c0_119] : memref<16x128xf32, #tpu.memory_space<vmem>>, vector<16x128xf32>
    %417 = arith.truncf %416 : vector<16x128xf32> to vector<16x128xbf16>
    %cst_120 = arith.constant dense<0.000000e+00> : vector<16x256xf32>
    %418 = tpu.matmul %417, %413, %cst_120 {dimension_numbers = #tpu.dot_dimension_numbers<[1], [0], [0], [1], [0, 0, 1, 1], [], []>} : vector<16x128xbf16>, vector<128x256xbf16>, vector<16x256xf32> -> vector<16x256xf32>
    %419 = vector.broadcast %415 : vector<1x256xf32> to vector<16x256xf32>
    %420 = arith.addf %418, %419 : vector<16x256xf32>
    %cst_121 = arith.constant 0.000000e+00 : f32
    %421 = vector.broadcast %cst_121 : f32 to vector<2x32xf32>
    %cst_122 = arith.constant 0.000000e+00 : f32
    %422 = vector.broadcast %cst_122 : f32 to vector<2x32xf32>
    %423 = vector.extract_strided_slice %420 {offsets = [0, 0], sizes = [2, 128], strides = [1, 1]} : vector<16x256xf32> to vector<2x128xf32>
    %424 = vector.extract_strided_slice %420 {offsets = [14, 128], sizes = [2, 128], strides = [1, 1]} : vector<16x256xf32> to vector<2x128xf32>
    %425 = vector.extract_strided_slice %423 {offsets = [0, 0], sizes = [2, 96], strides = [1, 1]} : vector<2x128xf32> to vector<2x96xf32>
    %426 = arith.negf %425 : vector<2x96xf32>
    %427 = math.exp %426 : vector<2x96xf32>
    %cst_123 = arith.constant 1.000000e+00 : f32
    %428 = vector.broadcast %cst_123 : f32 to vector<2x96xf32>
    %429 = arith.addf %428, %427 : vector<2x96xf32>
    %430 = arith.divf %428, %429 : vector<2x96xf32>
    %431 = vector.extract_strided_slice %423 {offsets = [0, 96], sizes = [2, 32], strides = [1, 1]} : vector<2x128xf32> to vector<2x32xf32>
    %432 = math.tanh %431 : vector<2x32xf32>
    %433 = vector.extract_strided_slice %430 {offsets = [0, 32], sizes = [2, 32], strides = [1, 1]} : vector<2x96xf32> to vector<2x32xf32>
    %434 = arith.mulf %433, %421 : vector<2x32xf32>
    %435 = vector.extract_strided_slice %430 {offsets = [0, 0], sizes = [2, 32], strides = [1, 1]} : vector<2x96xf32> to vector<2x32xf32>
    %436 = arith.mulf %435, %432 : vector<2x32xf32>
    %437 = arith.addf %434, %436 : vector<2x32xf32>
    %438 = vector.extract_strided_slice %430 {offsets = [0, 64], sizes = [2, 32], strides = [1, 1]} : vector<2x96xf32> to vector<2x32xf32>
    %439 = math.tanh %437 : vector<2x32xf32>
    %440 = arith.mulf %438, %439 : vector<2x32xf32>
    %441 = vector.extract_strided_slice %424 {offsets = [0, 0], sizes = [2, 96], strides = [1, 1]} : vector<2x128xf32> to vector<2x96xf32>
    %442 = arith.negf %441 : vector<2x96xf32>
    %443 = math.exp %442 : vector<2x96xf32>
    %cst_124 = arith.constant 1.000000e+00 : f32
    %444 = vector.broadcast %cst_124 : f32 to vector<2x96xf32>
    %445 = arith.addf %444, %443 : vector<2x96xf32>
    %446 = arith.divf %444, %445 : vector<2x96xf32>
    %447 = vector.extract_strided_slice %424 {offsets = [0, 96], sizes = [2, 32], strides = [1, 1]} : vector<2x128xf32> to vector<2x32xf32>
    %448 = math.tanh %447 : vector<2x32xf32>
    %449 = vector.extract_strided_slice %446 {offsets = [0, 32], sizes = [2, 32], strides = [1, 1]} : vector<2x96xf32> to vector<2x32xf32>
    %450 = arith.mulf %449, %422 : vector<2x32xf32>
    %451 = vector.extract_strided_slice %446 {offsets = [0, 0], sizes = [2, 32], strides = [1, 1]} : vector<2x96xf32> to vector<2x32xf32>
    %452 = arith.mulf %451, %448 : vector<2x32xf32>
    %453 = arith.addf %450, %452 : vector<2x32xf32>
    %454 = vector.extract_strided_slice %446 {offsets = [0, 64], sizes = [2, 32], strides = [1, 1]} : vector<2x96xf32> to vector<2x32xf32>
    %455 = math.tanh %453 : vector<2x32xf32>
    %456 = arith.mulf %454, %455 : vector<2x32xf32>
    %457 = tpu.concatenate %440, %456 in 1 : vector<2x32xf32>, vector<2x32xf32> -> vector<2x64xf32>
    %c0_125 = arith.constant 0 : index
    %c0_126 = arith.constant 0 : index
    %458 = vector.load %arg6[%c0_125, %c0_126] : memref<16x128xf32, #tpu.memory_space<vmem>>, vector<2x32xf32>
    tpu.vector_store %arg6[%c0_125, %c0_126], %440 {strides = array<i32>} : memref<16x128xf32, #tpu.memory_space<vmem>>, vector<2x32xf32>,
    %c14_127 = arith.constant 14 : index
    %c32_128 = arith.constant 32 : index
    %459 = vector.load %arg6[%c14_127, %c32_128] : memref<16x128xf32, #tpu.memory_space<vmem>>, vector<2x32xf32>
    tpu.vector_store %arg6[%c14_127, %c32_128], %456 {strides = array<i32>} : memref<16x128xf32, #tpu.memory_space<vmem>>, vector<2x32xf32>,
    %460 = vector.extract_strided_slice %420 {offsets = [2, 0], sizes = [2, 128], strides = [1, 1]} : vector<16x256xf32> to vector<2x128xf32>
    %461 = vector.extract_strided_slice %420 {offsets = [12, 128], sizes = [2, 128], strides = [1, 1]} : vector<16x256xf32> to vector<2x128xf32>
    %462 = arith.truncf %457 : vector<2x64xf32> to vector<2x64xbf16>
    %cst_129 = arith.constant dense<0.000000e+00> : vector<2x256xf32>
    %463 = tpu.matmul %462, %414, %cst_129 {dimension_numbers = #tpu.dot_dimension_numbers<[1], [0], [0], [1], [0, 0, 1, 1], [], []>} : vector<2x64xbf16>, vector<64x256xbf16>, vector<2x256xf32> -> vector<2x256xf32>
    %464 = vector.extract_strided_slice %463 {offsets = [0, 0], sizes = [2, 128], strides = [1, 1]} : vector<2x256xf32> to vector<2x128xf32>
    %465 = arith.addf %460, %464 : vector<2x128xf32>
    %466 = vector.extract_strided_slice %463 {offsets = [0, 128], sizes = [2, 128], strides = [1, 1]} : vector<2x256xf32> to vector<2x128xf32>
    %467 = arith.addf %461, %466 : vector<2x128xf32>
    %468 = vector.extract_strided_slice %465 {offsets = [0, 0], sizes = [2, 96], strides = [1, 1]} : vector<2x128xf32> to vector<2x96xf32>
    %469 = arith.negf %468 : vector<2x96xf32>
    %470 = math.exp %469 : vector<2x96xf32>
    %cst_130 = arith.constant 1.000000e+00 : f32
    %471 = vector.broadcast %cst_130 : f32 to vector<2x96xf32>
    %472 = arith.addf %471, %470 : vector<2x96xf32>
    %473 = arith.divf %471, %472 : vector<2x96xf32>
    %474 = vector.extract_strided_slice %465 {offsets = [0, 96], sizes = [2, 32], strides = [1, 1]} : vector<2x128xf32> to vector<2x32xf32>
    %475 = math.tanh %474 : vector<2x32xf32>
    %476 = vector.extract_strided_slice %473 {offsets = [0, 32], sizes = [2, 32], strides = [1, 1]} : vector<2x96xf32> to vector<2x32xf32>
    %477 = arith.mulf %476, %437 : vector<2x32xf32>
    %478 = vector.extract_strided_slice %473 {offsets = [0, 0], sizes = [2, 32], strides = [1, 1]} : vector<2x96xf32> to vector<2x32xf32>
    %479 = arith.mulf %478, %475 : vector<2x32xf32>
    %480 = arith.addf %477, %479 : vector<2x32xf32>
    %481 = vector.extract_strided_slice %473 {offsets = [0, 64], sizes = [2, 32], strides = [1, 1]} : vector<2x96xf32> to vector<2x32xf32>
    %482 = math.tanh %480 : vector<2x32xf32>
    %483 = arith.mulf %481, %482 : vector<2x32xf32>
    %484 = vector.extract_strided_slice %467 {offsets = [0, 0], sizes = [2, 96], strides = [1, 1]} : vector<2x128xf32> to vector<2x96xf32>
    %485 = arith.negf %484 : vector<2x96xf32>
    %486 = math.exp %485 : vector<2x96xf32>
    %cst_131 = arith.constant 1.000000e+00 : f32
    %487 = vector.broadcast %cst_131 : f32 to vector<2x96xf32>
    %488 = arith.addf %487, %486 : vector<2x96xf32>
    %489 = arith.divf %487, %488 : vector<2x96xf32>
    %490 = vector.extract_strided_slice %467 {offsets = [0, 96], sizes = [2, 32], strides = [1, 1]} : vector<2x128xf32> to vector<2x32xf32>
    %491 = math.tanh %490 : vector<2x32xf32>
    %492 = vector.extract_strided_slice %489 {offsets = [0, 32], sizes = [2, 32], strides = [1, 1]} : vector<2x96xf32> to vector<2x32xf32>
    %493 = arith.mulf %492, %453 : vector<2x32xf32>
    %494 = vector.extract_strided_slice %489 {offsets = [0, 0], sizes = [2, 32], strides = [1, 1]} : vector<2x96xf32> to vector<2x32xf32>
    %495 = arith.mulf %494, %491 : vector<2x32xf32>
    %496 = arith.addf %493, %495 : vector<2x32xf32>
    %497 = vector.extract_strided_slice %489 {offsets = [0, 64], sizes = [2, 32], strides = [1, 1]} : vector<2x96xf32> to vector<2x32xf32>
    %498 = math.tanh %496 : vector<2x32xf32>
    %499 = arith.mulf %497, %498 : vector<2x32xf32>
    %500 = tpu.concatenate %483, %499 in 1 : vector<2x32xf32>, vector<2x32xf32> -> vector<2x64xf32>
    %c2_132 = arith.constant 2 : index
    %c0_133 = arith.constant 0 : index
    %501 = vector.load %arg6[%c2_132, %c0_133] : memref<16x128xf32, #tpu.memory_space<vmem>>, vector<2x32xf32>
    tpu.vector_store %arg6[%c2_132, %c0_133], %483 {strides = array<i32>} : memref<16x128xf32, #tpu.memory_space<vmem>>, vector<2x32xf32>,
    %c12_134 = arith.constant 12 : index
    %c32_135 = arith.constant 32 : index
    %502 = vector.load %arg6[%c12_134, %c32_135] : memref<16x128xf32, #tpu.memory_space<vmem>>, vector<2x32xf32>
    tpu.vector_store %arg6[%c12_134, %c32_135], %499 {strides = array<i32>} : memref<16x128xf32, #tpu.memory_space<vmem>>, vector<2x32xf32>,
    %503 = vector.extract_strided_slice %420 {offsets = [4, 0], sizes = [2, 128], strides = [1, 1]} : vector<16x256xf32> to vector<2x128xf32>
    %504 = vector.extract_strided_slice %420 {offsets = [10, 128], sizes = [2, 128], strides = [1, 1]} : vector<16x256xf32> to vector<2x128xf32>
    %505 = arith.truncf %500 : vector<2x64xf32> to vector<2x64xbf16>
    %cst_136 = arith.constant dense<0.000000e+00> : vector<2x256xf32>
    %506 = tpu.matmul %505, %414, %cst_136 {dimension_numbers = #tpu.dot_dimension_numbers<[1], [0], [0], [1], [0, 0, 1, 1], [], []>} : vector<2x64xbf16>, vector<64x256xbf16>, vector<2x256xf32> -> vector<2x256xf32>
    %507 = vector.extract_strided_slice %506 {offsets = [0, 0], sizes = [2, 128], strides = [1, 1]} : vector<2x256xf32> to vector<2x128xf32>
    %508 = arith.addf %503, %507 : vector<2x128xf32>
    %509 = vector.extract_strided_slice %506 {offsets = [0, 128], sizes = [2, 128], strides = [1, 1]} : vector<2x256xf32> to vector<2x128xf32>
    %510 = arith.addf %504, %509 : vector<2x128xf32>
    %511 = vector.extract_strided_slice %508 {offsets = [0, 0], sizes = [2, 96], strides = [1, 1]} : vector<2x128xf32> to vector<2x96xf32>
    %512 = arith.negf %511 : vector<2x96xf32>
    %513 = math.exp %512 : vector<2x96xf32>
    %cst_137 = arith.constant 1.000000e+00 : f32
    %514 = vector.broadcast %cst_137 : f32 to vector<2x96xf32>
    %515 = arith.addf %514, %513 : vector<2x96xf32>
    %516 = arith.divf %514, %515 : vector<2x96xf32>
    %517 = vector.extract_strided_slice %508 {offsets = [0, 96], sizes = [2, 32], strides = [1, 1]} : vector<2x128xf32> to vector<2x32xf32>
    %518 = math.tanh %517 : vector<2x32xf32>
    %519 = vector.extract_strided_slice %516 {offsets = [0, 32], sizes = [2, 32], strides = [1, 1]} : vector<2x96xf32> to vector<2x32xf32>
    %520 = arith.mulf %519, %480 : vector<2x32xf32>
    %521 = vector.extract_strided_slice %516 {offsets = [0, 0], sizes = [2, 32], strides = [1, 1]} : vector<2x96xf32> to vector<2x32xf32>
    %522 = arith.mulf %521, %518 : vector<2x32xf32>
    %523 = arith.addf %520, %522 : vector<2x32xf32>
    %524 = vector.extract_strided_slice %516 {offsets = [0, 64], sizes = [2, 32], strides = [1, 1]} : vector<2x96xf32> to vector<2x32xf32>
    %525 = math.tanh %523 : vector<2x32xf32>
    %526 = arith.mulf %524, %525 : vector<2x32xf32>
    %527 = vector.extract_strided_slice %510 {offsets = [0, 0], sizes = [2, 96], strides = [1, 1]} : vector<2x128xf32> to vector<2x96xf32>
    %528 = arith.negf %527 : vector<2x96xf32>
    %529 = math.exp %528 : vector<2x96xf32>
    %cst_138 = arith.constant 1.000000e+00 : f32
    %530 = vector.broadcast %cst_138 : f32 to vector<2x96xf32>
    %531 = arith.addf %530, %529 : vector<2x96xf32>
    %532 = arith.divf %530, %531 : vector<2x96xf32>
    %533 = vector.extract_strided_slice %510 {offsets = [0, 96], sizes = [2, 32], strides = [1, 1]} : vector<2x128xf32> to vector<2x32xf32>
    %534 = math.tanh %533 : vector<2x32xf32>
    %535 = vector.extract_strided_slice %532 {offsets = [0, 32], sizes = [2, 32], strides = [1, 1]} : vector<2x96xf32> to vector<2x32xf32>
    %536 = arith.mulf %535, %496 : vector<2x32xf32>
    %537 = vector.extract_strided_slice %532 {offsets = [0, 0], sizes = [2, 32], strides = [1, 1]} : vector<2x96xf32> to vector<2x32xf32>
    %538 = arith.mulf %537, %534 : vector<2x32xf32>
    %539 = arith.addf %536, %538 : vector<2x32xf32>
    %540 = vector.extract_strided_slice %532 {offsets = [0, 64], sizes = [2, 32], strides = [1, 1]} : vector<2x96xf32> to vector<2x32xf32>
    %541 = math.tanh %539 : vector<2x32xf32>
    %542 = arith.mulf %540, %541 : vector<2x32xf32>
    %543 = tpu.concatenate %526, %542 in 1 : vector<2x32xf32>, vector<2x32xf32> -> vector<2x64xf32>
    %c4_139 = arith.constant 4 : index
    %c0_140 = arith.constant 0 : index
    %544 = vector.load %arg6[%c4_139, %c0_140] : memref<16x128xf32, #tpu.memory_space<vmem>>, vector<2x32xf32>
    tpu.vector_store %arg6[%c4_139, %c0_140], %526 {strides = array<i32>} : memref<16x128xf32, #tpu.memory_space<vmem>>, vector<2x32xf32>,
    %c10_141 = arith.constant 10 : index
    %c32_142 = arith.constant 32 : index
    %545 = vector.load %arg6[%c10_141, %c32_142] : memref<16x128xf32, #tpu.memory_space<vmem>>, vector<2x32xf32>
    tpu.vector_store %arg6[%c10_141, %c32_142], %542 {strides = array<i32>} : memref<16x128xf32, #tpu.memory_space<vmem>>, vector<2x32xf32>,
    %546 = vector.extract_strided_slice %420 {offsets = [6, 0], sizes = [2, 128], strides = [1, 1]} : vector<16x256xf32> to vector<2x128xf32>
    %547 = vector.extract_strided_slice %420 {offsets = [8, 128], sizes = [2, 128], strides = [1, 1]} : vector<16x256xf32> to vector<2x128xf32>
    %548 = arith.truncf %543 : vector<2x64xf32> to vector<2x64xbf16>
    %cst_143 = arith.constant dense<0.000000e+00> : vector<2x256xf32>
    %549 = tpu.matmul %548, %414, %cst_143 {dimension_numbers = #tpu.dot_dimension_numbers<[1], [0], [0], [1], [0, 0, 1, 1], [], []>} : vector<2x64xbf16>, vector<64x256xbf16>, vector<2x256xf32> -> vector<2x256xf32>
    %550 = vector.extract_strided_slice %549 {offsets = [0, 0], sizes = [2, 128], strides = [1, 1]} : vector<2x256xf32> to vector<2x128xf32>
    %551 = arith.addf %546, %550 : vector<2x128xf32>
    %552 = vector.extract_strided_slice %549 {offsets = [0, 128], sizes = [2, 128], strides = [1, 1]} : vector<2x256xf32> to vector<2x128xf32>
    %553 = arith.addf %547, %552 : vector<2x128xf32>
    %554 = vector.extract_strided_slice %551 {offsets = [0, 0], sizes = [2, 96], strides = [1, 1]} : vector<2x128xf32> to vector<2x96xf32>
    %555 = arith.negf %554 : vector<2x96xf32>
    %556 = math.exp %555 : vector<2x96xf32>
    %cst_144 = arith.constant 1.000000e+00 : f32
    %557 = vector.broadcast %cst_144 : f32 to vector<2x96xf32>
    %558 = arith.addf %557, %556 : vector<2x96xf32>
    %559 = arith.divf %557, %558 : vector<2x96xf32>
    %560 = vector.extract_strided_slice %551 {offsets = [0, 96], sizes = [2, 32], strides = [1, 1]} : vector<2x128xf32> to vector<2x32xf32>
    %561 = math.tanh %560 : vector<2x32xf32>
    %562 = vector.extract_strided_slice %559 {offsets = [0, 32], sizes = [2, 32], strides = [1, 1]} : vector<2x96xf32> to vector<2x32xf32>
    %563 = arith.mulf %562, %523 : vector<2x32xf32>
    %564 = vector.extract_strided_slice %559 {offsets = [0, 0], sizes = [2, 32], strides = [1, 1]} : vector<2x96xf32> to vector<2x32xf32>
    %565 = arith.mulf %564, %561 : vector<2x32xf32>
    %566 = arith.addf %563, %565 : vector<2x32xf32>
    %567 = vector.extract_strided_slice %559 {offsets = [0, 64], sizes = [2, 32], strides = [1, 1]} : vector<2x96xf32> to vector<2x32xf32>
    %568 = math.tanh %566 : vector<2x32xf32>
    %569 = arith.mulf %567, %568 : vector<2x32xf32>
    %570 = vector.extract_strided_slice %553 {offsets = [0, 0], sizes = [2, 96], strides = [1, 1]} : vector<2x128xf32> to vector<2x96xf32>
    %571 = arith.negf %570 : vector<2x96xf32>
    %572 = math.exp %571 : vector<2x96xf32>
    %cst_145 = arith.constant 1.000000e+00 : f32
    %573 = vector.broadcast %cst_145 : f32 to vector<2x96xf32>
    %574 = arith.addf %573, %572 : vector<2x96xf32>
    %575 = arith.divf %573, %574 : vector<2x96xf32>
    %576 = vector.extract_strided_slice %553 {offsets = [0, 96], sizes = [2, 32], strides = [1, 1]} : vector<2x128xf32> to vector<2x32xf32>
    %577 = math.tanh %576 : vector<2x32xf32>
    %578 = vector.extract_strided_slice %575 {offsets = [0, 32], sizes = [2, 32], strides = [1, 1]} : vector<2x96xf32> to vector<2x32xf32>
    %579 = arith.mulf %578, %539 : vector<2x32xf32>
    %580 = vector.extract_strided_slice %575 {offsets = [0, 0], sizes = [2, 32], strides = [1, 1]} : vector<2x96xf32> to vector<2x32xf32>
    %581 = arith.mulf %580, %577 : vector<2x32xf32>
    %582 = arith.addf %579, %581 : vector<2x32xf32>
    %583 = vector.extract_strided_slice %575 {offsets = [0, 64], sizes = [2, 32], strides = [1, 1]} : vector<2x96xf32> to vector<2x32xf32>
    %584 = math.tanh %582 : vector<2x32xf32>
    %585 = arith.mulf %583, %584 : vector<2x32xf32>
    %586 = tpu.concatenate %569, %585 in 1 : vector<2x32xf32>, vector<2x32xf32> -> vector<2x64xf32>
    %c6_146 = arith.constant 6 : index
    %c0_147 = arith.constant 0 : index
    %587 = vector.load %arg6[%c6_146, %c0_147] : memref<16x128xf32, #tpu.memory_space<vmem>>, vector<2x32xf32>
    tpu.vector_store %arg6[%c6_146, %c0_147], %569 {strides = array<i32>} : memref<16x128xf32, #tpu.memory_space<vmem>>, vector<2x32xf32>,
    %c8_148 = arith.constant 8 : index
    %c32_149 = arith.constant 32 : index
    %588 = vector.load %arg6[%c8_148, %c32_149] : memref<16x128xf32, #tpu.memory_space<vmem>>, vector<2x32xf32>
    tpu.vector_store %arg6[%c8_148, %c32_149], %585 {strides = array<i32>} : memref<16x128xf32, #tpu.memory_space<vmem>>, vector<2x32xf32>,
    %589 = vector.extract_strided_slice %420 {offsets = [8, 0], sizes = [2, 128], strides = [1, 1]} : vector<16x256xf32> to vector<2x128xf32>
    %590 = vector.extract_strided_slice %420 {offsets = [6, 128], sizes = [2, 128], strides = [1, 1]} : vector<16x256xf32> to vector<2x128xf32>
    %591 = arith.truncf %586 : vector<2x64xf32> to vector<2x64xbf16>
    %cst_150 = arith.constant dense<0.000000e+00> : vector<2x256xf32>
    %592 = tpu.matmul %591, %414, %cst_150 {dimension_numbers = #tpu.dot_dimension_numbers<[1], [0], [0], [1], [0, 0, 1, 1], [], []>} : vector<2x64xbf16>, vector<64x256xbf16>, vector<2x256xf32> -> vector<2x256xf32>
    %593 = vector.extract_strided_slice %592 {offsets = [0, 0], sizes = [2, 128], strides = [1, 1]} : vector<2x256xf32> to vector<2x128xf32>
    %594 = arith.addf %589, %593 : vector<2x128xf32>
    %595 = vector.extract_strided_slice %592 {offsets = [0, 128], sizes = [2, 128], strides = [1, 1]} : vector<2x256xf32> to vector<2x128xf32>
    %596 = arith.addf %590, %595 : vector<2x128xf32>
    %597 = vector.extract_strided_slice %594 {offsets = [0, 0], sizes = [2, 96], strides = [1, 1]} : vector<2x128xf32> to vector<2x96xf32>
    %598 = arith.negf %597 : vector<2x96xf32>
    %599 = math.exp %598 : vector<2x96xf32>
    %cst_151 = arith.constant 1.000000e+00 : f32
    %600 = vector.broadcast %cst_151 : f32 to vector<2x96xf32>
    %601 = arith.addf %600, %599 : vector<2x96xf32>
    %602 = arith.divf %600, %601 : vector<2x96xf32>
    %603 = vector.extract_strided_slice %594 {offsets = [0, 96], sizes = [2, 32], strides = [1, 1]} : vector<2x128xf32> to vector<2x32xf32>
    %604 = math.tanh %603 : vector<2x32xf32>
    %605 = vector.extract_strided_slice %602 {offsets = [0, 32], sizes = [2, 32], strides = [1, 1]} : vector<2x96xf32> to vector<2x32xf32>
    %606 = arith.mulf %605, %566 : vector<2x32xf32>
    %607 = vector.extract_strided_slice %602 {offsets = [0, 0], sizes = [2, 32], strides = [1, 1]} : vector<2x96xf32> to vector<2x32xf32>
    %608 = arith.mulf %607, %604 : vector<2x32xf32>
    %609 = arith.addf %606, %608 : vector<2x32xf32>
    %610 = vector.extract_strided_slice %602 {offsets = [0, 64], sizes = [2, 32], strides = [1, 1]} : vector<2x96xf32> to vector<2x32xf32>
    %611 = math.tanh %609 : vector<2x32xf32>
    %612 = arith.mulf %610, %611 : vector<2x32xf32>
    %613 = vector.extract_strided_slice %596 {offsets = [0, 0], sizes = [2, 96], strides = [1, 1]} : vector<2x128xf32> to vector<2x96xf32>
    %614 = arith.negf %613 : vector<2x96xf32>
    %615 = math.exp %614 : vector<2x96xf32>
    %cst_152 = arith.constant 1.000000e+00 : f32
    %616 = vector.broadcast %cst_152 : f32 to vector<2x96xf32>
    %617 = arith.addf %616, %615 : vector<2x96xf32>
    %618 = arith.divf %616, %617 : vector<2x96xf32>
    %619 = vector.extract_strided_slice %596 {offsets = [0, 96], sizes = [2, 32], strides = [1, 1]} : vector<2x128xf32> to vector<2x32xf32>
    %620 = math.tanh %619 : vector<2x32xf32>
    %621 = vector.extract_strided_slice %618 {offsets = [0, 32], sizes = [2, 32], strides = [1, 1]} : vector<2x96xf32> to vector<2x32xf32>
    %622 = arith.mulf %621, %582 : vector<2x32xf32>
    %623 = vector.extract_strided_slice %618 {offsets = [0, 0], sizes = [2, 32], strides = [1, 1]} : vector<2x96xf32> to vector<2x32xf32>
    %624 = arith.mulf %623, %620 : vector<2x32xf32>
    %625 = arith.addf %622, %624 : vector<2x32xf32>
    %626 = vector.extract_strided_slice %618 {offsets = [0, 64], sizes = [2, 32], strides = [1, 1]} : vector<2x96xf32> to vector<2x32xf32>
    %627 = math.tanh %625 : vector<2x32xf32>
    %628 = arith.mulf %626, %627 : vector<2x32xf32>
    %629 = tpu.concatenate %612, %628 in 1 : vector<2x32xf32>, vector<2x32xf32> -> vector<2x64xf32>
    %c8_153 = arith.constant 8 : index
    %c0_154 = arith.constant 0 : index
    %630 = vector.load %arg6[%c8_153, %c0_154] : memref<16x128xf32, #tpu.memory_space<vmem>>, vector<2x32xf32>
    tpu.vector_store %arg6[%c8_153, %c0_154], %612 {strides = array<i32>} : memref<16x128xf32, #tpu.memory_space<vmem>>, vector<2x32xf32>,
    %c6_155 = arith.constant 6 : index
    %c32_156 = arith.constant 32 : index
    %631 = vector.load %arg6[%c6_155, %c32_156] : memref<16x128xf32, #tpu.memory_space<vmem>>, vector<2x32xf32>
    tpu.vector_store %arg6[%c6_155, %c32_156], %628 {strides = array<i32>} : memref<16x128xf32, #tpu.memory_space<vmem>>, vector<2x32xf32>,
    %632 = vector.extract_strided_slice %420 {offsets = [10, 0], sizes = [2, 128], strides = [1, 1]} : vector<16x256xf32> to vector<2x128xf32>
    %633 = vector.extract_strided_slice %420 {offsets = [4, 128], sizes = [2, 128], strides = [1, 1]} : vector<16x256xf32> to vector<2x128xf32>
    %634 = arith.truncf %629 : vector<2x64xf32> to vector<2x64xbf16>
    %cst_157 = arith.constant dense<0.000000e+00> : vector<2x256xf32>
    %635 = tpu.matmul %634, %414, %cst_157 {dimension_numbers = #tpu.dot_dimension_numbers<[1], [0], [0], [1], [0, 0, 1, 1], [], []>} : vector<2x64xbf16>, vector<64x256xbf16>, vector<2x256xf32> -> vector<2x256xf32>
    %636 = vector.extract_strided_slice %635 {offsets = [0, 0], sizes = [2, 128], strides = [1, 1]} : vector<2x256xf32> to vector<2x128xf32>
    %637 = arith.addf %632, %636 : vector<2x128xf32>
    %638 = vector.extract_strided_slice %635 {offsets = [0, 128], sizes = [2, 128], strides = [1, 1]} : vector<2x256xf32> to vector<2x128xf32>
    %639 = arith.addf %633, %638 : vector<2x128xf32>
    %640 = vector.extract_strided_slice %637 {offsets = [0, 0], sizes = [2, 96], strides = [1, 1]} : vector<2x128xf32> to vector<2x96xf32>
    %641 = arith.negf %640 : vector<2x96xf32>
    %642 = math.exp %641 : vector<2x96xf32>
    %cst_158 = arith.constant 1.000000e+00 : f32
    %643 = vector.broadcast %cst_158 : f32 to vector<2x96xf32>
    %644 = arith.addf %643, %642 : vector<2x96xf32>
    %645 = arith.divf %643, %644 : vector<2x96xf32>
    %646 = vector.extract_strided_slice %637 {offsets = [0, 96], sizes = [2, 32], strides = [1, 1]} : vector<2x128xf32> to vector<2x32xf32>
    %647 = math.tanh %646 : vector<2x32xf32>
    %648 = vector.extract_strided_slice %645 {offsets = [0, 32], sizes = [2, 32], strides = [1, 1]} : vector<2x96xf32> to vector<2x32xf32>
    %649 = arith.mulf %648, %609 : vector<2x32xf32>
    %650 = vector.extract_strided_slice %645 {offsets = [0, 0], sizes = [2, 32], strides = [1, 1]} : vector<2x96xf32> to vector<2x32xf32>
    %651 = arith.mulf %650, %647 : vector<2x32xf32>
    %652 = arith.addf %649, %651 : vector<2x32xf32>
    %653 = vector.extract_strided_slice %645 {offsets = [0, 64], sizes = [2, 32], strides = [1, 1]} : vector<2x96xf32> to vector<2x32xf32>
    %654 = math.tanh %652 : vector<2x32xf32>
    %655 = arith.mulf %653, %654 : vector<2x32xf32>
    %656 = vector.extract_strided_slice %639 {offsets = [0, 0], sizes = [2, 96], strides = [1, 1]} : vector<2x128xf32> to vector<2x96xf32>
    %657 = arith.negf %656 : vector<2x96xf32>
    %658 = math.exp %657 : vector<2x96xf32>
    %cst_159 = arith.constant 1.000000e+00 : f32
    %659 = vector.broadcast %cst_159 : f32 to vector<2x96xf32>
    %660 = arith.addf %659, %658 : vector<2x96xf32>
    %661 = arith.divf %659, %660 : vector<2x96xf32>
    %662 = vector.extract_strided_slice %639 {offsets = [0, 96], sizes = [2, 32], strides = [1, 1]} : vector<2x128xf32> to vector<2x32xf32>
    %663 = math.tanh %662 : vector<2x32xf32>
    %664 = vector.extract_strided_slice %661 {offsets = [0, 32], sizes = [2, 32], strides = [1, 1]} : vector<2x96xf32> to vector<2x32xf32>
    %665 = arith.mulf %664, %625 : vector<2x32xf32>
    %666 = vector.extract_strided_slice %661 {offsets = [0, 0], sizes = [2, 32], strides = [1, 1]} : vector<2x96xf32> to vector<2x32xf32>
    %667 = arith.mulf %666, %663 : vector<2x32xf32>
    %668 = arith.addf %665, %667 : vector<2x32xf32>
    %669 = vector.extract_strided_slice %661 {offsets = [0, 64], sizes = [2, 32], strides = [1, 1]} : vector<2x96xf32> to vector<2x32xf32>
    %670 = math.tanh %668 : vector<2x32xf32>
    %671 = arith.mulf %669, %670 : vector<2x32xf32>
    %672 = tpu.concatenate %655, %671 in 1 : vector<2x32xf32>, vector<2x32xf32> -> vector<2x64xf32>
    %c10_160 = arith.constant 10 : index
    %c0_161 = arith.constant 0 : index
    %673 = vector.load %arg6[%c10_160, %c0_161] : memref<16x128xf32, #tpu.memory_space<vmem>>, vector<2x32xf32>
    tpu.vector_store %arg6[%c10_160, %c0_161], %655 {strides = array<i32>} : memref<16x128xf32, #tpu.memory_space<vmem>>, vector<2x32xf32>,
    %c4_162 = arith.constant 4 : index
    %c32_163 = arith.constant 32 : index
    %674 = vector.load %arg6[%c4_162, %c32_163] : memref<16x128xf32, #tpu.memory_space<vmem>>, vector<2x32xf32>
    tpu.vector_store %arg6[%c4_162, %c32_163], %671 {strides = array<i32>} : memref<16x128xf32, #tpu.memory_space<vmem>>, vector<2x32xf32>,
    %675 = vector.extract_strided_slice %420 {offsets = [12, 0], sizes = [2, 128], strides = [1, 1]} : vector<16x256xf32> to vector<2x128xf32>
    %676 = vector.extract_strided_slice %420 {offsets = [2, 128], sizes = [2, 128], strides = [1, 1]} : vector<16x256xf32> to vector<2x128xf32>
    %677 = arith.truncf %672 : vector<2x64xf32> to vector<2x64xbf16>
    %cst_164 = arith.constant dense<0.000000e+00> : vector<2x256xf32>
    %678 = tpu.matmul %677, %414, %cst_164 {dimension_numbers = #tpu.dot_dimension_numbers<[1], [0], [0], [1], [0, 0, 1, 1], [], []>} : vector<2x64xbf16>, vector<64x256xbf16>, vector<2x256xf32> -> vector<2x256xf32>
    %679 = vector.extract_strided_slice %678 {offsets = [0, 0], sizes = [2, 128], strides = [1, 1]} : vector<2x256xf32> to vector<2x128xf32>
    %680 = arith.addf %675, %679 : vector<2x128xf32>
    %681 = vector.extract_strided_slice %678 {offsets = [0, 128], sizes = [2, 128], strides = [1, 1]} : vector<2x256xf32> to vector<2x128xf32>
    %682 = arith.addf %676, %681 : vector<2x128xf32>
    %683 = vector.extract_strided_slice %680 {offsets = [0, 0], sizes = [2, 96], strides = [1, 1]} : vector<2x128xf32> to vector<2x96xf32>
    %684 = arith.negf %683 : vector<2x96xf32>
    %685 = math.exp %684 : vector<2x96xf32>
    %cst_165 = arith.constant 1.000000e+00 : f32
    %686 = vector.broadcast %cst_165 : f32 to vector<2x96xf32>
    %687 = arith.addf %686, %685 : vector<2x96xf32>
    %688 = arith.divf %686, %687 : vector<2x96xf32>
    %689 = vector.extract_strided_slice %680 {offsets = [0, 96], sizes = [2, 32], strides = [1, 1]} : vector<2x128xf32> to vector<2x32xf32>
    %690 = math.tanh %689 : vector<2x32xf32>
    %691 = vector.extract_strided_slice %688 {offsets = [0, 32], sizes = [2, 32], strides = [1, 1]} : vector<2x96xf32> to vector<2x32xf32>
    %692 = arith.mulf %691, %652 : vector<2x32xf32>
    %693 = vector.extract_strided_slice %688 {offsets = [0, 0], sizes = [2, 32], strides = [1, 1]} : vector<2x96xf32> to vector<2x32xf32>
    %694 = arith.mulf %693, %690 : vector<2x32xf32>
    %695 = arith.addf %692, %694 : vector<2x32xf32>
    %696 = vector.extract_strided_slice %688 {offsets = [0, 64], sizes = [2, 32], strides = [1, 1]} : vector<2x96xf32> to vector<2x32xf32>
    %697 = math.tanh %695 : vector<2x32xf32>
    %698 = arith.mulf %696, %697 : vector<2x32xf32>
    %699 = vector.extract_strided_slice %682 {offsets = [0, 0], sizes = [2, 96], strides = [1, 1]} : vector<2x128xf32> to vector<2x96xf32>
    %700 = arith.negf %699 : vector<2x96xf32>
    %701 = math.exp %700 : vector<2x96xf32>
    %cst_166 = arith.constant 1.000000e+00 : f32
    %702 = vector.broadcast %cst_166 : f32 to vector<2x96xf32>
    %703 = arith.addf %702, %701 : vector<2x96xf32>
    %704 = arith.divf %702, %703 : vector<2x96xf32>
    %705 = vector.extract_strided_slice %682 {offsets = [0, 96], sizes = [2, 32], strides = [1, 1]} : vector<2x128xf32> to vector<2x32xf32>
    %706 = math.tanh %705 : vector<2x32xf32>
    %707 = vector.extract_strided_slice %704 {offsets = [0, 32], sizes = [2, 32], strides = [1, 1]} : vector<2x96xf32> to vector<2x32xf32>
    %708 = arith.mulf %707, %668 : vector<2x32xf32>
    %709 = vector.extract_strided_slice %704 {offsets = [0, 0], sizes = [2, 32], strides = [1, 1]} : vector<2x96xf32> to vector<2x32xf32>
    %710 = arith.mulf %709, %706 : vector<2x32xf32>
    %711 = arith.addf %708, %710 : vector<2x32xf32>
    %712 = vector.extract_strided_slice %704 {offsets = [0, 64], sizes = [2, 32], strides = [1, 1]} : vector<2x96xf32> to vector<2x32xf32>
    %713 = math.tanh %711 : vector<2x32xf32>
    %714 = arith.mulf %712, %713 : vector<2x32xf32>
    %715 = tpu.concatenate %698, %714 in 1 : vector<2x32xf32>, vector<2x32xf32> -> vector<2x64xf32>
    %c12_167 = arith.constant 12 : index
    %c0_168 = arith.constant 0 : index
    %716 = vector.load %arg6[%c12_167, %c0_168] : memref<16x128xf32, #tpu.memory_space<vmem>>, vector<2x32xf32>
    tpu.vector_store %arg6[%c12_167, %c0_168], %698 {strides = array<i32>} : memref<16x128xf32, #tpu.memory_space<vmem>>, vector<2x32xf32>,
    %c2_169 = arith.constant 2 : index
    %c32_170 = arith.constant 32 : index
    %717 = vector.load %arg6[%c2_169, %c32_170] : memref<16x128xf32, #tpu.memory_space<vmem>>, vector<2x32xf32>
    tpu.vector_store %arg6[%c2_169, %c32_170], %714 {strides = array<i32>} : memref<16x128xf32, #tpu.memory_space<vmem>>, vector<2x32xf32>,
    %718 = vector.extract_strided_slice %420 {offsets = [14, 0], sizes = [2, 128], strides = [1, 1]} : vector<16x256xf32> to vector<2x128xf32>
    %719 = vector.extract_strided_slice %420 {offsets = [0, 128], sizes = [2, 128], strides = [1, 1]} : vector<16x256xf32> to vector<2x128xf32>
    %720 = arith.truncf %715 : vector<2x64xf32> to vector<2x64xbf16>
    %cst_171 = arith.constant dense<0.000000e+00> : vector<2x256xf32>
    %721 = tpu.matmul %720, %414, %cst_171 {dimension_numbers = #tpu.dot_dimension_numbers<[1], [0], [0], [1], [0, 0, 1, 1], [], []>} : vector<2x64xbf16>, vector<64x256xbf16>, vector<2x256xf32> -> vector<2x256xf32>
    %722 = vector.extract_strided_slice %721 {offsets = [0, 0], sizes = [2, 128], strides = [1, 1]} : vector<2x256xf32> to vector<2x128xf32>
    %723 = arith.addf %718, %722 : vector<2x128xf32>
    %724 = vector.extract_strided_slice %721 {offsets = [0, 128], sizes = [2, 128], strides = [1, 1]} : vector<2x256xf32> to vector<2x128xf32>
    %725 = arith.addf %719, %724 : vector<2x128xf32>
    %726 = vector.extract_strided_slice %723 {offsets = [0, 0], sizes = [2, 96], strides = [1, 1]} : vector<2x128xf32> to vector<2x96xf32>
    %727 = arith.negf %726 : vector<2x96xf32>
    %728 = math.exp %727 : vector<2x96xf32>
    %cst_172 = arith.constant 1.000000e+00 : f32
    %729 = vector.broadcast %cst_172 : f32 to vector<2x96xf32>
    %730 = arith.addf %729, %728 : vector<2x96xf32>
    %731 = arith.divf %729, %730 : vector<2x96xf32>
    %732 = vector.extract_strided_slice %723 {offsets = [0, 96], sizes = [2, 32], strides = [1, 1]} : vector<2x128xf32> to vector<2x32xf32>
    %733 = math.tanh %732 : vector<2x32xf32>
    %734 = vector.extract_strided_slice %731 {offsets = [0, 32], sizes = [2, 32], strides = [1, 1]} : vector<2x96xf32> to vector<2x32xf32>
    %735 = arith.mulf %734, %695 : vector<2x32xf32>
    %736 = vector.extract_strided_slice %731 {offsets = [0, 0], sizes = [2, 32], strides = [1, 1]} : vector<2x96xf32> to vector<2x32xf32>
    %737 = arith.mulf %736, %733 : vector<2x32xf32>
    %738 = arith.addf %735, %737 : vector<2x32xf32>
    %739 = vector.extract_strided_slice %731 {offsets = [0, 64], sizes = [2, 32], strides = [1, 1]} : vector<2x96xf32> to vector<2x32xf32>
    %740 = math.tanh %738 : vector<2x32xf32>
    %741 = arith.mulf %739, %740 : vector<2x32xf32>
    %742 = vector.extract_strided_slice %725 {offsets = [0, 0], sizes = [2, 96], strides = [1, 1]} : vector<2x128xf32> to vector<2x96xf32>
    %743 = arith.negf %742 : vector<2x96xf32>
    %744 = math.exp %743 : vector<2x96xf32>
    %cst_173 = arith.constant 1.000000e+00 : f32
    %745 = vector.broadcast %cst_173 : f32 to vector<2x96xf32>
    %746 = arith.addf %745, %744 : vector<2x96xf32>
    %747 = arith.divf %745, %746 : vector<2x96xf32>
    %748 = vector.extract_strided_slice %725 {offsets = [0, 96], sizes = [2, 32], strides = [1, 1]} : vector<2x128xf32> to vector<2x32xf32>
    %749 = math.tanh %748 : vector<2x32xf32>
    %750 = vector.extract_strided_slice %747 {offsets = [0, 32], sizes = [2, 32], strides = [1, 1]} : vector<2x96xf32> to vector<2x32xf32>
    %751 = arith.mulf %750, %711 : vector<2x32xf32>
    %752 = vector.extract_strided_slice %747 {offsets = [0, 0], sizes = [2, 32], strides = [1, 1]} : vector<2x96xf32> to vector<2x32xf32>
    %753 = arith.mulf %752, %749 : vector<2x32xf32>
    %754 = arith.addf %751, %753 : vector<2x32xf32>
    %755 = vector.extract_strided_slice %747 {offsets = [0, 64], sizes = [2, 32], strides = [1, 1]} : vector<2x96xf32> to vector<2x32xf32>
    %756 = math.tanh %754 : vector<2x32xf32>
    %757 = arith.mulf %755, %756 : vector<2x32xf32>
    %c14_174 = arith.constant 14 : index
    %c0_175 = arith.constant 0 : index
    %758 = vector.load %arg6[%c14_174, %c0_175] : memref<16x128xf32, #tpu.memory_space<vmem>>, vector<2x32xf32>
    tpu.vector_store %arg6[%c14_174, %c0_175], %741 {strides = array<i32>} : memref<16x128xf32, #tpu.memory_space<vmem>>, vector<2x32xf32>,
    %c0_176 = arith.constant 0 : index
    %c32_177 = arith.constant 32 : index
    %759 = vector.load %arg6[%c0_176, %c32_177] : memref<16x128xf32, #tpu.memory_space<vmem>>, vector<2x32xf32>
    tpu.vector_store %arg6[%c0_176, %c32_177], %757 {strides = array<i32>} : memref<16x128xf32, #tpu.memory_space<vmem>>, vector<2x32xf32>,
    %c384 = arith.constant 384 : index
    %c0_178 = arith.constant 0 : index
    %760 = vector.load %arg3[%c384, %c0_178] : memref<512x256xbf16, #tpu.memory_space<vmem>>, vector<128x128xbf16>
    %c2_179 = arith.constant 2 : index
    %c0_180 = arith.constant 0 : index
    %761 = vector.load %arg4[%c2_179, %c0_180] : memref<8x256xf32, #tpu.memory_space<vmem>>, vector<1x128xf32>
    %c0_181 = arith.constant 0 : index
    %c0_182 = arith.constant 0 : index
    %762 = vector.load %arg6[%c0_181, %c0_182] : memref<16x128xf32, #tpu.memory_space<vmem>>, vector<16x128xf32>
    %763 = arith.truncf %762 : vector<16x128xf32> to vector<16x128xbf16>
    %cst_183 = arith.constant dense<0.000000e+00> : vector<16x128xf32>
    %764 = tpu.matmul %763, %760, %cst_183 {dimension_numbers = #tpu.dot_dimension_numbers<[1], [0], [0], [1], [0, 0, 1, 1], [], []>} : vector<16x128xbf16>, vector<128x128xbf16>, vector<16x128xf32> -> vector<16x128xf32>
    %765 = vector.broadcast %761 : vector<1x128xf32> to vector<16x128xf32>
    %766 = arith.addf %764, %765 : vector<16x128xf32>
    %cst_184 = arith.constant dense<0xFF800000> : vector<16xf32>
    %767 = vector.multi_reduction <maximumf>, %766, %cst_184 [1] : vector<16x128xf32> to vector<16xf32>
    %768 = vector.shape_cast %767 : vector<16xf32> to vector<16x1xf32>
    %769 = vector.broadcast %768 : vector<16x1xf32> to vector<16x128xf32>
    %770 = arith.subf %766, %769 : vector<16x128xf32>
    %771 = math.exp %770 : vector<16x128xf32>
    %cst_185 = arith.constant dense<0.000000e+00> : vector<16xf32>
    %772 = vector.multi_reduction <add>, %771, %cst_185 [1] : vector<16x128xf32> to vector<16xf32>
    %773 = vector.shape_cast %772 : vector<16xf32> to vector<16x1xf32>
    %774 = math.log %773 : vector<16x1xf32>
    %775 = vector.broadcast %774 : vector<16x1xf32> to vector<16x128xf32>
    %776 = arith.subf %770, %775 : vector<16x128xf32>
    %c0_186 = arith.constant 0 : index
    %c0_187 = arith.constant 0 : index
    %777 = vector.load %arg5[%c0_186, %c0_187] : memref<16x128xf32, #tpu.memory_space<vmem>>, vector<16x128xf32>
    tpu.vector_store %arg5[%c0_186, %c0_187], %776 {strides = array<i32>} : memref<16x128xf32, #tpu.memory_space<vmem>>, vector<16x128xf32>,
    return
  }
  func.func @transform_0(%arg0: i32, %arg1: memref<16xi32, #tpu.memory_space<smem>>) -> (i32, i32) {
    %c0_i32 = arith.constant 0 : i32
    %c0_i32_0 = arith.constant 0 : i32
    %c0_i32_1 = arith.constant 0 : i32
    return %c0_i32, %c0_i32_0 : i32, i32
  }
  func.func @transform_1(%arg0: i32, %arg1: memref<16xi32, #tpu.memory_space<smem>>) -> (i32, i32) {
    %c0_i32 = arith.constant 0 : i32
    %c0_i32_0 = arith.constant 0 : i32
    %c0_i32_1 = arith.constant 0 : i32
    return %c0_i32, %c0_i32_0 : i32, i32
  }
  func.func @transform_2(%arg0: i32, %arg1: memref<16xi32, #tpu.memory_space<smem>>) -> (i32, i32) {
    %c0_i32 = arith.constant 0 : i32
    %c0_i32_0 = arith.constant 0 : i32
    %c0_i32_1 = arith.constant 0 : i32
    return %c0_i32, %c0_i32_0 : i32, i32
  }
  func.func @transform_3(%arg0: i32, %arg1: memref<16xi32, #tpu.memory_space<smem>>) -> (i32, i32) {
    %c0_i32 = arith.constant 0 : i32
    %c0_i32_0 = arith.constant 0 : i32
    %c0_i32_1 = arith.constant 0 : i32
    return %c0_i32, %c0_i32_0 : i32, i32
  }
}

</mosaic_0001>

<llo_original>
// kernel: tpu_custom_call.1
$region0: #{tpu_custom_call.1}
  #allocation0 [shape = 'u32[]', space=smem, size = 0x4, offset = 0x4, fixed_abs, tag = 'smem constant byte address 0x4 - core index']
  #allocation1 [shape = 'u32[72,128]{1,0:T(1,128)}', space=vmem, size = 0x9000, scoped, tag = 'internal scratch']
  #allocation2 [shape = 'f32[16,128]{1,0:T(8,128)}', space=vmem, size = 0x2000, scoped, tag = 'scratch operand']
  #allocation3 [shape = 'f32[16,128]{1,0:T(8,128)}', space=vmem, size = 0x2000, scoped, tag = 'scratch operand']
  #allocation4 [shape = 's32[1]{0}', space=sflag, size = 0x4, scoped, tag = 'scoped memory for tpu_custom_call.1']
  #allocation5 [shape = 'u8[512]{0}', space=smem, size = 0x200, scoped, tag = 'prefetched SMEM operand 0']
  %s0 = inlined_call_operand.hbm [shape: s32[16], index: 0, kind: input, shape index: {}]
  %s1 = inlined_call_operand.hbm [shape: f32[56,128], index: 1, kind: input, shape index: {}]
  %s2 = inlined_call_operand.hbm [shape: bf16[512,256], index: 2, kind: input, shape index: {}]
  %s3 = inlined_call_operand.hbm [shape: f32[8,256], index: 3, kind: input, shape index: {}]
  %s4 = inlined_call_operand.hbm [shape: f32[16,128], index: 4, kind: output, shape index: {}]
  %s5 = sld [smem:[#allocation0]]
  $region34: #{tpu_custom_call.1} parent=0
    _
  %s7 = ssub.s32 1, %s5
  %s8 = scalar_select 0, %s7, %s5
  %s10 = sshll.u32 %s0, 4
  %s11 = int_to_ptr.hbm [resolvable:$true] %s10
  %13 = dma.hbm_to_smem %s11, 16, [#allocation5], [#allocation4]
  %15 = dma.done [#allocation4], 16
  %16 = sfence
  $region1: #{tpu_custom_call.1} parent=0
    #allocation6 [shape = 'u8[28672]{0}', space=vmem, size = 0x7000, scoped, tag = 'input window, operand 1, single buffered']
    #allocation7 [shape = 's32[1]{0}', space=sflag, size = 0x4, scoped, tag = 'scoped memory for tpu_custom_call.1']
    #allocation8 [shape = 's32[1]{0}', space=sflag, size = 0x4, scoped, tag = 'scoped memory for tpu_custom_call.1']
    #allocation9 [shape = 'u8[262144]{0}', space=vmem, size = 0x40000, scoped, tag = 'input window, operand 2, single buffered']
    #allocation10 [shape = 's32[1]{0}', space=sflag, size = 0x4, scoped, tag = 'scoped memory for tpu_custom_call.1']
    #allocation11 [shape = 'u8[8192]{0}', space=vmem, size = 0x2000, scoped, tag = 'input window, operand 3, single buffered']
    #allocation12 [shape = 'u8[8192]{0}', space=vmem, size = 0x2000, scoped, tag = 'output window, operand 0, single buffered']
    %17 = vsyncpa [#allocation7], 0
    %18 = vsyncpa [#allocation10], 0
    %19 = vsyncpa [#allocation8], 0
    // Predicated region
    $region2: #{tpu_custom_call.1} parent=1 // pred_check
      _
    $region3: #{tpu_custom_call.1} parent=1 // pred_check_branch
      %21 = sbr.rel (0) target = $region5
    $region4: #{tpu_custom_call.1} parent=1 // pred_region
      %23 = vsyncadd [#allocation7], 0
      %s24 = sshll.u32 %s1, 4
      %s25 = int_to_ptr.hbm [resolvable:$true] %s24
      %s26 = sshll.u32 [#allocation6], 4
      %s27 = int_to_ptr.vmem [resolvable:$true] %s26
      %32 = dma.hbm_to_vmem [thread:$0]  %s25, 896, %s27, [#allocation7], 128, 128, 8
    $region5: #{tpu_custom_call.1} parent=1 // pred_fallthru
      _
    // Predicated region
    $region6: #{tpu_custom_call.1} parent=1 // pred_check
      _
    $region7: #{tpu_custom_call.1} parent=1 // pred_check_branch
      %34 = sbr.rel (0) target = $region9
    $region8: #{tpu_custom_call.1} parent=1 // pred_region
      %36 = vsyncadd [#allocation10], 0
      %s37 = sshll.u32 %s2, 4
      %s38 = int_to_ptr.hbm [resolvable:$true] %s37
      %s39 = sshll.u32 [#allocation9], 4
      %s40 = int_to_ptr.vmem [resolvable:$true] %s39
      %45 = dma.hbm_to_vmem [thread:$0]  %s38, 8192, %s40, [#allocation10], 128, 128, 8
    $region9: #{tpu_custom_call.1} parent=1 // pred_fallthru
      _
    // Predicated region
    $region10: #{tpu_custom_call.1} parent=1 // pred_check
      _
    $region11: #{tpu_custom_call.1} parent=1 // pred_check_branch
      %47 = sbr.rel (0) target = $region13
    $region12: #{tpu_custom_call.1} parent=1 // pred_region
      %49 = vsyncadd [#allocation10], 0
      %s51 = sshll.u32 %s3, 4
      %s52 = int_to_ptr.hbm [resolvable:$true] %s51
      %s53 = sshll.u32 [#allocation11], 4
      %s54 = int_to_ptr.vmem [resolvable:$true] %s53
      %56 = dma.hbm_to_vmem [thread:$0]  %s52, 256, %s54, [#allocation10]
    $region13: #{tpu_custom_call.1} parent=1 // pred_fallthru
      _
    // Predicated region
    $region14: #{tpu_custom_call.1} parent=1 // pred_check
      _
    $region15: #{tpu_custom_call.1} parent=1 // pred_check_branch
      %58 = sbr.rel (0) target = $region17
    $region16: #{tpu_custom_call.1} parent=1 // pred_region
      %60 = dma.done [#allocation7], 896
    $region17: #{tpu_custom_call.1} parent=1 // pred_fallthru
      _
    // Predicated region
    $region18: #{tpu_custom_call.1} parent=1 // pred_check
      _
    $region19: #{tpu_custom_call.1} parent=1 // pred_check_branch
      %62 = sbr.rel (0) target = $region21
    $region20: #{tpu_custom_call.1} parent=1 // pred_region
      %64 = dma.done [#allocation10], 8192
    $region21: #{tpu_custom_call.1} parent=1 // pred_fallthru
      _
    // Predicated region
    $region22: #{tpu_custom_call.1} parent=1 // pred_check
      _
    $region23: #{tpu_custom_call.1} parent=1 // pred_check_branch
      %66 = sbr.rel (0) target = $region25
    $region24: #{tpu_custom_call.1} parent=1 // pred_region
      %68 = dma.done [#allocation10], 256
    $region25: #{tpu_custom_call.1} parent=1 // pred_fallthru
      _
    %70 = vst [vmem:[#allocation3] sm:$0xff] 0.0
    %71 = vst [vmem:[#allocation3 + $0x8] sm:$0xff] 0.0
    %s72 = sld [smem:[#allocation5]]
    %s73 = scalar_lea.vmem [#allocation6], %s72
    %v74 = vld [vmem:[%s73] sm:$0x1]
    %75 = vst [vmem:[#allocation2] sm:$0x1] %v74
    %s76 = sld [smem:[#allocation5 + $0x8]]
    %s77 = scalar_lea.vmem [#allocation6], %s76
    %v78 = vld [vmem:[%s77] sm:$0x1]
    %79 = vst [vmem:[#allocation2 + $0x1] sm:$0x1] %v78
    %s80 = sld [smem:[#allocation5 + $0x1]]
    %s81 = scalar_lea.vmem [#allocation6], %s80
    %v82 = vld [vmem:[%s81] sm:$0x1]
    %83 = vst [vmem:[#allocation2 + $0x2] sm:$0x1] %v82
    %s84 = sld [smem:[#allocation5 + $0x9]]
    %s85 = scalar_lea.vmem [#allocation6], %s84
    %v86 = vld [vmem:[%s85] sm:$0x1]
    %87 = vst [vmem:[#allocation2 + $0x3] sm:$0x1] %v86
    %s88 = sld [smem:[#allocation5 + $0x2]]
    %s89 = scalar_lea.vmem [#allocation6], %s88
    %v90 = vld [vmem:[%s89] sm:$0x1]
    %91 = vst [vmem:[#allocation2 + $0x4] sm:$0x1] %v90
    %s92 = sld [smem:[#allocation5 + $0xa]]
    %s93 = scalar_lea.vmem [#allocation6], %s92
    %v94 = vld [vmem:[%s93] sm:$0x1]
    %95 = vst [vmem:[#allocation2 + $0x5] sm:$0x1] %v94
    %s96 = sld [smem:[#allocation5 + $0x3]]
    %s97 = scalar_lea.vmem [#allocation6], %s96
    %v98 = vld [vmem:[%s97] sm:$0x1]
    %99 = vst [vmem:[#allocation2 + $0x6] sm:$0x1] %v98
    %s100 = sld [smem:[#allocation5 + $0xb]]
    %s101 = scalar_lea.vmem [#allocation6], %s100
    %v102 = vld [vmem:[%s101] sm:$0x1]
    %103 = vst [vmem:[#allocation2 + $0x7] sm:$0x1] %v102
    %s104 = sld [smem:[#allocation5 + $0x4]]
    %s105 = scalar_lea.vmem [#allocation6], %s104
    %v106 = vld [vmem:[%s105] sm:$0x1]
    %107 = vst [vmem:[#allocation2 + $0x8] sm:$0x1] %v106
    %s108 = sld [smem:[#allocation5 + $0xc]]
    %s109 = scalar_lea.vmem [#allocation6], %s108
    %v110 = vld [vmem:[%s109] sm:$0x1]
    %111 = vst [vmem:[#allocation2 + $0x9] sm:$0x1] %v110
    %s112 = sld [smem:[#allocation5 + $0x5]]
    %s113 = scalar_lea.vmem [#allocation6], %s112
    %v114 = vld [vmem:[%s113] sm:$0x1]
    %115 = vst [vmem:[#allocation2 + $0xa] sm:$0x1] %v114
    %s116 = sld [smem:[#allocation5 + $0xd]]
    %s117 = scalar_lea.vmem [#allocation6], %s116
    %v118 = vld [vmem:[%s117] sm:$0x1]
    %119 = vst [vmem:[#allocation2 + $0xb] sm:$0x1] %v118
    %s120 = sld [smem:[#allocation5 + $0x6]]
    %s121 = scalar_lea.vmem [#allocation6], %s120
    %v122 = vld [vmem:[%s121] sm:$0x1]
    %123 = vst [vmem:[#allocation2 + $0xc] sm:$0x1] %v122
    %s124 = sld [smem:[#allocation5 + $0xe]]
    %s125 = scalar_lea.vmem [#allocation6], %s124
    %v126 = vld [vmem:[%s125] sm:$0x1]
    %127 = vst [vmem:[#allocation2 + $0xd] sm:$0x1] %v126
    %s128 = sld [smem:[#allocation5 + $0x7]]
    %s129 = scalar_lea.vmem [#allocation6], %s128
    %v130 = vld [vmem:[%s129] sm:$0x1]
    %131 = vst [vmem:[#allocation2 + $0xe] sm:$0x1] %v130
    %s132 = sld [smem:[#allocation5 + $0xf]]
    %s133 = scalar_lea.vmem [#allocation6], %s132
    %v134 = vld [vmem:[%s133] sm:$0x1]
    %135 = vst [vmem:[#allocation2 + $0xf] sm:$0x1] %v134
    %v136 = vld [vmem:[#allocation9] sm:$0xff]
    %v137 = vld [vmem:[#allocation9 + $0x8] sm:$0xff]
    %v138 = vld [vmem:[#allocation9 + $0x10] sm:$0xff]
    %v139 = vld [vmem:[#allocation9 + $0x18] sm:$0xff]
    %v140 = vld [vmem:[#allocation9 + $0x20] sm:$0xff]
    %v141 = vld [vmem:[#allocation9 + $0x28] sm:$0xff]
    %v142 = vld [vmem:[#allocation9 + $0x30] sm:$0xff]
    %v143 = vld [vmem:[#allocation9 + $0x38] sm:$0xff]
    %v144 = vld [vmem:[#allocation9 + $0x40] sm:$0xff]
    %v145 = vld [vmem:[#allocation9 + $0x48] sm:$0xff]
    %v146 = vld [vmem:[#allocation9 + $0x50] sm:$0xff]
    %v147 = vld [vmem:[#allocation9 + $0x58] sm:$0xff]
    %v148 = vld [vmem:[#allocation9 + $0x60] sm:$0xff]
    %v149 = vld [vmem:[#allocation9 + $0x68] sm:$0xff]
    %v150 = vld [vmem:[#allocation9 + $0x70] sm:$0xff]
    %v151 = vld [vmem:[#allocation9 + $0x78] sm:$0xff]
    %v152 = vld [vmem:[#allocation9 + $0x80] sm:$0xff]
    %v153 = vld [vmem:[#allocation9 + $0x88] sm:$0xff]
    %v154 = vld [vmem:[#allocation9 + $0x90] sm:$0xff]
    %v155 = vld [vmem:[#allocation9 + $0x98] sm:$0xff]
    %v156 = vld [vmem:[#allocation9 + $0xa0] sm:$0xff]
    %v157 = vld [vmem:[#allocation9 + $0xa8] sm:$0xff]
    %v158 = vld [vmem:[#allocation9 + $0xb0] sm:$0xff]
    %v159 = vld [vmem:[#allocation9 + $0xb8] sm:$0xff]
    %v160 = vld [vmem:[#allocation11] ss:$8 sm:$0x3]
    %v161 = vld [vmem:[#allocation2] sm:$0xff]
    %v162 = vld [vmem:[#allocation2 + $0x8] sm:$0xff]
    %v163 = vpack.c.bf16 %v162, %v161
    %v165 = vperm.slane %v160, 0
    %v166 = vperm.slane %v160, 1
    %v185 = vunpack.c.l.b16 %v136
    %v186 = vunpack.c.h.b16 %v136
    %v187 = vunpack.c.l.b16 %v137
    %v188 = vunpack.c.h.b16 %v137
    %v189 = vunpack.c.l.b16 %v138
    %v190 = vunpack.c.h.b16 %v138
    %v191 = vunpack.c.l.b16 %v139
    %v192 = vunpack.c.h.b16 %v139
    %v193 = vunpack.c.l.b16 %v140
    %v194 = vunpack.c.h.b16 %v140
    %v195 = vunpack.c.l.b16 %v141
    %v196 = vunpack.c.h.b16 %v141
    %v197 = vunpack.c.l.b16 %v142
    %v198 = vunpack.c.h.b16 %v142
    %v199 = vunpack.c.l.b16 %v143
    %v200 = vunpack.c.h.b16 %v143
    %v201 = vunpack.c.l.b16 %v144
    %v202 = vunpack.c.h.b16 %v144
    %v203 = vunpack.c.l.b16 %v145
    %v204 = vunpack.c.h.b16 %v145
    %v205 = vunpack.c.l.b16 %v146
    %v206 = vunpack.c.h.b16 %v146
    %v207 = vunpack.c.l.b16 %v147
    %v208 = vunpack.c.h.b16 %v147
    %v209 = vunpack.c.l.b16 %v148
    %v210 = vunpack.c.h.b16 %v148
    %v211 = vunpack.c.l.b16 %v149
    %v212 = vunpack.c.h.b16 %v149
    %v213 = vunpack.c.l.b16 %v150
    %v214 = vunpack.c.h.b16 %v150
    %v215 = vunpack.c.l.b16 %v151
    %v216 = vunpack.c.h.b16 %v151
    %v217 = vpack.c.b16 %v187, %v185
    %v218 = vpack.c.b16 %v188, %v186
    %v219 = vpack.c.b16 %v191, %v189
    %v220 = vpack.c.b16 %v192, %v190
    %v221 = vpack.c.b16 %v195, %v193
    %v222 = vpack.c.b16 %v196, %v194
    %v223 = vpack.c.b16 %v199, %v197
    %v224 = vpack.c.b16 %v200, %v198
    %v225 = vpack.c.b16 %v203, %v201
    %v226 = vpack.c.b16 %v204, %v202
    %v227 = vpack.c.b16 %v207, %v205
    %v228 = vpack.c.b16 %v208, %v206
    %v229 = vpack.c.b16 %v211, %v209
    %v230 = vpack.c.b16 %v212, %v210
    %v231 = vpack.c.b16 %v215, %v213
    %v232 = vpack.c.b16 %v216, %v214
    %249 = vmatpush.bf16.msra.mxu0 %v231
    %250 = vmatpush.bf16.msra.mxu0 %v229
    %251 = vmatpush.bf16.msra.mxu0 %v227
    %252 = vmatpush.bf16.msra.mxu0 %v225
    %253 = vmatpush.bf16.msra.mxu0 %v223
    %254 = vmatpush.bf16.msra.mxu0 %v221
    %255 = vmatpush.bf16.msra.mxu0 %v219
    %256 = vmatpush.bf16.msra.mxu0 %v217
    %257 = vmatmul.bf16.gmra.mxu0 %v163
    %v258 = vpop.f32.mrf.mxu0
    %v259 = vadd.f32 %v165, %v258
    %v260 = vpop.f32.mrf.mxu0
    %v261 = vadd.f32 %v165, %v260
    %262 = vdwg.mxu0
    %263 = vmatpush.bf16.msra.mxu0 %v232
    %264 = vmatpush.bf16.msra.mxu0 %v230
    %265 = vmatpush.bf16.msra.mxu0 %v228
    %266 = vmatpush.bf16.msra.mxu0 %v226
    %267 = vmatpush.bf16.msra.mxu0 %v224
    %268 = vmatpush.bf16.msra.mxu0 %v222
    %269 = vmatpush.bf16.msra.mxu0 %v220
    %270 = vmatpush.bf16.msra.mxu0 %v218
    %271 = vmatmul.bf16.gmra.mxu0 %v163
    %v272 = vpop.f32.mrf.mxu0
    %v273 = vadd.f32 %v166, %v272
    %v274 = vpop.f32.mrf.mxu0
    %v275 = vadd.f32 %v166, %v274
    %276 = vdwg.mxu0
    %v277 = vxor.u32 %v259, 2147483648
    %v278 = vmul.f32 %v277, 1.442695
    %v279 = vpow.pop %v278
    %v280 = vadd.f32 %v279, 1.0
    %v281 = vrcp.pop %v280
    %v282 = vmul.f32 %v280, %v281
    %v283 = vsub.f32 1.0, %v282
    %v284 = vmul.f32 %v281, %v283
    %v285 = vadd.f32 %v281, %v284
    %vm286 = vweird.f32 %v280
    %vm287 = vweird.f32 %v281
    %vm288 = vmor %vm286, %vm287
    %v289 = vsel %vm288, %v281, %v285
    %v290 = vand.u32 2147483647, %v280
    %vm291 = vcmp.eq.f32.partialorder %v290, 8.507059e+37
    %v292 = vand.u32 %v280, 2147483648
    %v293 = vor.u32 1.1754944e-38, %v292
    %v294 = vsel %vm291, %v293, %v289
    %v295 = vmul.f32 1.0, %v294
    %v296 = vtanh.pop %v259
    %v297 = vmul.f32 %v295, 0.0
    %299 = vrot.lane.b32.xlu0 %v296, 32
    %v300 = vpop.permute.xlu0 %299
    %v302 = vmul.f32 %v295, %v300
    %304 = vrot.lane.b32.xlu0 %v302, 32
    %v305 = vpop.permute.xlu0 %304
    %v307 = vadd.f32 %v297, %v305
    %v308 = vtanh.pop %v307
    %310 = vrot.lane.b32.xlu0 %v308, 32
    %v311 = vpop.permute.xlu0 %310
    %v313 = vmul.f32 %v295, %v311
    %v314 = vxor.u32 %v275, 2147483648
    %v315 = vmul.f32 %v314, 1.442695
    %v316 = vpow.pop %v315
    %v317 = vadd.f32 %v316, 1.0
    %v318 = vrcp.pop %v317
    %v319 = vmul.f32 %v317, %v318
    %v320 = vsub.f32 1.0, %v319
    %v321 = vmul.f32 %v318, %v320
    %v322 = vadd.f32 %v318, %v321
    %vm323 = vweird.f32 %v317
    %vm324 = vweird.f32 %v318
    %vm325 = vmor %vm323, %vm324
    %v326 = vsel %vm325, %v318, %v322
    %v327 = vand.u32 2147483647, %v317
    %vm328 = vcmp.eq.f32.partialorder %v327, 8.507059e+37
    %v329 = vand.u32 %v317, 2147483648
    %v330 = vor.u32 1.1754944e-38, %v329
    %v331 = vsel %vm328, %v330, %v326
    %v332 = vmul.f32 1.0, %v331
    %v333 = vtanh.pop %v275
    %v334 = vmul.f32 %v332, 0.0
    %336 = vrot.lane.b32.xlu0 %v333, 32
    %v337 = vpop.permute.xlu0 %336
    %v339 = vmul.f32 %v332, %v337
    %341 = vrot.lane.b32.xlu0 %v339, 32
    %v342 = vpop.permute.xlu0 %341
    %v344 = vadd.f32 %v334, %v342
    %v345 = vtanh.pop %v344
    %347 = vrot.lane.b32.xlu0 %v345, 32
    %v348 = vpop.permute.xlu0 %347
    %v350 = vmul.f32 %v332, %v348
    %352 = vrot.lane.b32.xlu0 %v313, 64
    %v353 = vpop.permute.xlu0 %352
    %v356 = vrot.slane %v350, 6
    %357 = vrot.lane.b32.xlu0 %v356, 96
    %v358 = vpop.permute.xlu0 %357
    %vm360 = vcmask 261120
    %v361 = vsel %vm360, %v353, %v358
    %vm362 = vcmask 254976
    %363 = vst.msk [vmem:[#allocation3] sm:$0x3] %vm362, %v353
    %364 = vrot.lane.b32.xlu0 %v350, 96
    %v365 = vpop.permute.xlu0 %364
    %vm367 = vcmask 523526
    %368 = vst.msk [vmem:[#allocation3 + $0x8] sm:$0xc0] %vm367, %v365
    %v369 = vpack.c.bf16 %v361, %v361
    %v378 = vunpack.c.l.b16 %v152
    %v379 = vunpack.c.h.b16 %v152
    %v380 = vunpack.c.l.b16 %v153
    %v381 = vunpack.c.h.b16 %v153
    %v382 = vunpack.c.l.b16 %v154
    %v383 = vunpack.c.h.b16 %v154
    %v384 = vunpack.c.l.b16 %v155
    %v385 = vunpack.c.h.b16 %v155
    %v386 = vunpack.c.l.b16 %v156
    %v387 = vunpack.c.h.b16 %v156
    %v388 = vunpack.c.l.b16 %v157
    %v389 = vunpack.c.h.b16 %v157
    %v390 = vunpack.c.l.b16 %v158
    %v391 = vunpack.c.h.b16 %v158
    %v392 = vunpack.c.l.b16 %v159
    %v393 = vunpack.c.h.b16 %v159
    %v394 = vpack.c.b16 %v380, %v378
    %v395 = vpack.c.b16 %v381, %v379
    %v396 = vpack.c.b16 %v384, %v382
    %v397 = vpack.c.b16 %v385, %v383
    %v398 = vpack.c.b16 %v388, %v386
    %v399 = vpack.c.b16 %v389, %v387
    %v400 = vpack.c.b16 %v392, %v390
    %v401 = vpack.c.b16 %v393, %v391
    %vm410 = vcmask 523264
    %v412 = vsel %vm410, %v369, 0
    %414 = vmatpush.bf16.msra.mxu0 0
    %415 = vmatpush.bf16.msra.mxu0 0
    %416 = vmatpush.bf16.msra.mxu0 0
    %417 = vmatpush.bf16.msra.mxu0 0
    %418 = vmatpush.bf16.msra.mxu0 %v400
    %419 = vmatpush.bf16.msra.mxu0 %v398
    %420 = vmatpush.bf16.msra.mxu0 %v396
    %421 = vmatpush.bf16.msra.mxu0 %v394
    %422 = vmatmul.bf16.gmra.mxu0 %v412
    %v423 = vpop.f32.mrf.mxu0
    %v424 = vadd.f32 0.0, %v423
    %v425 = vpop.f32.mrf.mxu0
    %426 = vdwg.mxu0
    %427 = vmatpush.bf16.msra.mxu0 0
    %428 = vmatpush.bf16.msra.mxu0 0
    %429 = vmatpush.bf16.msra.mxu0 0
    %430 = vmatpush.bf16.msra.mxu0 0
    %431 = vmatpush.bf16.msra.mxu0 %v401
    %432 = vmatpush.bf16.msra.mxu0 %v399
    %433 = vmatpush.bf16.msra.mxu0 %v397
    %434 = vmatpush.bf16.msra.mxu0 %v395
    %435 = vmatmul.bf16.gmra.mxu0 %v412
    %v436 = vpop.f32.mrf.mxu0
    %v437 = vadd.f32 0.0, %v436
    %v438 = vpop.f32.mrf.mxu0
    %439 = vdwg.mxu0
    %v441 = vrot.slane %v424, 6
    %v443 = vadd.f32 %v259, %v441
    %v445 = vrot.slane %v437, 4
    %v447 = vadd.f32 %v275, %v445
    %v448 = vxor.u32 %v443, 2147483648
    %v449 = vmul.f32 %v448, 1.442695
    %v450 = vpow.pop %v449
    %v451 = vadd.f32 %v450, 1.0
    %v452 = vrcp.pop %v451
    %v453 = vmul.f32 %v451, %v452
    %v454 = vsub.f32 1.0, %v453
    %v455 = vmul.f32 %v452, %v454
    %v456 = vadd.f32 %v452, %v455
    %vm457 = vweird.f32 %v451
    %vm458 = vweird.f32 %v452
    %vm459 = vmor %vm457, %vm458
    %v460 = vsel %vm459, %v452, %v456
    %v461 = vand.u32 2147483647, %v451
    %vm462 = vcmp.eq.f32.partialorder %v461, 8.507059e+37
    %v463 = vand.u32 %v451, 2147483648
    %v464 = vor.u32 1.1754944e-38, %v463
    %v465 = vsel %vm462, %v464, %v460
    %v466 = vmul.f32 1.0, %v465
    %v467 = vtanh.pop %v443
    %v469 = vrot.slane %v307, 6
    %v471 = vmul.f32 %v466, %v469
    %473 = vrot.lane.b32.xlu0 %v467, 32
    %v474 = vpop.permute.xlu0 %473
    %v476 = vmul.f32 %v466, %v474
    %478 = vrot.lane.b32.xlu0 %v476, 32
    %v479 = vpop.permute.xlu0 %478
    %v481 = vadd.f32 %v471, %v479
    %v482 = vtanh.pop %v481
    %484 = vrot.lane.b32.xlu0 %v482, 32
    %v485 = vpop.permute.xlu0 %484
    %v487 = vmul.f32 %v466, %v485
    %v488 = vxor.u32 %v447, 2147483648
    %v489 = vmul.f32 %v488, 1.442695
    %v490 = vpow.pop %v489
    %v491 = vadd.f32 %v490, 1.0
    %v492 = vrcp.pop %v491
    %v493 = vmul.f32 %v491, %v492
    %v494 = vsub.f32 1.0, %v493
    %v495 = vmul.f32 %v492, %v494
    %v496 = vadd.f32 %v492, %v495
    %vm497 = vweird.f32 %v491
    %vm498 = vweird.f32 %v492
    %vm499 = vmor %vm497, %vm498
    %v500 = vsel %vm499, %v492, %v496
    %v501 = vand.u32 2147483647, %v491
    %vm502 = vcmp.eq.f32.partialorder %v501, 8.507059e+37
    %v503 = vand.u32 %v491, 2147483648
    %v504 = vor.u32 1.1754944e-38, %v503
    %v505 = vsel %vm502, %v504, %v500
    %v506 = vmul.f32 1.0, %v505
    %v507 = vtanh.pop %v447
    %v509 = vrot.slane %v344, 2
    %v511 = vmul.f32 %v506, %v509
    %513 = vrot.lane.b32.xlu0 %v507, 32
    %v514 = vpop.permute.xlu0 %513
    %v516 = vmul.f32 %v506, %v514
    %518 = vrot.lane.b32.xlu0 %v516, 32
    %v519 = vpop.permute.xlu0 %518
    %v521 = vadd.f32 %v511, %v519
    %v522 = vtanh.pop %v521
    %524 = vrot.lane.b32.xlu0 %v522, 32
    %v525 = vpop.permute.xlu0 %524
    %v527 = vmul.f32 %v506, %v525
    %529 = vrot.lane.b32.xlu0 %v487, 64
    %v530 = vpop.permute.xlu0 %529
    %v533 = vrot.slane %v527, 2
    %534 = vrot.lane.b32.xlu0 %v533, 96
    %v535 = vpop.permute.xlu0 %534
    %v537 = vsel %vm360, %v530, %v535
    %vm538 = vcmask 257026
    %539 = vst.msk [vmem:[#allocation3] sm:$0xc] %vm538, %v530
    %540 = vrot.lane.b32.xlu0 %v527, 96
    %v541 = vpop.permute.xlu0 %540
    %vm543 = vcmask 521476
    %544 = vst.msk [vmem:[#allocation3 + $0x8] sm:$0x30] %vm543, %v541
    %v545 = vpack.c.bf16 %v537, %v537
    %v547 = vrot.slane %v545, 1
    %v549 = vsel %vm410, %v547, 0
    %551 = vmatpush.bf16.msra.mxu0 0
    %552 = vmatpush.bf16.msra.mxu0 0
    %553 = vmatpush.bf16.msra.mxu0 0
    %554 = vmatpush.bf16.msra.mxu0 0
    %555 = vmatpush.bf16.msra.mxu0 %v400
    %556 = vmatpush.bf16.msra.mxu0 %v398
    %557 = vmatpush.bf16.msra.mxu0 %v396
    %558 = vmatpush.bf16.msra.mxu0 %v394
    %559 = vmatmul.bf16.gmra.mxu0 %v549
    %v560 = vpop.f32.mrf.mxu0
    %v561 = vadd.f32 0.0, %v560
    %v562 = vpop.f32.mrf.mxu0
    %563 = vdwg.mxu0
    %564 = vmatpush.bf16.msra.mxu0 0
    %565 = vmatpush.bf16.msra.mxu0 0
    %566 = vmatpush.bf16.msra.mxu0 0
    %567 = vmatpush.bf16.msra.mxu0 0
    %568 = vmatpush.bf16.msra.mxu0 %v401
    %569 = vmatpush.bf16.msra.mxu0 %v399
    %570 = vmatpush.bf16.msra.mxu0 %v397
    %571 = vmatpush.bf16.msra.mxu0 %v395
    %572 = vmatmul.bf16.gmra.mxu0 %v549
    %v573 = vpop.f32.mrf.mxu0
    %v574 = vadd.f32 0.0, %v573
    %v575 = vpop.f32.mrf.mxu0
    %576 = vdwg.mxu0
    %v578 = vrot.slane %v561, 4
    %v580 = vadd.f32 %v259, %v578
    %v582 = vrot.slane %v574, 6
    %v584 = vadd.f32 %v275, %v582
    %v585 = vxor.u32 %v580, 2147483648
    %v586 = vmul.f32 %v585, 1.442695
    %v587 = vpow.pop %v586
    %v588 = vadd.f32 %v587, 1.0
    %v589 = vrcp.pop %v588
    %v590 = vmul.f32 %v588, %v589
    %v591 = vsub.f32 1.0, %v590
    %v592 = vmul.f32 %v589, %v591
    %v593 = vadd.f32 %v589, %v592
    %vm594 = vweird.f32 %v588
    %vm595 = vweird.f32 %v589
    %vm596 = vmor %vm594, %vm595
    %v597 = vsel %vm596, %v589, %v593
    %v598 = vand.u32 2147483647, %v588
    %vm599 = vcmp.eq.f32.partialorder %v598, 8.507059e+37
    %v600 = vand.u32 %v588, 2147483648
    %v601 = vor.u32 1.1754944e-38, %v600
    %v602 = vsel %vm599, %v601, %v597
    %v603 = vmul.f32 1.0, %v602
    %v604 = vtanh.pop %v580
    %v606 = vrot.slane %v481, 6
    %v608 = vmul.f32 %v603, %v606
    %610 = vrot.lane.b32.xlu0 %v604, 32
    %v611 = vpop.permute.xlu0 %610
    %v613 = vmul.f32 %v603, %v611
    %615 = vrot.lane.b32.xlu0 %v613, 32
    %v616 = vpop.permute.xlu0 %615
    %v618 = vadd.f32 %v608, %v616
    %v619 = vtanh.pop %v618
    %621 = vrot.lane.b32.xlu0 %v619, 32
    %v622 = vpop.permute.xlu0 %621
    %v624 = vmul.f32 %v603, %v622
    %v625 = vxor.u32 %v584, 2147483648
    %v626 = vmul.f32 %v625, 1.442695
    %v627 = vpow.pop %v626
    %v628 = vadd.f32 %v627, 1.0
    %v629 = vrcp.pop %v628
    %v630 = vmul.f32 %v628, %v629
    %v631 = vsub.f32 1.0, %v630
    %v632 = vmul.f32 %v629, %v631
    %v633 = vadd.f32 %v629, %v632
    %vm634 = vweird.f32 %v628
    %vm635 = vweird.f32 %v629
    %vm636 = vmor %vm634, %vm635
    %v637 = vsel %vm636, %v629, %v633
    %v638 = vand.u32 2147483647, %v628
    %vm639 = vcmp.eq.f32.partialorder %v638, 8.507059e+37
    %v640 = vand.u32 %v628, 2147483648
    %v641 = vor.u32 1.1754944e-38, %v640
    %v642 = vsel %vm639, %v641, %v637
    %v643 = vmul.f32 1.0, %v642
    %v644 = vtanh.pop %v584
    %v646 = vrot.slane %v521, 2
    %v648 = vmul.f32 %v643, %v646
    %650 = vrot.lane.b32.xlu0 %v644, 32
    %v651 = vpop.permute.xlu0 %650
    %v653 = vmul.f32 %v643, %v651
    %655 = vrot.lane.b32.xlu0 %v653, 32
    %v656 = vpop.permute.xlu0 %655
    %v658 = vadd.f32 %v648, %v656
    %v659 = vtanh.pop %v658
    %661 = vrot.lane.b32.xlu0 %v659, 32
    %v662 = vpop.permute.xlu0 %661
    %v664 = vmul.f32 %v643, %v662
    %666 = vrot.lane.b32.xlu0 %v624, 64
    %v667 = vpop.permute.xlu0 %666
    %v670 = vrot.slane %v664, 6
    %671 = vrot.lane.b32.xlu0 %v670, 96
    %v672 = vpop.permute.xlu0 %671
    %v674 = vsel %vm360, %v667, %v672
    %vm675 = vcmask 259076
    %676 = vst.msk [vmem:[#allocation3] sm:$0x30] %vm675, %v667
    %677 = vrot.lane.b32.xlu0 %v664, 96
    %v678 = vpop.permute.xlu0 %677
    %vm680 = vcmask 519426
    %681 = vst.msk [vmem:[#allocation3 + $0x8] sm:$0xc] %vm680, %v678
    %v682 = vpack.c.bf16 %v674, %v674
    %v684 = vrot.slane %v682, 2
    %v686 = vsel %vm410, %v684, 0
    %688 = vmatpush.bf16.msra.mxu0 0
    %689 = vmatpush.bf16.msra.mxu0 0
    %690 = vmatpush.bf16.msra.mxu0 0
    %691 = vmatpush.bf16.msra.mxu0 0
    %692 = vmatpush.bf16.msra.mxu0 %v400
    %693 = vmatpush.bf16.msra.mxu0 %v398
    %694 = vmatpush.bf16.msra.mxu0 %v396
    %695 = vmatpush.bf16.msra.mxu0 %v394
    %696 = vmatmul.bf16.gmra.mxu0 %v686
    %v697 = vpop.f32.mrf.mxu0
    %v698 = vadd.f32 0.0, %v697
    %v699 = vpop.f32.mrf.mxu0
    %700 = vdwg.mxu0
    %701 = vmatpush.bf16.msra.mxu0 0
    %702 = vmatpush.bf16.msra.mxu0 0
    %703 = vmatpush.bf16.msra.mxu0 0
    %704 = vmatpush.bf16.msra.mxu0 0
    %705 = vmatpush.bf16.msra.mxu0 %v401
    %706 = vmatpush.bf16.msra.mxu0 %v399
    %707 = vmatpush.bf16.msra.mxu0 %v397
    %708 = vmatpush.bf16.msra.mxu0 %v395
    %709 = vmatmul.bf16.gmra.mxu0 %v686
    %v710 = vpop.f32.mrf.mxu0
    %v711 = vadd.f32 0.0, %v710
    %v712 = vpop.f32.mrf.mxu0
    %713 = vdwg.mxu0
    %v715 = vrot.slane %v698, 2
    %v717 = vadd.f32 %v259, %v715
    %v718 = vadd.f32 %v275, %v711
    %v719 = vxor.u32 %v717, 2147483648
    %v720 = vmul.f32 %v719, 1.442695
    %v721 = vpow.pop %v720
    %v722 = vadd.f32 %v721, 1.0
    %v723 = vrcp.pop %v722
    %v724 = vmul.f32 %v722, %v723
    %v725 = vsub.f32 1.0, %v724
    %v726 = vmul.f32 %v723, %v725
    %v727 = vadd.f32 %v723, %v726
    %vm728 = vweird.f32 %v722
    %vm729 = vweird.f32 %v723
    %vm730 = vmor %vm728, %vm729
    %v731 = vsel %vm730, %v723, %v727
    %v732 = vand.u32 2147483647, %v722
    %vm733 = vcmp.eq.f32.partialorder %v732, 8.507059e+37
    %v734 = vand.u32 %v722, 2147483648
    %v735 = vor.u32 1.1754944e-38, %v734
    %v736 = vsel %vm733, %v735, %v731
    %v737 = vmul.f32 1.0, %v736
    %v738 = vtanh.pop %v717
    %v740 = vrot.slane %v618, 6
    %v742 = vmul.f32 %v737, %v740
    %744 = vrot.lane.b32.xlu0 %v738, 32
    %v745 = vpop.permute.xlu0 %744
    %v747 = vmul.f32 %v737, %v745
    %749 = vrot.lane.b32.xlu0 %v747, 32
    %v750 = vpop.permute.xlu0 %749
    %v752 = vadd.f32 %v742, %v750
    %v753 = vtanh.pop %v752
    %755 = vrot.lane.b32.xlu0 %v753, 32
    %v756 = vpop.permute.xlu0 %755
    %v758 = vmul.f32 %v737, %v756
    %v759 = vxor.u32 %v718, 2147483648
    %v760 = vmul.f32 %v759, 1.442695
    %v761 = vpow.pop %v760
    %v762 = vadd.f32 %v761, 1.0
    %v763 = vrcp.pop %v762
    %v764 = vmul.f32 %v762, %v763
    %v765 = vsub.f32 1.0, %v764
    %v766 = vmul.f32 %v763, %v765
    %v767 = vadd.f32 %v763, %v766
    %vm768 = vweird.f32 %v762
    %vm769 = vweird.f32 %v763
    %vm770 = vmor %vm768, %vm769
    %v771 = vsel %vm770, %v763, %v767
    %v772 = vand.u32 2147483647, %v762
    %vm773 = vcmp.eq.f32.partialorder %v772, 8.507059e+37
    %v774 = vand.u32 %v762, 2147483648
    %v775 = vor.u32 1.1754944e-38, %v774
    %v776 = vsel %vm773, %v775, %v771
    %v777 = vmul.f32 1.0, %v776
    %v778 = vtanh.pop %v718
    %v780 = vrot.slane %v658, 2
    %v782 = vmul.f32 %v777, %v780
    %784 = vrot.lane.b32.xlu0 %v778, 32
    %v785 = vpop.permute.xlu0 %784
    %v787 = vmul.f32 %v777, %v785
    %789 = vrot.lane.b32.xlu0 %v787, 32
    %v790 = vpop.permute.xlu0 %789
    %v792 = vadd.f32 %v782, %v790
    %v793 = vtanh.pop %v792
    %795 = vrot.lane.b32.xlu0 %v793, 32
    %v796 = vpop.permute.xlu0 %795
    %v798 = vmul.f32 %v777, %v796
    %800 = vrot.lane.b32.xlu0 %v758, 64
    %v801 = vpop.permute.xlu0 %800
    %v804 = vrot.slane %v798, 2
    %805 = vrot.lane.b32.xlu0 %v804, 96
    %v806 = vpop.permute.xlu0 %805
    %v808 = vsel %vm360, %v801, %v806
    %vm809 = vcmask 261126
    %810 = vst.msk [vmem:[#allocation3] sm:$0xc0] %vm809, %v801
    %811 = vrot.lane.b32.xlu0 %v798, 96
    %v812 = vpop.permute.xlu0 %811
    %vm814 = vcmask 517376
    %815 = vst.msk [vmem:[#allocation3 + $0x8] sm:$0x3] %vm814, %v812
    %v816 = vpack.c.bf16 %v808, %v808
    %v818 = vrot.slane %v816, 3
    %v820 = vsel %vm410, %v818, 0
    %822 = vmatpush.bf16.msra.mxu0 0
    %823 = vmatpush.bf16.msra.mxu0 0
    %824 = vmatpush.bf16.msra.mxu0 0
    %825 = vmatpush.bf16.msra.mxu0 0
    %826 = vmatpush.bf16.msra.mxu0 %v400
    %827 = vmatpush.bf16.msra.mxu0 %v398
    %828 = vmatpush.bf16.msra.mxu0 %v396
    %829 = vmatpush.bf16.msra.mxu0 %v394
    %830 = vmatmul.bf16.gmra.mxu0 %v820
    %v831 = vpop.f32.mrf.mxu0
    %v832 = vadd.f32 0.0, %v831
    %v833 = vpop.f32.mrf.mxu0
    %834 = vdwg.mxu0
    %835 = vmatpush.bf16.msra.mxu0 0
    %836 = vmatpush.bf16.msra.mxu0 0
    %837 = vmatpush.bf16.msra.mxu0 0
    %838 = vmatpush.bf16.msra.mxu0 0
    %839 = vmatpush.bf16.msra.mxu0 %v401
    %840 = vmatpush.bf16.msra.mxu0 %v399
    %841 = vmatpush.bf16.msra.mxu0 %v397
    %842 = vmatpush.bf16.msra.mxu0 %v395
    %843 = vmatmul.bf16.gmra.mxu0 %v820
    %v844 = vpop.f32.mrf.mxu0
    %v845 = vadd.f32 0.0, %v844
    %v846 = vpop.f32.mrf.mxu0
    %847 = vdwg.mxu0
    %v848 = vadd.f32 %v261, %v832
    %v850 = vrot.slane %v845, 2
    %v852 = vadd.f32 %v273, %v850
    %v853 = vxor.u32 %v848, 2147483648
    %v854 = vmul.f32 %v853, 1.442695
    %v855 = vpow.pop %v854
    %v856 = vadd.f32 %v855, 1.0
    %v857 = vrcp.pop %v856
    %v858 = vmul.f32 %v856, %v857
    %v859 = vsub.f32 1.0, %v858
    %v860 = vmul.f32 %v857, %v859
    %v861 = vadd.f32 %v857, %v860
    %vm862 = vweird.f32 %v856
    %vm863 = vweird.f32 %v857
    %vm864 = vmor %vm862, %vm863
    %v865 = vsel %vm864, %v857, %v861
    %v866 = vand.u32 2147483647, %v856
    %vm867 = vcmp.eq.f32.partialorder %v866, 8.507059e+37
    %v868 = vand.u32 %v856, 2147483648
    %v869 = vor.u32 1.1754944e-38, %v868
    %v870 = vsel %vm867, %v869, %v865
    %v871 = vmul.f32 1.0, %v870
    %v872 = vtanh.pop %v848
    %v874 = vrot.slane %v752, 6
    %v876 = vmul.f32 %v871, %v874
    %878 = vrot.lane.b32.xlu0 %v872, 32
    %v879 = vpop.permute.xlu0 %878
    %v881 = vmul.f32 %v871, %v879
    %883 = vrot.lane.b32.xlu0 %v881, 32
    %v884 = vpop.permute.xlu0 %883
    %v886 = vadd.f32 %v876, %v884
    %v887 = vtanh.pop %v886
    %889 = vrot.lane.b32.xlu0 %v887, 32
    %v890 = vpop.permute.xlu0 %889
    %v892 = vmul.f32 %v871, %v890
    %v893 = vxor.u32 %v852, 2147483648
    %v894 = vmul.f32 %v893, 1.442695
    %v895 = vpow.pop %v894
    %v896 = vadd.f32 %v895, 1.0
    %v897 = vrcp.pop %v896
    %v898 = vmul.f32 %v896, %v897
    %v899 = vsub.f32 1.0, %v898
    %v900 = vmul.f32 %v897, %v899
    %v901 = vadd.f32 %v897, %v900
    %vm902 = vweird.f32 %v896
    %vm903 = vweird.f32 %v897
    %vm904 = vmor %vm902, %vm903
    %v905 = vsel %vm904, %v897, %v901
    %v906 = vand.u32 2147483647, %v896
    %vm907 = vcmp.eq.f32.partialorder %v906, 8.507059e+37
    %v908 = vand.u32 %v896, 2147483648
    %v909 = vor.u32 1.1754944e-38, %v908
    %v910 = vsel %vm907, %v909, %v905
    %v911 = vmul.f32 1.0, %v910
    %v912 = vtanh.pop %v852
    %v914 = vrot.slane %v792, 2
    %v916 = vmul.f32 %v911, %v914
    %918 = vrot.lane.b32.xlu0 %v912, 32
    %v919 = vpop.permute.xlu0 %918
    %v921 = vmul.f32 %v911, %v919
    %923 = vrot.lane.b32.xlu0 %v921, 32
    %v924 = vpop.permute.xlu0 %923
    %v926 = vadd.f32 %v916, %v924
    %v927 = vtanh.pop %v926
    %929 = vrot.lane.b32.xlu0 %v927, 32
    %v930 = vpop.permute.xlu0 %929
    %v932 = vmul.f32 %v911, %v930
    %934 = vrot.lane.b32.xlu0 %v892, 64
    %v935 = vpop.permute.xlu0 %934
    %v938 = vrot.slane %v932, 6
    %939 = vrot.lane.b32.xlu0 %v938, 96
    %v940 = vpop.permute.xlu0 %939
    %v942 = vsel %vm360, %v935, %v940
    %943 = vst.msk [vmem:[#allocation3 + $0x8] sm:$0x3] %vm362, %v935
    %944 = vrot.lane.b32.xlu0 %v932, 96
    %v945 = vpop.permute.xlu0 %944
    %947 = vst.msk [vmem:[#allocation3] sm:$0xc0] %vm367, %v945
    %v948 = vpack.c.bf16 %v942, %v942
    %v950 = vsel %vm410, %v948, 0
    %952 = vmatpush.bf16.msra.mxu0 0
    %953 = vmatpush.bf16.msra.mxu0 0
    %954 = vmatpush.bf16.msra.mxu0 0
    %955 = vmatpush.bf16.msra.mxu0 0
    %956 = vmatpush.bf16.msra.mxu0 %v400
    %957 = vmatpush.bf16.msra.mxu0 %v398
    %958 = vmatpush.bf16.msra.mxu0 %v396
    %959 = vmatpush.bf16.msra.mxu0 %v394
    %960 = vmatmul.bf16.gmra.mxu0 %v950
    %v961 = vpop.f32.mrf.mxu0
    %v962 = vadd.f32 0.0, %v961
    %v963 = vpop.f32.mrf.mxu0
    %964 = vdwg.mxu0
    %965 = vmatpush.bf16.msra.mxu0 0
    %966 = vmatpush.bf16.msra.mxu0 0
    %967 = vmatpush.bf16.msra.mxu0 0
    %968 = vmatpush.bf16.msra.mxu0 0
    %969 = vmatpush.bf16.msra.mxu0 %v401
    %970 = vmatpush.bf16.msra.mxu0 %v399
    %971 = vmatpush.bf16.msra.mxu0 %v397
    %972 = vmatpush.bf16.msra.mxu0 %v395
    %973 = vmatmul.bf16.gmra.mxu0 %v950
    %v974 = vpop.f32.mrf.mxu0
    %v975 = vadd.f32 0.0, %v974
    %v976 = vpop.f32.mrf.mxu0
    %977 = vdwg.mxu0
    %v979 = vrot.slane %v962, 6
    %v981 = vadd.f32 %v261, %v979
    %v983 = vrot.slane %v975, 4
    %v985 = vadd.f32 %v273, %v983
    %v986 = vxor.u32 %v981, 2147483648
    %v987 = vmul.f32 %v986, 1.442695
    %v988 = vpow.pop %v987
    %v989 = vadd.f32 %v988, 1.0
    %v990 = vrcp.pop %v989
    %v991 = vmul.f32 %v989, %v990
    %v992 = vsub.f32 1.0, %v991
    %v993 = vmul.f32 %v990, %v992
    %v994 = vadd.f32 %v990, %v993
    %vm995 = vweird.f32 %v989
    %vm996 = vweird.f32 %v990
    %vm997 = vmor %vm995, %vm996
    %v998 = vsel %vm997, %v990, %v994
    %v999 = vand.u32 2147483647, %v989
    %vm1000 = vcmp.eq.f32.partialorder %v999, 8.507059e+37
    %v1001 = vand.u32 %v989, 2147483648
    %v1002 = vor.u32 1.1754944e-38, %v1001
    %v1003 = vsel %vm1000, %v1002, %v998
    %v1004 = vmul.f32 1.0, %v1003
    %v1005 = vtanh.pop %v981
    %v1007 = vrot.slane %v886, 6
    %v1009 = vmul.f32 %v1004, %v1007
    %1011 = vrot.lane.b32.xlu0 %v1005, 32
    %v1012 = vpop.permute.xlu0 %1011
    %v1014 = vmul.f32 %v1004, %v1012
    %1016 = vrot.lane.b32.xlu0 %v1014, 32
    %v1017 = vpop.permute.xlu0 %1016
    %v1019 = vadd.f32 %v1009, %v1017
    %v1020 = vtanh.pop %v1019
    %1022 = vrot.lane.b32.xlu0 %v1020, 32
    %v1023 = vpop.permute.xlu0 %1022
    %v1025 = vmul.f32 %v1004, %v1023
    %v1026 = vxor.u32 %v985, 2147483648
    %v1027 = vmul.f32 %v1026, 1.442695
    %v1028 = vpow.pop %v1027
    %v1029 = vadd.f32 %v1028, 1.0
    %v1030 = vrcp.pop %v1029
    %v1031 = vmul.f32 %v1029, %v1030
    %v1032 = vsub.f32 1.0, %v1031
    %v1033 = vmul.f32 %v1030, %v1032
    %v1034 = vadd.f32 %v1030, %v1033
    %vm1035 = vweird.f32 %v1029
    %vm1036 = vweird.f32 %v1030
    %vm1037 = vmor %vm1035, %vm1036
    %v1038 = vsel %vm1037, %v1030, %v1034
    %v1039 = vand.u32 2147483647, %v1029
    %vm1040 = vcmp.eq.f32.partialorder %v1039, 8.507059e+37
    %v1041 = vand.u32 %v1029, 2147483648
    %v1042 = vor.u32 1.1754944e-38, %v1041
    %v1043 = vsel %vm1040, %v1042, %v1038
    %v1044 = vmul.f32 1.0, %v1043
    %v1045 = vtanh.pop %v985
    %v1047 = vrot.slane %v926, 2
    %v1049 = vmul.f32 %v1044, %v1047
    %1051 = vrot.lane.b32.xlu0 %v1045, 32
    %v1052 = vpop.permute.xlu0 %1051
    %v1054 = vmul.f32 %v1044, %v1052
    %1056 = vrot.lane.b32.xlu0 %v1054, 32
    %v1057 = vpop.permute.xlu0 %1056
    %v1059 = vadd.f32 %v1049, %v1057
    %v1060 = vtanh.pop %v1059
    %1062 = vrot.lane.b32.xlu0 %v1060, 32
    %v1063 = vpop.permute.xlu0 %1062
    %v1065 = vmul.f32 %v1044, %v1063
    %1067 = vrot.lane.b32.xlu0 %v1025, 64
    %v1068 = vpop.permute.xlu0 %1067
    %v1071 = vrot.slane %v1065, 2
    %1072 = vrot.lane.b32.xlu0 %v1071, 96
    %v1073 = vpop.permute.xlu0 %1072
    %v1075 = vsel %vm360, %v1068, %v1073
    %1076 = vst.msk [vmem:[#allocation3 + $0x8] sm:$0xc] %vm538, %v1068
    %1077 = vrot.lane.b32.xlu0 %v1065, 96
    %v1078 = vpop.permute.xlu0 %1077
    %1080 = vst.msk [vmem:[#allocation3] sm:$0x30] %vm543, %v1078
    %v1081 = vpack.c.bf16 %v1075, %v1075
    %v1083 = vrot.slane %v1081, 1
    %v1085 = vsel %vm410, %v1083, 0
    %1087 = vmatpush.bf16.msra.mxu0 0
    %1088 = vmatpush.bf16.msra.mxu0 0
    %1089 = vmatpush.bf16.msra.mxu0 0
    %1090 = vmatpush.bf16.msra.mxu0 0
    %1091 = vmatpush.bf16.msra.mxu0 %v400
    %1092 = vmatpush.bf16.msra.mxu0 %v398
    %1093 = vmatpush.bf16.msra.mxu0 %v396
    %1094 = vmatpush.bf16.msra.mxu0 %v394
    %1095 = vmatmul.bf16.gmra.mxu0 %v1085
    %v1096 = vpop.f32.mrf.mxu0
    %v1097 = vadd.f32 0.0, %v1096
    %v1098 = vpop.f32.mrf.mxu0
    %1099 = vdwg.mxu0
    %1100 = vmatpush.bf16.msra.mxu0 0
    %1101 = vmatpush.bf16.msra.mxu0 0
    %1102 = vmatpush.bf16.msra.mxu0 0
    %1103 = vmatpush.bf16.msra.mxu0 0
    %1104 = vmatpush.bf16.msra.mxu0 %v401
    %1105 = vmatpush.bf16.msra.mxu0 %v399
    %1106 = vmatpush.bf16.msra.mxu0 %v397
    %1107 = vmatpush.bf16.msra.mxu0 %v395
    %1108 = vmatmul.bf16.gmra.mxu0 %v1085
    %v1109 = vpop.f32.mrf.mxu0
    %v1110 = vadd.f32 0.0, %v1109
    %v1111 = vpop.f32.mrf.mxu0
    %1112 = vdwg.mxu0
    %v1114 = vrot.slane %v1097, 4
    %v1116 = vadd.f32 %v261, %v1114
    %v1118 = vrot.slane %v1110, 6
    %v1120 = vadd.f32 %v273, %v1118
    %v1121 = vxor.u32 %v1116, 2147483648
    %v1122 = vmul.f32 %v1121, 1.442695
    %v1123 = vpow.pop %v1122
    %v1124 = vadd.f32 %v1123, 1.0
    %v1125 = vrcp.pop %v1124
    %v1126 = vmul.f32 %v1124, %v1125
    %v1127 = vsub.f32 1.0, %v1126
    %v1128 = vmul.f32 %v1125, %v1127
    %v1129 = vadd.f32 %v1125, %v1128
    %vm1130 = vweird.f32 %v1124
    %vm1131 = vweird.f32 %v1125
    %vm1132 = vmor %vm1130, %vm1131
    %v1133 = vsel %vm1132, %v1125, %v1129
    %v1134 = vand.u32 2147483647, %v1124
    %vm1135 = vcmp.eq.f32.partialorder %v1134, 8.507059e+37
    %v1136 = vand.u32 %v1124, 2147483648
    %v1137 = vor.u32 1.1754944e-38, %v1136
    %v1138 = vsel %vm1135, %v1137, %v1133
    %v1139 = vmul.f32 1.0, %v1138
    %v1140 = vtanh.pop %v1116
    %v1142 = vrot.slane %v1019, 6
    %v1144 = vmul.f32 %v1139, %v1142
    %1146 = vrot.lane.b32.xlu0 %v1140, 32
    %v1147 = vpop.permute.xlu0 %1146
    %v1149 = vmul.f32 %v1139, %v1147
    %1151 = vrot.lane.b32.xlu0 %v1149, 32
    %v1152 = vpop.permute.xlu0 %1151
    %v1154 = vadd.f32 %v1144, %v1152
    %v1155 = vtanh.pop %v1154
    %1157 = vrot.lane.b32.xlu0 %v1155, 32
    %v1158 = vpop.permute.xlu0 %1157
    %v1160 = vmul.f32 %v1139, %v1158
    %v1161 = vxor.u32 %v1120, 2147483648
    %v1162 = vmul.f32 %v1161, 1.442695
    %v1163 = vpow.pop %v1162
    %v1164 = vadd.f32 %v1163, 1.0
    %v1165 = vrcp.pop %v1164
    %v1166 = vmul.f32 %v1164, %v1165
    %v1167 = vsub.f32 1.0, %v1166
    %v1168 = vmul.f32 %v1165, %v1167
    %v1169 = vadd.f32 %v1165, %v1168
    %vm1170 = vweird.f32 %v1164
    %vm1171 = vweird.f32 %v1165
    %vm1172 = vmor %vm1170, %vm1171
    %v1173 = vsel %vm1172, %v1165, %v1169
    %v1174 = vand.u32 2147483647, %v1164
    %vm1175 = vcmp.eq.f32.partialorder %v1174, 8.507059e+37
    %v1176 = vand.u32 %v1164, 2147483648
    %v1177 = vor.u32 1.1754944e-38, %v1176
    %v1178 = vsel %vm1175, %v1177, %v1173
    %v1179 = vmul.f32 1.0, %v1178
    %v1180 = vtanh.pop %v1120
    %v1182 = vrot.slane %v1059, 2
    %v1184 = vmul.f32 %v1179, %v1182
    %1186 = vrot.lane.b32.xlu0 %v1180, 32
    %v1187 = vpop.permute.xlu0 %1186
    %v1189 = vmul.f32 %v1179, %v1187
    %1191 = vrot.lane.b32.xlu0 %v1189, 32
    %v1192 = vpop.permute.xlu0 %1191
    %v1194 = vadd.f32 %v1184, %v1192
    %v1195 = vtanh.pop %v1194
    %1197 = vrot.lane.b32.xlu0 %v1195, 32
    %v1198 = vpop.permute.xlu0 %1197
    %v1200 = vmul.f32 %v1179, %v1198
    %1202 = vrot.lane.b32.xlu0 %v1160, 64
    %v1203 = vpop.permute.xlu0 %1202
    %v1206 = vrot.slane %v1200, 6
    %1207 = vrot.lane.b32.xlu0 %v1206, 96
    %v1208 = vpop.permute.xlu0 %1207
    %v1210 = vsel %vm360, %v1203, %v1208
    %1211 = vst.msk [vmem:[#allocation3 + $0x8] sm:$0x30] %vm675, %v1203
    %1212 = vrot.lane.b32.xlu0 %v1200, 96
    %v1213 = vpop.permute.xlu0 %1212
    %1215 = vst.msk [vmem:[#allocation3] sm:$0xc] %vm680, %v1213
    %v1216 = vpack.c.bf16 %v1210, %v1210
    %v1218 = vrot.slane %v1216, 2
    %v1220 = vsel %vm410, %v1218, 0
    %1222 = vmatpush.bf16.msra.mxu0 0
    %1223 = vmatpush.bf16.msra.mxu0 0
    %1224 = vmatpush.bf16.msra.mxu0 0
    %1225 = vmatpush.bf16.msra.mxu0 0
    %1226 = vmatpush.bf16.msra.mxu0 %v400
    %1227 = vmatpush.bf16.msra.mxu0 %v398
    %1228 = vmatpush.bf16.msra.mxu0 %v396
    %1229 = vmatpush.bf16.msra.mxu0 %v394
    %1230 = vmatmul.bf16.gmra.mxu0 %v1220
    %v1231 = vpop.f32.mrf.mxu0
    %v1232 = vadd.f32 0.0, %v1231
    %v1233 = vpop.f32.mrf.mxu0
    %1234 = vdwg.mxu0
    %1235 = vmatpush.bf16.msra.mxu0 0
    %1236 = vmatpush.bf16.msra.mxu0 0
    %1237 = vmatpush.bf16.msra.mxu0 0
    %1238 = vmatpush.bf16.msra.mxu0 0
    %1239 = vmatpush.bf16.msra.mxu0 %v401
    %1240 = vmatpush.bf16.msra.mxu0 %v399
    %1241 = vmatpush.bf16.msra.mxu0 %v397
    %1242 = vmatpush.bf16.msra.mxu0 %v395
    %1243 = vmatmul.bf16.gmra.mxu0 %v1220
    %v1244 = vpop.f32.mrf.mxu0
    %v1245 = vadd.f32 0.0, %v1244
    %v1246 = vpop.f32.mrf.mxu0
    %1247 = vdwg.mxu0
    %v1249 = vrot.slane %v1232, 2
    %v1251 = vadd.f32 %v261, %v1249
    %v1252 = vadd.f32 %v273, %v1245
    %v1253 = vxor.u32 %v1251, 2147483648
    %v1254 = vmul.f32 %v1253, 1.442695
    %v1255 = vpow.pop %v1254
    %v1256 = vadd.f32 %v1255, 1.0
    %v1257 = vrcp.pop %v1256
    %v1258 = vmul.f32 %v1256, %v1257
    %v1259 = vsub.f32 1.0, %v1258
    %v1260 = vmul.f32 %v1257, %v1259
    %v1261 = vadd.f32 %v1257, %v1260
    %vm1262 = vweird.f32 %v1256
    %vm1263 = vweird.f32 %v1257
    %vm1264 = vmor %vm1262, %vm1263
    %v1265 = vsel %vm1264, %v1257, %v1261
    %v1266 = vand.u32 2147483647, %v1256
    %vm1267 = vcmp.eq.f32.partialorder %v1266, 8.507059e+37
    %v1268 = vand.u32 %v1256, 2147483648
    %v1269 = vor.u32 1.1754944e-38, %v1268
    %v1270 = vsel %vm1267, %v1269, %v1265
    %v1271 = vmul.f32 1.0, %v1270
    %v1272 = vtanh.pop %v1251
    %v1274 = vrot.slane %v1154, 6
    %v1276 = vmul.f32 %v1271, %v1274
    %1278 = vrot.lane.b32.xlu0 %v1272, 32
    %v1279 = vpop.permute.xlu0 %1278
    %v1281 = vmul.f32 %v1271, %v1279
    %1283 = vrot.lane.b32.xlu0 %v1281, 32
    %v1284 = vpop.permute.xlu0 %1283
    %v1286 = vadd.f32 %v1276, %v1284
    %v1287 = vtanh.pop %v1286
    %1289 = vrot.lane.b32.xlu0 %v1287, 32
    %v1290 = vpop.permute.xlu0 %1289
    %v1292 = vmul.f32 %v1271, %v1290
    %v1293 = vxor.u32 %v1252, 2147483648
    %v1294 = vmul.f32 %v1293, 1.442695
    %v1295 = vpow.pop %v1294
    %v1296 = vadd.f32 %v1295, 1.0
    %v1297 = vrcp.pop %v1296
    %v1298 = vmul.f32 %v1296, %v1297
    %v1299 = vsub.f32 1.0, %v1298
    %v1300 = vmul.f32 %v1297, %v1299
    %v1301 = vadd.f32 %v1297, %v1300
    %vm1302 = vweird.f32 %v1296
    %vm1303 = vweird.f32 %v1297
    %vm1304 = vmor %vm1302, %vm1303
    %v1305 = vsel %vm1304, %v1297, %v1301
    %v1306 = vand.u32 2147483647, %v1296
    %vm1307 = vcmp.eq.f32.partialorder %v1306, 8.507059e+37
    %v1308 = vand.u32 %v1296, 2147483648
    %v1309 = vor.u32 1.1754944e-38, %v1308
    %v1310 = vsel %vm1307, %v1309, %v1305
    %v1311 = vmul.f32 1.0, %v1310
    %v1312 = vtanh.pop %v1252
    %v1314 = vrot.slane %v1194, 2
    %v1316 = vmul.f32 %v1311, %v1314
    %1318 = vrot.lane.b32.xlu0 %v1312, 32
    %v1319 = vpop.permute.xlu0 %1318
    %v1321 = vmul.f32 %v1311, %v1319
    %1323 = vrot.lane.b32.xlu0 %v1321, 32
    %v1324 = vpop.permute.xlu0 %1323
    %v1326 = vadd.f32 %v1316, %v1324
    %v1327 = vtanh.pop %v1326
    %1329 = vrot.lane.b32.xlu0 %v1327, 32
    %v1330 = vpop.permute.xlu0 %1329
    %v1332 = vmul.f32 %v1311, %v1330
    %1334 = vrot.lane.b32.xlu0 %v1292, 64
    %v1335 = vpop.permute.xlu0 %1334
    %1337 = vst.msk [vmem:[#allocation3 + $0x8] sm:$0xc0] %vm809, %v1335
    %1339 = vrot.lane.b32.xlu0 %v1332, 96
    %v1340 = vpop.permute.xlu0 %1339
    %1342 = vst.msk [vmem:[#allocation3] sm:$0x3] %vm814, %v1340
    %v1343 = vld [vmem:[#allocation9 + $0xc0] sm:$0xff]
    %v1344 = vld [vmem:[#allocation9 + $0xc8] sm:$0xff]
    %v1345 = vld [vmem:[#allocation9 + $0xd0] sm:$0xff]
    %v1346 = vld [vmem:[#allocation9 + $0xd8] sm:$0xff]
    %v1347 = vld [vmem:[#allocation9 + $0xe0] sm:$0xff]
    %v1348 = vld [vmem:[#allocation9 + $0xe8] sm:$0xff]
    %v1349 = vld [vmem:[#allocation9 + $0xf0] sm:$0xff]
    %v1350 = vld [vmem:[#allocation9 + $0xf8] sm:$0xff]
    %v1351 = vld [vmem:[#allocation9 + $0x100] sm:$0xff]
    %v1352 = vld [vmem:[#allocation9 + $0x108] sm:$0xff]
    %v1353 = vld [vmem:[#allocation9 + $0x110] sm:$0xff]
    %v1354 = vld [vmem:[#allocation9 + $0x118] sm:$0xff]
    %v1355 = vld [vmem:[#allocation9 + $0x120] sm:$0xff]
    %v1356 = vld [vmem:[#allocation9 + $0x128] sm:$0xff]
    %v1357 = vld [vmem:[#allocation9 + $0x130] sm:$0xff]
    %v1358 = vld [vmem:[#allocation9 + $0x138] sm:$0xff]
    %v1359 = vld [vmem:[#allocation9 + $0x140] sm:$0xff]
    %v1360 = vld [vmem:[#allocation9 + $0x148] sm:$0xff]
    %v1361 = vld [vmem:[#allocation9 + $0x150] sm:$0xff]
    %v1362 = vld [vmem:[#allocation9 + $0x158] sm:$0xff]
    %v1363 = vld [vmem:[#allocation9 + $0x160] sm:$0xff]
    %v1364 = vld [vmem:[#allocation9 + $0x168] sm:$0xff]
    %v1365 = vld [vmem:[#allocation9 + $0x170] sm:$0xff]
    %v1366 = vld [vmem:[#allocation9 + $0x178] sm:$0xff]
    %s1367 = scalar_lea.vmem [#allocation11], 1
    %v1368 = vld [vmem:[%s1367] ss:$8 sm:$0x3]
    %v1369 = vld [vmem:[#allocation3] sm:$0xff]
    %v1370 = vld [vmem:[#allocation3 + $0x8] sm:$0xff]
    %v1371 = vpack.c.bf16 %v1370, %v1369
    %v1373 = vperm.slane %v1368, 0
    %v1374 = vperm.slane %v1368, 1
    %v1393 = vunpack.c.l.b16 %v1343
    %v1394 = vunpack.c.h.b16 %v1343
    %v1395 = vunpack.c.l.b16 %v1344
    %v1396 = vunpack.c.h.b16 %v1344
    %v1397 = vunpack.c.l.b16 %v1345
    %v1398 = vunpack.c.h.b16 %v1345
    %v1399 = vunpack.c.l.b16 %v1346
    %v1400 = vunpack.c.h.b16 %v1346
    %v1401 = vunpack.c.l.b16 %v1347
    %v1402 = vunpack.c.h.b16 %v1347
    %v1403 = vunpack.c.l.b16 %v1348
    %v1404 = vunpack.c.h.b16 %v1348
    %v1405 = vunpack.c.l.b16 %v1349
    %v1406 = vunpack.c.h.b16 %v1349
    %v1407 = vunpack.c.l.b16 %v1350
    %v1408 = vunpack.c.h.b16 %v1350
    %v1409 = vunpack.c.l.b16 %v1351
    %v1410 = vunpack.c.h.b16 %v1351
    %v1411 = vunpack.c.l.b16 %v1352
    %v1412 = vunpack.c.h.b16 %v1352
    %v1413 = vunpack.c.l.b16 %v1353
    %v1414 = vunpack.c.h.b16 %v1353
    %v1415 = vunpack.c.l.b16 %v1354
    %v1416 = vunpack.c.h.b16 %v1354
    %v1417 = vunpack.c.l.b16 %v1355
    %v1418 = vunpack.c.h.b16 %v1355
    %v1419 = vunpack.c.l.b16 %v1356
    %v1420 = vunpack.c.h.b16 %v1356
    %v1421 = vunpack.c.l.b16 %v1357
    %v1422 = vunpack.c.h.b16 %v1357
    %v1423 = vunpack.c.l.b16 %v1358
    %v1424 = vunpack.c.h.b16 %v1358
    %v1425 = vpack.c.b16 %v1395, %v1393
    %v1426 = vpack.c.b16 %v1396, %v1394
    %v1427 = vpack.c.b16 %v1399, %v1397
    %v1428 = vpack.c.b16 %v1400, %v1398
    %v1429 = vpack.c.b16 %v1403, %v1401
    %v1430 = vpack.c.b16 %v1404, %v1402
    %v1431 = vpack.c.b16 %v1407, %v1405
    %v1432 = vpack.c.b16 %v1408, %v1406
    %v1433 = vpack.c.b16 %v1411, %v1409
    %v1434 = vpack.c.b16 %v1412, %v1410
    %v1435 = vpack.c.b16 %v1415, %v1413
    %v1436 = vpack.c.b16 %v1416, %v1414
    %v1437 = vpack.c.b16 %v1419, %v1417
    %v1438 = vpack.c.b16 %v1420, %v1418
    %v1439 = vpack.c.b16 %v1423, %v1421
    %v1440 = vpack.c.b16 %v1424, %v1422
    %1457 = vmatpush.bf16.msra.mxu0 %v1439
    %1458 = vmatpush.bf16.msra.mxu0 %v1437
    %1459 = vmatpush.bf16.msra.mxu0 %v1435
    %1460 = vmatpush.bf16.msra.mxu0 %v1433
    %1461 = vmatpush.bf16.msra.mxu0 %v1431
    %1462 = vmatpush.bf16.msra.mxu0 %v1429
    %1463 = vmatpush.bf16.msra.mxu0 %v1427
    %1464 = vmatpush.bf16.msra.mxu0 %v1425
    %1465 = vmatmul.bf16.gmra.mxu0 %v1371
    %v1466 = vpop.f32.mrf.mxu0
    %v1467 = vadd.f32 %v1373, %v1466
    %v1468 = vpop.f32.mrf.mxu0
    %v1469 = vadd.f32 %v1373, %v1468
    %1470 = vdwg.mxu0
    %1471 = vmatpush.bf16.msra.mxu0 %v1440
    %1472 = vmatpush.bf16.msra.mxu0 %v1438
    %1473 = vmatpush.bf16.msra.mxu0 %v1436
    %1474 = vmatpush.bf16.msra.mxu0 %v1434
    %1475 = vmatpush.bf16.msra.mxu0 %v1432
    %1476 = vmatpush.bf16.msra.mxu0 %v1430
    %1477 = vmatpush.bf16.msra.mxu0 %v1428
    %1478 = vmatpush.bf16.msra.mxu0 %v1426
    %1479 = vmatmul.bf16.gmra.mxu0 %v1371
    %v1480 = vpop.f32.mrf.mxu0
    %v1481 = vadd.f32 %v1374, %v1480
    %v1482 = vpop.f32.mrf.mxu0
    %v1483 = vadd.f32 %v1374, %v1482
    %1484 = vdwg.mxu0
    %v1485 = vxor.u32 %v1467, 2147483648
    %v1486 = vmul.f32 %v1485, 1.442695
    %v1487 = vpow.pop %v1486
    %v1488 = vadd.f32 %v1487, 1.0
    %v1489 = vrcp.pop %v1488
    %v1490 = vmul.f32 %v1488, %v1489
    %v1491 = vsub.f32 1.0, %v1490
    %v1492 = vmul.f32 %v1489, %v1491
    %v1493 = vadd.f32 %v1489, %v1492
    %vm1494 = vweird.f32 %v1488
    %vm1495 = vweird.f32 %v1489
    %vm1496 = vmor %vm1494, %vm1495
    %v1497 = vsel %vm1496, %v1489, %v1493
    %v1498 = vand.u32 2147483647, %v1488
    %vm1499 = vcmp.eq.f32.partialorder %v1498, 8.507059e+37
    %v1500 = vand.u32 %v1488, 2147483648
    %v1501 = vor.u32 1.1754944e-38, %v1500
    %v1502 = vsel %vm1499, %v1501, %v1497
    %v1503 = vmul.f32 1.0, %v1502
    %v1504 = vtanh.pop %v1467
    %v1505 = vmul.f32 %v1503, 0.0
    %1507 = vrot.lane.b32.xlu0 %v1504, 32
    %v1508 = vpop.permute.xlu0 %1507
    %v1510 = vmul.f32 %v1503, %v1508
    %1512 = vrot.lane.b32.xlu0 %v1510, 32
    %v1513 = vpop.permute.xlu0 %1512
    %v1515 = vadd.f32 %v1505, %v1513
    %v1516 = vtanh.pop %v1515
    %1518 = vrot.lane.b32.xlu0 %v1516, 32
    %v1519 = vpop.permute.xlu0 %1518
    %v1521 = vmul.f32 %v1503, %v1519
    %v1522 = vxor.u32 %v1483, 2147483648
    %v1523 = vmul.f32 %v1522, 1.442695
    %v1524 = vpow.pop %v1523
    %v1525 = vadd.f32 %v1524, 1.0
    %v1526 = vrcp.pop %v1525
    %v1527 = vmul.f32 %v1525, %v1526
    %v1528 = vsub.f32 1.0, %v1527
    %v1529 = vmul.f32 %v1526, %v1528
    %v1530 = vadd.f32 %v1526, %v1529
    %vm1531 = vweird.f32 %v1525
    %vm1532 = vweird.f32 %v1526
    %vm1533 = vmor %vm1531, %vm1532
    %v1534 = vsel %vm1533, %v1526, %v1530
    %v1535 = vand.u32 2147483647, %v1525
    %vm1536 = vcmp.eq.f32.partialorder %v1535, 8.507059e+37
    %v1537 = vand.u32 %v1525, 2147483648
    %v1538 = vor.u32 1.1754944e-38, %v1537
    %v1539 = vsel %vm1536, %v1538, %v1534
    %v1540 = vmul.f32 1.0, %v1539
    %v1541 = vtanh.pop %v1483
    %v1542 = vmul.f32 %v1540, 0.0
    %1544 = vrot.lane.b32.xlu0 %v1541, 32
    %v1545 = vpop.permute.xlu0 %1544
    %v1547 = vmul.f32 %v1540, %v1545
    %1549 = vrot.lane.b32.xlu0 %v1547, 32
    %v1550 = vpop.permute.xlu0 %1549
    %v1552 = vadd.f32 %v1542, %v1550
    %v1553 = vtanh.pop %v1552
    %1555 = vrot.lane.b32.xlu0 %v1553, 32
    %v1556 = vpop.permute.xlu0 %1555
    %v1558 = vmul.f32 %v1540, %v1556
    %1560 = vrot.lane.b32.xlu0 %v1521, 64
    %v1561 = vpop.permute.xlu0 %1560
    %v1564 = vrot.slane %v1558, 6
    %1565 = vrot.lane.b32.xlu0 %v1564, 96
    %v1566 = vpop.permute.xlu0 %1565
    %v1568 = vsel %vm360, %v1561, %v1566
    %1569 = vst.msk [vmem:[#allocation2] sm:$0x3] %vm362, %v1561
    %1570 = vrot.lane.b32.xlu0 %v1558, 96
    %v1571 = vpop.permute.xlu0 %1570
    %1573 = vst.msk [vmem:[#allocation2 + $0x8] sm:$0xc0] %vm367, %v1571
    %v1574 = vpack.c.bf16 %v1568, %v1568
    %v1583 = vunpack.c.l.b16 %v1359
    %v1584 = vunpack.c.h.b16 %v1359
    %v1585 = vunpack.c.l.b16 %v1360
    %v1586 = vunpack.c.h.b16 %v1360
    %v1587 = vunpack.c.l.b16 %v1361
    %v1588 = vunpack.c.h.b16 %v1361
    %v1589 = vunpack.c.l.b16 %v1362
    %v1590 = vunpack.c.h.b16 %v1362
    %v1591 = vunpack.c.l.b16 %v1363
    %v1592 = vunpack.c.h.b16 %v1363
    %v1593 = vunpack.c.l.b16 %v1364
    %v1594 = vunpack.c.h.b16 %v1364
    %v1595 = vunpack.c.l.b16 %v1365
    %v1596 = vunpack.c.h.b16 %v1365
    %v1597 = vunpack.c.l.b16 %v1366
    %v1598 = vunpack.c.h.b16 %v1366
    %v1599 = vpack.c.b16 %v1585, %v1583
    %v1600 = vpack.c.b16 %v1586, %v1584
    %v1601 = vpack.c.b16 %v1589, %v1587
    %v1602 = vpack.c.b16 %v1590, %v1588
    %v1603 = vpack.c.b16 %v1593, %v1591
    %v1604 = vpack.c.b16 %v1594, %v1592
    %v1605 = vpack.c.b16 %v1597, %v1595
    %v1606 = vpack.c.b16 %v1598, %v1596
    %v1616 = vsel %vm410, %v1574, 0
    %1618 = vmatpush.bf16.msra.mxu0 0
    %1619 = vmatpush.bf16.msra.mxu0 0
    %1620 = vmatpush.bf16.msra.mxu0 0
    %1621 = vmatpush.bf16.msra.mxu0 0
    %1622 = vmatpush.bf16.msra.mxu0 %v1605
    %1623 = vmatpush.bf16.msra.mxu0 %v1603
    %1624 = vmatpush.bf16.msra.mxu0 %v1601
    %1625 = vmatpush.bf16.msra.mxu0 %v1599
    %1626 = vmatmul.bf16.gmra.mxu0 %v1616
    %v1627 = vpop.f32.mrf.mxu0
    %v1628 = vadd.f32 0.0, %v1627
    %v1629 = vpop.f32.mrf.mxu0
    %1630 = vdwg.mxu0
    %1631 = vmatpush.bf16.msra.mxu0 0
    %1632 = vmatpush.bf16.msra.mxu0 0
    %1633 = vmatpush.bf16.msra.mxu0 0
    %1634 = vmatpush.bf16.msra.mxu0 0
    %1635 = vmatpush.bf16.msra.mxu0 %v1606
    %1636 = vmatpush.bf16.msra.mxu0 %v1604
    %1637 = vmatpush.bf16.msra.mxu0 %v1602
    %1638 = vmatpush.bf16.msra.mxu0 %v1600
    %1639 = vmatmul.bf16.gmra.mxu0 %v1616
    %v1640 = vpop.f32.mrf.mxu0
    %v1641 = vadd.f32 0.0, %v1640
    %v1642 = vpop.f32.mrf.mxu0
    %1643 = vdwg.mxu0
    %v1645 = vrot.slane %v1628, 6
    %v1647 = vadd.f32 %v1467, %v1645
    %v1649 = vrot.slane %v1641, 4
    %v1651 = vadd.f32 %v1483, %v1649
    %v1652 = vxor.u32 %v1647, 2147483648
    %v1653 = vmul.f32 %v1652, 1.442695
    %v1654 = vpow.pop %v1653
    %v1655 = vadd.f32 %v1654, 1.0
    %v1656 = vrcp.pop %v1655
    %v1657 = vmul.f32 %v1655, %v1656
    %v1658 = vsub.f32 1.0, %v1657
    %v1659 = vmul.f32 %v1656, %v1658
    %v1660 = vadd.f32 %v1656, %v1659
    %vm1661 = vweird.f32 %v1655
    %vm1662 = vweird.f32 %v1656
    %vm1663 = vmor %vm1661, %vm1662
    %v1664 = vsel %vm1663, %v1656, %v1660
    %v1665 = vand.u32 2147483647, %v1655
    %vm1666 = vcmp.eq.f32.partialorder %v1665, 8.507059e+37
    %v1667 = vand.u32 %v1655, 2147483648
    %v1668 = vor.u32 1.1754944e-38, %v1667
    %v1669 = vsel %vm1666, %v1668, %v1664
    %v1670 = vmul.f32 1.0, %v1669
    %v1671 = vtanh.pop %v1647
    %v1673 = vrot.slane %v1515, 6
    %v1675 = vmul.f32 %v1670, %v1673
    %1677 = vrot.lane.b32.xlu0 %v1671, 32
    %v1678 = vpop.permute.xlu0 %1677
    %v1680 = vmul.f32 %v1670, %v1678
    %1682 = vrot.lane.b32.xlu0 %v1680, 32
    %v1683 = vpop.permute.xlu0 %1682
    %v1685 = vadd.f32 %v1675, %v1683
    %v1686 = vtanh.pop %v1685
    %1688 = vrot.lane.b32.xlu0 %v1686, 32
    %v1689 = vpop.permute.xlu0 %1688
    %v1691 = vmul.f32 %v1670, %v1689
    %v1692 = vxor.u32 %v1651, 2147483648
    %v1693 = vmul.f32 %v1692, 1.442695
    %v1694 = vpow.pop %v1693
    %v1695 = vadd.f32 %v1694, 1.0
    %v1696 = vrcp.pop %v1695
    %v1697 = vmul.f32 %v1695, %v1696
    %v1698 = vsub.f32 1.0, %v1697
    %v1699 = vmul.f32 %v1696, %v1698
    %v1700 = vadd.f32 %v1696, %v1699
    %vm1701 = vweird.f32 %v1695
    %vm1702 = vweird.f32 %v1696
    %vm1703 = vmor %vm1701, %vm1702
    %v1704 = vsel %vm1703, %v1696, %v1700
    %v1705 = vand.u32 2147483647, %v1695
    %vm1706 = vcmp.eq.f32.partialorder %v1705, 8.507059e+37
    %v1707 = vand.u32 %v1695, 2147483648
    %v1708 = vor.u32 1.1754944e-38, %v1707
    %v1709 = vsel %vm1706, %v1708, %v1704
    %v1710 = vmul.f32 1.0, %v1709
    %v1711 = vtanh.pop %v1651
    %v1713 = vrot.slane %v1552, 2
    %v1715 = vmul.f32 %v1710, %v1713
    %1717 = vrot.lane.b32.xlu0 %v1711, 32
    %v1718 = vpop.permute.xlu0 %1717
    %v1720 = vmul.f32 %v1710, %v1718
    %1722 = vrot.lane.b32.xlu0 %v1720, 32
    %v1723 = vpop.permute.xlu0 %1722
    %v1725 = vadd.f32 %v1715, %v1723
    %v1726 = vtanh.pop %v1725
    %1728 = vrot.lane.b32.xlu0 %v1726, 32
    %v1729 = vpop.permute.xlu0 %1728
    %v1731 = vmul.f32 %v1710, %v1729
    %1733 = vrot.lane.b32.xlu0 %v1691, 64
    %v1734 = vpop.permute.xlu0 %1733
    %v1737 = vrot.slane %v1731, 2
    %1738 = vrot.lane.b32.xlu0 %v1737, 96
    %v1739 = vpop.permute.xlu0 %1738
    %v1741 = vsel %vm360, %v1734, %v1739
    %1742 = vst.msk [vmem:[#allocation2] sm:$0xc] %vm538, %v1734
    %1743 = vrot.lane.b32.xlu0 %v1731, 96
    %v1744 = vpop.permute.xlu0 %1743
    %1746 = vst.msk [vmem:[#allocation2 + $0x8] sm:$0x30] %vm543, %v1744
    %v1747 = vpack.c.bf16 %v1741, %v1741
    %v1749 = vrot.slane %v1747, 1
    %v1751 = vsel %vm410, %v1749, 0
    %1753 = vmatpush.bf16.msra.mxu0 0
    %1754 = vmatpush.bf16.msra.mxu0 0
    %1755 = vmatpush.bf16.msra.mxu0 0
    %1756 = vmatpush.bf16.msra.mxu0 0
    %1757 = vmatpush.bf16.msra.mxu0 %v1605
    %1758 = vmatpush.bf16.msra.mxu0 %v1603
    %1759 = vmatpush.bf16.msra.mxu0 %v1601
    %1760 = vmatpush.bf16.msra.mxu0 %v1599
    %1761 = vmatmul.bf16.gmra.mxu0 %v1751
    %v1762 = vpop.f32.mrf.mxu0
    %v1763 = vadd.f32 0.0, %v1762
    %v1764 = vpop.f32.mrf.mxu0
    %1765 = vdwg.mxu0
    %1766 = vmatpush.bf16.msra.mxu0 0
    %1767 = vmatpush.bf16.msra.mxu0 0
    %1768 = vmatpush.bf16.msra.mxu0 0
    %1769 = vmatpush.bf16.msra.mxu0 0
    %1770 = vmatpush.bf16.msra.mxu0 %v1606
    %1771 = vmatpush.bf16.msra.mxu0 %v1604
    %1772 = vmatpush.bf16.msra.mxu0 %v1602
    %1773 = vmatpush.bf16.msra.mxu0 %v1600
    %1774 = vmatmul.bf16.gmra.mxu0 %v1751
    %v1775 = vpop.f32.mrf.mxu0
    %v1776 = vadd.f32 0.0, %v1775
    %v1777 = vpop.f32.mrf.mxu0
    %1778 = vdwg.mxu0
    %v1780 = vrot.slane %v1763, 4
    %v1782 = vadd.f32 %v1467, %v1780
    %v1784 = vrot.slane %v1776, 6
    %v1786 = vadd.f32 %v1483, %v1784
    %v1787 = vxor.u32 %v1782, 2147483648
    %v1788 = vmul.f32 %v1787, 1.442695
    %v1789 = vpow.pop %v1788
    %v1790 = vadd.f32 %v1789, 1.0
    %v1791 = vrcp.pop %v1790
    %v1792 = vmul.f32 %v1790, %v1791
    %v1793 = vsub.f32 1.0, %v1792
    %v1794 = vmul.f32 %v1791, %v1793
    %v1795 = vadd.f32 %v1791, %v1794
    %vm1796 = vweird.f32 %v1790
    %vm1797 = vweird.f32 %v1791
    %vm1798 = vmor %vm1796, %vm1797
    %v1799 = vsel %vm1798, %v1791, %v1795
    %v1800 = vand.u32 2147483647, %v1790
    %vm1801 = vcmp.eq.f32.partialorder %v1800, 8.507059e+37
    %v1802 = vand.u32 %v1790, 2147483648
    %v1803 = vor.u32 1.1754944e-38, %v1802
    %v1804 = vsel %vm1801, %v1803, %v1799
    %v1805 = vmul.f32 1.0, %v1804
    %v1806 = vtanh.pop %v1782
    %v1808 = vrot.slane %v1685, 6
    %v1810 = vmul.f32 %v1805, %v1808
    %1812 = vrot.lane.b32.xlu0 %v1806, 32
    %v1813 = vpop.permute.xlu0 %1812
    %v1815 = vmul.f32 %v1805, %v1813
    %1817 = vrot.lane.b32.xlu0 %v1815, 32
    %v1818 = vpop.permute.xlu0 %1817
    %v1820 = vadd.f32 %v1810, %v1818
    %v1821 = vtanh.pop %v1820
    %1823 = vrot.lane.b32.xlu0 %v1821, 32
    %v1824 = vpop.permute.xlu0 %1823
    %v1826 = vmul.f32 %v1805, %v1824
    %v1827 = vxor.u32 %v1786, 2147483648
    %v1828 = vmul.f32 %v1827, 1.442695
    %v1829 = vpow.pop %v1828
    %v1830 = vadd.f32 %v1829, 1.0
    %v1831 = vrcp.pop %v1830
    %v1832 = vmul.f32 %v1830, %v1831
    %v1833 = vsub.f32 1.0, %v1832
    %v1834 = vmul.f32 %v1831, %v1833
    %v1835 = vadd.f32 %v1831, %v1834
    %vm1836 = vweird.f32 %v1830
    %vm1837 = vweird.f32 %v1831
    %vm1838 = vmor %vm1836, %vm1837
    %v1839 = vsel %vm1838, %v1831, %v1835
    %v1840 = vand.u32 2147483647, %v1830
    %vm1841 = vcmp.eq.f32.partialorder %v1840, 8.507059e+37
    %v1842 = vand.u32 %v1830, 2147483648
    %v1843 = vor.u32 1.1754944e-38, %v1842
    %v1844 = vsel %vm1841, %v1843, %v1839
    %v1845 = vmul.f32 1.0, %v1844
    %v1846 = vtanh.pop %v1786
    %v1848 = vrot.slane %v1725, 2
    %v1850 = vmul.f32 %v1845, %v1848
    %1852 = vrot.lane.b32.xlu0 %v1846, 32
    %v1853 = vpop.permute.xlu0 %1852
    %v1855 = vmul.f32 %v1845, %v1853
    %1857 = vrot.lane.b32.xlu0 %v1855, 32
    %v1858 = vpop.permute.xlu0 %1857
    %v1860 = vadd.f32 %v1850, %v1858
    %v1861 = vtanh.pop %v1860
    %1863 = vrot.lane.b32.xlu0 %v1861, 32
    %v1864 = vpop.permute.xlu0 %1863
    %v1866 = vmul.f32 %v1845, %v1864
    %1868 = vrot.lane.b32.xlu0 %v1826, 64
    %v1869 = vpop.permute.xlu0 %1868
    %v1872 = vrot.slane %v1866, 6
    %1873 = vrot.lane.b32.xlu0 %v1872, 96
    %v1874 = vpop.permute.xlu0 %1873
    %v1876 = vsel %vm360, %v1869, %v1874
    %1877 = vst.msk [vmem:[#allocation2] sm:$0x30] %vm675, %v1869
    %1878 = vrot.lane.b32.xlu0 %v1866, 96
    %v1879 = vpop.permute.xlu0 %1878
    %1881 = vst.msk [vmem:[#allocation2 + $0x8] sm:$0xc] %vm680, %v1879
    %v1882 = vpack.c.bf16 %v1876, %v1876
    %v1884 = vrot.slane %v1882, 2
    %v1886 = vsel %vm410, %v1884, 0
    %1888 = vmatpush.bf16.msra.mxu0 0
    %1889 = vmatpush.bf16.msra.mxu0 0
    %1890 = vmatpush.bf16.msra.mxu0 0
    %1891 = vmatpush.bf16.msra.mxu0 0
    %1892 = vmatpush.bf16.msra.mxu0 %v1605
    %1893 = vmatpush.bf16.msra.mxu0 %v1603
    %1894 = vmatpush.bf16.msra.mxu0 %v1601
    %1895 = vmatpush.bf16.msra.mxu0 %v1599
    %1896 = vmatmul.bf16.gmra.mxu0 %v1886
    %v1897 = vpop.f32.mrf.mxu0
    %v1898 = vadd.f32 0.0, %v1897
    %v1899 = vpop.f32.mrf.mxu0
    %1900 = vdwg.mxu0
    %1901 = vmatpush.bf16.msra.mxu0 0
    %1902 = vmatpush.bf16.msra.mxu0 0
    %1903 = vmatpush.bf16.msra.mxu0 0
    %1904 = vmatpush.bf16.msra.mxu0 0
    %1905 = vmatpush.bf16.msra.mxu0 %v1606
    %1906 = vmatpush.bf16.msra.mxu0 %v1604
    %1907 = vmatpush.bf16.msra.mxu0 %v1602
    %1908 = vmatpush.bf16.msra.mxu0 %v1600
    %1909 = vmatmul.bf16.gmra.mxu0 %v1886
    %v1910 = vpop.f32.mrf.mxu0
    %v1911 = vadd.f32 0.0, %v1910
    %v1912 = vpop.f32.mrf.mxu0
    %1913 = vdwg.mxu0
    %v1915 = vrot.slane %v1898, 2
    %v1917 = vadd.f32 %v1467, %v1915
    %v1918 = vadd.f32 %v1483, %v1911
    %v1919 = vxor.u32 %v1917, 2147483648
    %v1920 = vmul.f32 %v1919, 1.442695
    %v1921 = vpow.pop %v1920
    %v1922 = vadd.f32 %v1921, 1.0
    %v1923 = vrcp.pop %v1922
    %v1924 = vmul.f32 %v1922, %v1923
    %v1925 = vsub.f32 1.0, %v1924
    %v1926 = vmul.f32 %v1923, %v1925
    %v1927 = vadd.f32 %v1923, %v1926
    %vm1928 = vweird.f32 %v1922
    %vm1929 = vweird.f32 %v1923
    %vm1930 = vmor %vm1928, %vm1929
    %v1931 = vsel %vm1930, %v1923, %v1927
    %v1932 = vand.u32 2147483647, %v1922
    %vm1933 = vcmp.eq.f32.partialorder %v1932, 8.507059e+37
    %v1934 = vand.u32 %v1922, 2147483648
    %v1935 = vor.u32 1.1754944e-38, %v1934
    %v1936 = vsel %vm1933, %v1935, %v1931
    %v1937 = vmul.f32 1.0, %v1936
    %v1938 = vtanh.pop %v1917
    %v1940 = vrot.slane %v1820, 6
    %v1942 = vmul.f32 %v1937, %v1940
    %1944 = vrot.lane.b32.xlu0 %v1938, 32
    %v1945 = vpop.permute.xlu0 %1944
    %v1947 = vmul.f32 %v1937, %v1945
    %1949 = vrot.lane.b32.xlu0 %v1947, 32
    %v1950 = vpop.permute.xlu0 %1949
    %v1952 = vadd.f32 %v1942, %v1950
    %v1953 = vtanh.pop %v1952
    %1955 = vrot.lane.b32.xlu0 %v1953, 32
    %v1956 = vpop.permute.xlu0 %1955
    %v1958 = vmul.f32 %v1937, %v1956
    %v1959 = vxor.u32 %v1918, 2147483648
    %v1960 = vmul.f32 %v1959, 1.442695
    %v1961 = vpow.pop %v1960
    %v1962 = vadd.f32 %v1961, 1.0
    %v1963 = vrcp.pop %v1962
    %v1964 = vmul.f32 %v1962, %v1963
    %v1965 = vsub.f32 1.0, %v1964
    %v1966 = vmul.f32 %v1963, %v1965
    %v1967 = vadd.f32 %v1963, %v1966
    %vm1968 = vweird.f32 %v1962
    %vm1969 = vweird.f32 %v1963
    %vm1970 = vmor %vm1968, %vm1969
    %v1971 = vsel %vm1970, %v1963, %v1967
    %v1972 = vand.u32 2147483647, %v1962
    %vm1973 = vcmp.eq.f32.partialorder %v1972, 8.507059e+37
    %v1974 = vand.u32 %v1962, 2147483648
    %v1975 = vor.u32 1.1754944e-38, %v1974
    %v1976 = vsel %vm1973, %v1975, %v1971
    %v1977 = vmul.f32 1.0, %v1976
    %v1978 = vtanh.pop %v1918
    %v1980 = vrot.slane %v1860, 2
    %v1982 = vmul.f32 %v1977, %v1980
    %1984 = vrot.lane.b32.xlu0 %v1978, 32
    %v1985 = vpop.permute.xlu0 %1984
    %v1987 = vmul.f32 %v1977, %v1985
    %1989 = vrot.lane.b32.xlu0 %v1987, 32
    %v1990 = vpop.permute.xlu0 %1989
    %v1992 = vadd.f32 %v1982, %v1990
    %v1993 = vtanh.pop %v1992
    %1995 = vrot.lane.b32.xlu0 %v1993, 32
    %v1996 = vpop.permute.xlu0 %1995
    %v1998 = vmul.f32 %v1977, %v1996
    %2000 = vrot.lane.b32.xlu0 %v1958, 64
    %v2001 = vpop.permute.xlu0 %2000
    %v2004 = vrot.slane %v1998, 2
    %2005 = vrot.lane.b32.xlu0 %v2004, 96
    %v2006 = vpop.permute.xlu0 %2005
    %v2008 = vsel %vm360, %v2001, %v2006
    %2009 = vst.msk [vmem:[#allocation2] sm:$0xc0] %vm809, %v2001
    %2010 = vrot.lane.b32.xlu0 %v1998, 96
    %v2011 = vpop.permute.xlu0 %2010
    %2013 = vst.msk [vmem:[#allocation2 + $0x8] sm:$0x3] %vm814, %v2011
    %v2014 = vpack.c.bf16 %v2008, %v2008
    %v2016 = vrot.slane %v2014, 3
    %v2018 = vsel %vm410, %v2016, 0
    %2020 = vmatpush.bf16.msra.mxu0 0
    %2021 = vmatpush.bf16.msra.mxu0 0
    %2022 = vmatpush.bf16.msra.mxu0 0
    %2023 = vmatpush.bf16.msra.mxu0 0
    %2024 = vmatpush.bf16.msra.mxu0 %v1605
    %2025 = vmatpush.bf16.msra.mxu0 %v1603
    %2026 = vmatpush.bf16.msra.mxu0 %v1601
    %2027 = vmatpush.bf16.msra.mxu0 %v1599
    %2028 = vmatmul.bf16.gmra.mxu0 %v2018
    %v2029 = vpop.f32.mrf.mxu0
    %v2030 = vadd.f32 0.0, %v2029
    %v2031 = vpop.f32.mrf.mxu0
    %2032 = vdwg.mxu0
    %2033 = vmatpush.bf16.msra.mxu0 0
    %2034 = vmatpush.bf16.msra.mxu0 0
    %2035 = vmatpush.bf16.msra.mxu0 0
    %2036 = vmatpush.bf16.msra.mxu0 0
    %2037 = vmatpush.bf16.msra.mxu0 %v1606
    %2038 = vmatpush.bf16.msra.mxu0 %v1604
    %2039 = vmatpush.bf16.msra.mxu0 %v1602
    %2040 = vmatpush.bf16.msra.mxu0 %v1600
    %2041 = vmatmul.bf16.gmra.mxu0 %v2018
    %v2042 = vpop.f32.mrf.mxu0
    %v2043 = vadd.f32 0.0, %v2042
    %v2044 = vpop.f32.mrf.mxu0
    %2045 = vdwg.mxu0
    %v2046 = vadd.f32 %v1469, %v2030
    %v2048 = vrot.slane %v2043, 2
    %v2050 = vadd.f32 %v1481, %v2048
    %v2051 = vxor.u32 %v2046, 2147483648
    %v2052 = vmul.f32 %v2051, 1.442695
    %v2053 = vpow.pop %v2052
    %v2054 = vadd.f32 %v2053, 1.0
    %v2055 = vrcp.pop %v2054
    %v2056 = vmul.f32 %v2054, %v2055
    %v2057 = vsub.f32 1.0, %v2056
    %v2058 = vmul.f32 %v2055, %v2057
    %v2059 = vadd.f32 %v2055, %v2058
    %vm2060 = vweird.f32 %v2054
    %vm2061 = vweird.f32 %v2055
    %vm2062 = vmor %vm2060, %vm2061
    %v2063 = vsel %vm2062, %v2055, %v2059
    %v2064 = vand.u32 2147483647, %v2054
    %vm2065 = vcmp.eq.f32.partialorder %v2064, 8.507059e+37
    %v2066 = vand.u32 %v2054, 2147483648
    %v2067 = vor.u32 1.1754944e-38, %v2066
    %v2068 = vsel %vm2065, %v2067, %v2063
    %v2069 = vmul.f32 1.0, %v2068
    %v2070 = vtanh.pop %v2046
    %v2072 = vrot.slane %v1952, 6
    %v2074 = vmul.f32 %v2069, %v2072
    %2076 = vrot.lane.b32.xlu0 %v2070, 32
    %v2077 = vpop.permute.xlu0 %2076
    %v2079 = vmul.f32 %v2069, %v2077
    %2081 = vrot.lane.b32.xlu0 %v2079, 32
    %v2082 = vpop.permute.xlu0 %2081
    %v2084 = vadd.f32 %v2074, %v2082
    %v2085 = vtanh.pop %v2084
    %2087 = vrot.lane.b32.xlu0 %v2085, 32
    %v2088 = vpop.permute.xlu0 %2087
    %v2090 = vmul.f32 %v2069, %v2088
    %v2091 = vxor.u32 %v2050, 2147483648
    %v2092 = vmul.f32 %v2091, 1.442695
    %v2093 = vpow.pop %v2092
    %v2094 = vadd.f32 %v2093, 1.0
    %v2095 = vrcp.pop %v2094
    %v2096 = vmul.f32 %v2094, %v2095
    %v2097 = vsub.f32 1.0, %v2096
    %v2098 = vmul.f32 %v2095, %v2097
    %v2099 = vadd.f32 %v2095, %v2098
    %vm2100 = vweird.f32 %v2094
    %vm2101 = vweird.f32 %v2095
    %vm2102 = vmor %vm2100, %vm2101
    %v2103 = vsel %vm2102, %v2095, %v2099
    %v2104 = vand.u32 2147483647, %v2094
    %vm2105 = vcmp.eq.f32.partialorder %v2104, 8.507059e+37
    %v2106 = vand.u32 %v2094, 2147483648
    %v2107 = vor.u32 1.1754944e-38, %v2106
    %v2108 = vsel %vm2105, %v2107, %v2103
    %v2109 = vmul.f32 1.0, %v2108
    %v2110 = vtanh.pop %v2050
    %v2112 = vrot.slane %v1992, 2
    %v2114 = vmul.f32 %v2109, %v2112
    %2116 = vrot.lane.b32.xlu0 %v2110, 32
    %v2117 = vpop.permute.xlu0 %2116
    %v2119 = vmul.f32 %v2109, %v2117
    %2121 = vrot.lane.b32.xlu0 %v2119, 32
    %v2122 = vpop.permute.xlu0 %2121
    %v2124 = vadd.f32 %v2114, %v2122
    %v2125 = vtanh.pop %v2124
    %2127 = vrot.lane.b32.xlu0 %v2125, 32
    %v2128 = vpop.permute.xlu0 %2127
    %v2130 = vmul.f32 %v2109, %v2128
    %2132 = vrot.lane.b32.xlu0 %v2090, 64
    %v2133 = vpop.permute.xlu0 %2132
    %v2136 = vrot.slane %v2130, 6
    %2137 = vrot.lane.b32.xlu0 %v2136, 96
    %v2138 = vpop.permute.xlu0 %2137
    %v2140 = vsel %vm360, %v2133, %v2138
    %2141 = vst.msk [vmem:[#allocation2 + $0x8] sm:$0x3] %vm362, %v2133
    %2142 = vrot.lane.b32.xlu0 %v2130, 96
    %v2143 = vpop.permute.xlu0 %2142
    %2145 = vst.msk [vmem:[#allocation2] sm:$0xc0] %vm367, %v2143
    %v2146 = vpack.c.bf16 %v2140, %v2140
    %v2148 = vsel %vm410, %v2146, 0
    %2150 = vmatpush.bf16.msra.mxu0 0
    %2151 = vmatpush.bf16.msra.mxu0 0
    %2152 = vmatpush.bf16.msra.mxu0 0
    %2153 = vmatpush.bf16.msra.mxu0 0
    %2154 = vmatpush.bf16.msra.mxu0 %v1605
    %2155 = vmatpush.bf16.msra.mxu0 %v1603
    %2156 = vmatpush.bf16.msra.mxu0 %v1601
    %2157 = vmatpush.bf16.msra.mxu0 %v1599
    %2158 = vmatmul.bf16.gmra.mxu0 %v2148
    %v2159 = vpop.f32.mrf.mxu0
    %v2160 = vadd.f32 0.0, %v2159
    %v2161 = vpop.f32.mrf.mxu0
    %2162 = vdwg.mxu0
    %2163 = vmatpush.bf16.msra.mxu0 0
    %2164 = vmatpush.bf16.msra.mxu0 0
    %2165 = vmatpush.bf16.msra.mxu0 0
    %2166 = vmatpush.bf16.msra.mxu0 0
    %2167 = vmatpush.bf16.msra.mxu0 %v1606
    %2168 = vmatpush.bf16.msra.mxu0 %v1604
    %2169 = vmatpush.bf16.msra.mxu0 %v1602
    %2170 = vmatpush.bf16.msra.mxu0 %v1600
    %2171 = vmatmul.bf16.gmra.mxu0 %v2148
    %v2172 = vpop.f32.mrf.mxu0
    %v2173 = vadd.f32 0.0, %v2172
    %v2174 = vpop.f32.mrf.mxu0
    %2175 = vdwg.mxu0
    %v2177 = vrot.slane %v2160, 6
    %v2179 = vadd.f32 %v1469, %v2177
    %v2181 = vrot.slane %v2173, 4
    %v2183 = vadd.f32 %v1481, %v2181
    %v2184 = vxor.u32 %v2179, 2147483648
    %v2185 = vmul.f32 %v2184, 1.442695
    %v2186 = vpow.pop %v2185
    %v2187 = vadd.f32 %v2186, 1.0
    %v2188 = vrcp.pop %v2187
    %v2189 = vmul.f32 %v2187, %v2188
    %v2190 = vsub.f32 1.0, %v2189
    %v2191 = vmul.f32 %v2188, %v2190
    %v2192 = vadd.f32 %v2188, %v2191
    %vm2193 = vweird.f32 %v2187
    %vm2194 = vweird.f32 %v2188
    %vm2195 = vmor %vm2193, %vm2194
    %v2196 = vsel %vm2195, %v2188, %v2192
    %v2197 = vand.u32 2147483647, %v2187
    %vm2198 = vcmp.eq.f32.partialorder %v2197, 8.507059e+37
    %v2199 = vand.u32 %v2187, 2147483648
    %v2200 = vor.u32 1.1754944e-38, %v2199
    %v2201 = vsel %vm2198, %v2200, %v2196
    %v2202 = vmul.f32 1.0, %v2201
    %v2203 = vtanh.pop %v2179
    %v2205 = vrot.slane %v2084, 6
    %v2207 = vmul.f32 %v2202, %v2205
    %2209 = vrot.lane.b32.xlu0 %v2203, 32
    %v2210 = vpop.permute.xlu0 %2209
    %v2212 = vmul.f32 %v2202, %v2210
    %2214 = vrot.lane.b32.xlu0 %v2212, 32
    %v2215 = vpop.permute.xlu0 %2214
    %v2217 = vadd.f32 %v2207, %v2215
    %v2218 = vtanh.pop %v2217
    %2220 = vrot.lane.b32.xlu0 %v2218, 32
    %v2221 = vpop.permute.xlu0 %2220
    %v2223 = vmul.f32 %v2202, %v2221
    %v2224 = vxor.u32 %v2183, 2147483648
    %v2225 = vmul.f32 %v2224, 1.442695
    %v2226 = vpow.pop %v2225
    %v2227 = vadd.f32 %v2226, 1.0
    %v2228 = vrcp.pop %v2227
    %v2229 = vmul.f32 %v2227, %v2228
    %v2230 = vsub.f32 1.0, %v2229
    %v2231 = vmul.f32 %v2228, %v2230
    %v2232 = vadd.f32 %v2228, %v2231
    %vm2233 = vweird.f32 %v2227
    %vm2234 = vweird.f32 %v2228
    %vm2235 = vmor %vm2233, %vm2234
    %v2236 = vsel %vm2235, %v2228, %v2232
    %v2237 = vand.u32 2147483647, %v2227
    %vm2238 = vcmp.eq.f32.partialorder %v2237, 8.507059e+37
    %v2239 = vand.u32 %v2227, 2147483648
    %v2240 = vor.u32 1.1754944e-38, %v2239
    %v2241 = vsel %vm2238, %v2240, %v2236
    %v2242 = vmul.f32 1.0, %v2241
    %v2243 = vtanh.pop %v2183
    %v2245 = vrot.slane %v2124, 2
    %v2247 = vmul.f32 %v2242, %v2245
    %2249 = vrot.lane.b32.xlu0 %v2243, 32
    %v2250 = vpop.permute.xlu0 %2249
    %v2252 = vmul.f32 %v2242, %v2250
    %2254 = vrot.lane.b32.xlu0 %v2252, 32
    %v2255 = vpop.permute.xlu0 %2254
    %v2257 = vadd.f32 %v2247, %v2255
    %v2258 = vtanh.pop %v2257
    %2260 = vrot.lane.b32.xlu0 %v2258, 32
    %v2261 = vpop.permute.xlu0 %2260
    %v2263 = vmul.f32 %v2242, %v2261
    %2265 = vrot.lane.b32.xlu0 %v2223, 64
    %v2266 = vpop.permute.xlu0 %2265
    %v2269 = vrot.slane %v2263, 2
    %2270 = vrot.lane.b32.xlu0 %v2269, 96
    %v2271 = vpop.permute.xlu0 %2270
    %v2273 = vsel %vm360, %v2266, %v2271
    %2274 = vst.msk [vmem:[#allocation2 + $0x8] sm:$0xc] %vm538, %v2266
    %2275 = vrot.lane.b32.xlu0 %v2263, 96
    %v2276 = vpop.permute.xlu0 %2275
    %2278 = vst.msk [vmem:[#allocation2] sm:$0x30] %vm543, %v2276
    %v2279 = vpack.c.bf16 %v2273, %v2273
    %v2281 = vrot.slane %v2279, 1
    %v2283 = vsel %vm410, %v2281, 0
    %2285 = vmatpush.bf16.msra.mxu0 0
    %2286 = vmatpush.bf16.msra.mxu0 0
    %2287 = vmatpush.bf16.msra.mxu0 0
    %2288 = vmatpush.bf16.msra.mxu0 0
    %2289 = vmatpush.bf16.msra.mxu0 %v1605
    %2290 = vmatpush.bf16.msra.mxu0 %v1603
    %2291 = vmatpush.bf16.msra.mxu0 %v1601
    %2292 = vmatpush.bf16.msra.mxu0 %v1599
    %2293 = vmatmul.bf16.gmra.mxu0 %v2283
    %v2294 = vpop.f32.mrf.mxu0
    %v2295 = vadd.f32 0.0, %v2294
    %v2296 = vpop.f32.mrf.mxu0
    %2297 = vdwg.mxu0
    %2298 = vmatpush.bf16.msra.mxu0 0
    %2299 = vmatpush.bf16.msra.mxu0 0
    %2300 = vmatpush.bf16.msra.mxu0 0
    %2301 = vmatpush.bf16.msra.mxu0 0
    %2302 = vmatpush.bf16.msra.mxu0 %v1606
    %2303 = vmatpush.bf16.msra.mxu0 %v1604
    %2304 = vmatpush.bf16.msra.mxu0 %v1602
    %2305 = vmatpush.bf16.msra.mxu0 %v1600
    %2306 = vmatmul.bf16.gmra.mxu0 %v2283
    %v2307 = vpop.f32.mrf.mxu0
    %v2308 = vadd.f32 0.0, %v2307
    %v2309 = vpop.f32.mrf.mxu0
    %2310 = vdwg.mxu0
    %v2312 = vrot.slane %v2295, 4
    %v2314 = vadd.f32 %v1469, %v2312
    %v2316 = vrot.slane %v2308, 6
    %v2318 = vadd.f32 %v1481, %v2316
    %v2319 = vxor.u32 %v2314, 2147483648
    %v2320 = vmul.f32 %v2319, 1.442695
    %v2321 = vpow.pop %v2320
    %v2322 = vadd.f32 %v2321, 1.0
    %v2323 = vrcp.pop %v2322
    %v2324 = vmul.f32 %v2322, %v2323
    %v2325 = vsub.f32 1.0, %v2324
    %v2326 = vmul.f32 %v2323, %v2325
    %v2327 = vadd.f32 %v2323, %v2326
    %vm2328 = vweird.f32 %v2322
    %vm2329 = vweird.f32 %v2323
    %vm2330 = vmor %vm2328, %vm2329
    %v2331 = vsel %vm2330, %v2323, %v2327
    %v2332 = vand.u32 2147483647, %v2322
    %vm2333 = vcmp.eq.f32.partialorder %v2332, 8.507059e+37
    %v2334 = vand.u32 %v2322, 2147483648
    %v2335 = vor.u32 1.1754944e-38, %v2334
    %v2336 = vsel %vm2333, %v2335, %v2331
    %v2337 = vmul.f32 1.0, %v2336
    %v2338 = vtanh.pop %v2314
    %v2340 = vrot.slane %v2217, 6
    %v2342 = vmul.f32 %v2337, %v2340
    %2344 = vrot.lane.b32.xlu0 %v2338, 32
    %v2345 = vpop.permute.xlu0 %2344
    %v2347 = vmul.f32 %v2337, %v2345
    %2349 = vrot.lane.b32.xlu0 %v2347, 32
    %v2350 = vpop.permute.xlu0 %2349
    %v2352 = vadd.f32 %v2342, %v2350
    %v2353 = vtanh.pop %v2352
    %2355 = vrot.lane.b32.xlu0 %v2353, 32
    %v2356 = vpop.permute.xlu0 %2355
    %v2358 = vmul.f32 %v2337, %v2356
    %v2359 = vxor.u32 %v2318, 2147483648
    %v2360 = vmul.f32 %v2359, 1.442695
    %v2361 = vpow.pop %v2360
    %v2362 = vadd.f32 %v2361, 1.0
    %v2363 = vrcp.pop %v2362
    %v2364 = vmul.f32 %v2362, %v2363
    %v2365 = vsub.f32 1.0, %v2364
    %v2366 = vmul.f32 %v2363, %v2365
    %v2367 = vadd.f32 %v2363, %v2366
    %vm2368 = vweird.f32 %v2362
    %vm2369 = vweird.f32 %v2363
    %vm2370 = vmor %vm2368, %vm2369
    %v2371 = vsel %vm2370, %v2363, %v2367
    %v2372 = vand.u32 2147483647, %v2362
    %vm2373 = vcmp.eq.f32.partialorder %v2372, 8.507059e+37
    %v2374 = vand.u32 %v2362, 2147483648
    %v2375 = vor.u32 1.1754944e-38, %v2374
    %v2376 = vsel %vm2373, %v2375, %v2371
    %v2377 = vmul.f32 1.0, %v2376
    %v2378 = vtanh.pop %v2318
    %v2380 = vrot.slane %v2257, 2
    %v2382 = vmul.f32 %v2377, %v2380
    %2384 = vrot.lane.b32.xlu0 %v2378, 32
    %v2385 = vpop.permute.xlu0 %2384
    %v2387 = vmul.f32 %v2377, %v2385
    %2389 = vrot.lane.b32.xlu0 %v2387, 32
    %v2390 = vpop.permute.xlu0 %2389
    %v2392 = vadd.f32 %v2382, %v2390
    %v2393 = vtanh.pop %v2392
    %2395 = vrot.lane.b32.xlu0 %v2393, 32
    %v2396 = vpop.permute.xlu0 %2395
    %v2398 = vmul.f32 %v2377, %v2396
    %2400 = vrot.lane.b32.xlu0 %v2358, 64
    %v2401 = vpop.permute.xlu0 %2400
    %v2404 = vrot.slane %v2398, 6
    %2405 = vrot.lane.b32.xlu0 %v2404, 96
    %v2406 = vpop.permute.xlu0 %2405
    %v2408 = vsel %vm360, %v2401, %v2406
    %2409 = vst.msk [vmem:[#allocation2 + $0x8] sm:$0x30] %vm675, %v2401
    %2410 = vrot.lane.b32.xlu0 %v2398, 96
    %v2411 = vpop.permute.xlu0 %2410
    %2413 = vst.msk [vmem:[#allocation2] sm:$0xc] %vm680, %v2411
    %v2414 = vpack.c.bf16 %v2408, %v2408
    %v2416 = vrot.slane %v2414, 2
    %v2418 = vsel %vm410, %v2416, 0
    %2420 = vmatpush.bf16.msra.mxu0 0
    %2421 = vmatpush.bf16.msra.mxu0 0
    %2422 = vmatpush.bf16.msra.mxu0 0
    %2423 = vmatpush.bf16.msra.mxu0 0
    %2424 = vmatpush.bf16.msra.mxu0 %v1605
    %2425 = vmatpush.bf16.msra.mxu0 %v1603
    %2426 = vmatpush.bf16.msra.mxu0 %v1601
    %2427 = vmatpush.bf16.msra.mxu0 %v1599
    %2428 = vmatmul.bf16.gmra.mxu0 %v2418
    %v2429 = vpop.f32.mrf.mxu0
    %v2430 = vadd.f32 0.0, %v2429
    %v2431 = vpop.f32.mrf.mxu0
    %2432 = vdwg.mxu0
    %2433 = vmatpush.bf16.msra.mxu0 0
    %2434 = vmatpush.bf16.msra.mxu0 0
    %2435 = vmatpush.bf16.msra.mxu0 0
    %2436 = vmatpush.bf16.msra.mxu0 0
    %2437 = vmatpush.bf16.msra.mxu0 %v1606
    %2438 = vmatpush.bf16.msra.mxu0 %v1604
    %2439 = vmatpush.bf16.msra.mxu0 %v1602
    %2440 = vmatpush.bf16.msra.mxu0 %v1600
    %2441 = vmatmul.bf16.gmra.mxu0 %v2418
    %v2442 = vpop.f32.mrf.mxu0
    %v2443 = vadd.f32 0.0, %v2442
    %v2444 = vpop.f32.mrf.mxu0
    %2445 = vdwg.mxu0
    %v2447 = vrot.slane %v2430, 2
    %v2449 = vadd.f32 %v1469, %v2447
    %v2450 = vadd.f32 %v1481, %v2443
    %v2451 = vxor.u32 %v2449, 2147483648
    %v2452 = vmul.f32 %v2451, 1.442695
    %v2453 = vpow.pop %v2452
    %v2454 = vadd.f32 %v2453, 1.0
    %v2455 = vrcp.pop %v2454
    %v2456 = vmul.f32 %v2454, %v2455
    %v2457 = vsub.f32 1.0, %v2456
    %v2458 = vmul.f32 %v2455, %v2457
    %v2459 = vadd.f32 %v2455, %v2458
    %vm2460 = vweird.f32 %v2454
    %vm2461 = vweird.f32 %v2455
    %vm2462 = vmor %vm2460, %vm2461
    %v2463 = vsel %vm2462, %v2455, %v2459
    %v2464 = vand.u32 2147483647, %v2454
    %vm2465 = vcmp.eq.f32.partialorder %v2464, 8.507059e+37
    %v2466 = vand.u32 %v2454, 2147483648
    %v2467 = vor.u32 1.1754944e-38, %v2466
    %v2468 = vsel %vm2465, %v2467, %v2463
    %v2469 = vmul.f32 1.0, %v2468
    %v2470 = vtanh.pop %v2449
    %v2472 = vrot.slane %v2352, 6
    %v2474 = vmul.f32 %v2469, %v2472
    %2476 = vrot.lane.b32.xlu0 %v2470, 32
    %v2477 = vpop.permute.xlu0 %2476
    %v2479 = vmul.f32 %v2469, %v2477
    %2481 = vrot.lane.b32.xlu0 %v2479, 32
    %v2482 = vpop.permute.xlu0 %2481
    %v2484 = vadd.f32 %v2474, %v2482
    %v2485 = vtanh.pop %v2484
    %2487 = vrot.lane.b32.xlu0 %v2485, 32
    %v2488 = vpop.permute.xlu0 %2487
    %v2490 = vmul.f32 %v2469, %v2488
    %v2491 = vxor.u32 %v2450, 2147483648
    %v2492 = vmul.f32 %v2491, 1.442695
    %v2493 = vpow.pop %v2492
    %v2494 = vadd.f32 %v2493, 1.0
    %v2495 = vrcp.pop %v2494
    %v2496 = vmul.f32 %v2494, %v2495
    %v2497 = vsub.f32 1.0, %v2496
    %v2498 = vmul.f32 %v2495, %v2497
    %v2499 = vadd.f32 %v2495, %v2498
    %vm2500 = vweird.f32 %v2494
    %vm2501 = vweird.f32 %v2495
    %vm2502 = vmor %vm2500, %vm2501
    %v2503 = vsel %vm2502, %v2495, %v2499
    %v2504 = vand.u32 2147483647, %v2494
    %vm2505 = vcmp.eq.f32.partialorder %v2504, 8.507059e+37
    %v2506 = vand.u32 %v2494, 2147483648
    %v2507 = vor.u32 1.1754944e-38, %v2506
    %v2508 = vsel %vm2505, %v2507, %v2503
    %v2509 = vmul.f32 1.0, %v2508
    %v2510 = vtanh.pop %v2450
    %v2512 = vrot.slane %v2392, 2
    %v2514 = vmul.f32 %v2509, %v2512
    %2516 = vrot.lane.b32.xlu0 %v2510, 32
    %v2517 = vpop.permute.xlu0 %2516
    %v2519 = vmul.f32 %v2509, %v2517
    %2521 = vrot.lane.b32.xlu0 %v2519, 32
    %v2522 = vpop.permute.xlu0 %2521
    %v2524 = vadd.f32 %v2514, %v2522
    %v2525 = vtanh.pop %v2524
    %2527 = vrot.lane.b32.xlu0 %v2525, 32
    %v2528 = vpop.permute.xlu0 %2527
    %v2530 = vmul.f32 %v2509, %v2528
    %2532 = vrot.lane.b32.xlu0 %v2490, 64
    %v2533 = vpop.permute.xlu0 %2532
    %2535 = vst.msk [vmem:[#allocation2 + $0x8] sm:$0xc0] %vm809, %v2533
    %2537 = vrot.lane.b32.xlu0 %v2530, 96
    %v2538 = vpop.permute.xlu0 %2537
    %2540 = vst.msk [vmem:[#allocation2] sm:$0x3] %vm814, %v2538
    %v2541 = vld [vmem:[#allocation9 + $0x180] sm:$0xf]
    %v2542 = vld [vmem:[#allocation9 + $0x188] sm:$0xf]
    %v2543 = vld [vmem:[#allocation9 + $0x190] sm:$0xf]
    %v2544 = vld [vmem:[#allocation9 + $0x198] sm:$0xf]
    %v2545 = vld [vmem:[#allocation9 + $0x1a0] sm:$0xf]
    %v2546 = vld [vmem:[#allocation9 + $0x1a8] sm:$0xf]
    %v2547 = vld [vmem:[#allocation9 + $0x1b0] sm:$0xf]
    %v2548 = vld [vmem:[#allocation9 + $0x1b8] sm:$0xf]
    %v2549 = vld [vmem:[#allocation9 + $0x1c0] sm:$0xf]
    %v2550 = vld [vmem:[#allocation9 + $0x1c8] sm:$0xf]
    %v2551 = vld [vmem:[#allocation9 + $0x1d0] sm:$0xf]
    %v2552 = vld [vmem:[#allocation9 + $0x1d8] sm:$0xf]
    %v2553 = vld [vmem:[#allocation9 + $0x1e0] sm:$0xf]
    %v2554 = vld [vmem:[#allocation9 + $0x1e8] sm:$0xf]
    %v2555 = vld [vmem:[#allocation9 + $0x1f0] sm:$0xf]
    %v2556 = vld [vmem:[#allocation9 + $0x1f8] sm:$0xf]
    %v2557 = vld [vmem:[#allocation11 + $0x2] ss:$0 sm:$0xff]
    %v2558 = vld [vmem:[#allocation2] sm:$0xff]
    %v2559 = vld [vmem:[#allocation2 + $0x8] sm:$0xff]
    %v2560 = vpack.c.bf16 %v2559, %v2558
    %v2577 = vunpack.c.l.b16 %v2541
    %v2578 = vunpack.c.l.b16 %v2542
    %v2579 = vunpack.c.l.b16 %v2543
    %v2580 = vunpack.c.l.b16 %v2544
    %v2581 = vunpack.c.l.b16 %v2545
    %v2582 = vunpack.c.l.b16 %v2546
    %v2583 = vunpack.c.l.b16 %v2547
    %v2584 = vunpack.c.l.b16 %v2548
    %v2585 = vunpack.c.l.b16 %v2549
    %v2586 = vunpack.c.l.b16 %v2550
    %v2587 = vunpack.c.l.b16 %v2551
    %v2588 = vunpack.c.l.b16 %v2552
    %v2589 = vunpack.c.l.b16 %v2553
    %v2590 = vunpack.c.l.b16 %v2554
    %v2591 = vunpack.c.l.b16 %v2555
    %v2592 = vunpack.c.l.b16 %v2556
    %v2593 = vpack.c.b16 %v2578, %v2577
    %v2594 = vpack.c.b16 %v2580, %v2579
    %v2595 = vpack.c.b16 %v2582, %v2581
    %v2596 = vpack.c.b16 %v2584, %v2583
    %v2597 = vpack.c.b16 %v2586, %v2585
    %v2598 = vpack.c.b16 %v2588, %v2587
    %v2599 = vpack.c.b16 %v2590, %v2589
    %v2600 = vpack.c.b16 %v2592, %v2591
    %2609 = vmatpush.bf16.msra.mxu0 %v2600
    %2610 = vmatpush.bf16.msra.mxu0 %v2599
    %2611 = vmatpush.bf16.msra.mxu0 %v2598
    %2612 = vmatpush.bf16.msra.mxu0 %v2597
    %2613 = vmatpush.bf16.msra.mxu0 %v2596
    %2614 = vmatpush.bf16.msra.mxu0 %v2595
    %2615 = vmatpush.bf16.msra.mxu0 %v2594
    %2616 = vmatpush.bf16.msra.mxu0 %v2593
    %2617 = vmatmul.bf16.gmra.mxu0 %v2560
    %v2618 = vpop.f32.mrf.mxu0
    %v2619 = vadd.f32 %v2557, %v2618
    %v2620 = vpop.f32.mrf.mxu0
    %v2621 = vadd.f32 %v2557, %v2620
    %2622 = vdwg.mxu0
    %2623 = vmax.xlane.f32.xlu0 %v2619
    %v2624 = vpop.xlane.xlu0 %2623
    %2625 = vmax.xlane.f32.xlu0 %v2621
    %v2626 = vpop.xlane.xlu0 %2625
    %v2627 = vsub.f32 %v2619, %v2624
    %v2628 = vsub.f32 %v2621, %v2626
    %v2629 = vmul.f32 %v2627, 1.442695
    %v2630 = vpow.pop %v2629
    %v2631 = vmul.f32 %v2628, 1.442695
    %v2632 = vpow.pop %v2631
    %2633 = vadd.xlane.f32.xlu0 %v2630
    %v2634 = vpop.xlane.xlu0 %2633
    %2635 = vadd.xlane.f32.xlu0 %v2632
    %v2636 = vpop.xlane.xlu0 %2635
    %v2637 = vlog2.pop %v2634
    %v2638 = vmul.f32 %v2637, 0.6931472
    %v2639 = vlog2.pop %v2636
    %v2640 = vmul.f32 %v2639, 0.6931472
    %v2641 = vsub.f32 %v2627, %v2638
    %v2642 = vsub.f32 %v2628, %v2640
    %2643 = vst [vmem:[#allocation12] sm:$0xff] %v2641
    %2644 = vst [vmem:[#allocation12 + $0x8] sm:$0xff] %v2642
    // Predicated region
    $region26: #{tpu_custom_call.1} parent=1 // pred_check
      _
    $region27: #{tpu_custom_call.1} parent=1 // pred_check_branch
      %2646 = sbr.rel (0) target = $region29
    $region28: #{tpu_custom_call.1} parent=1 // pred_region
      %2648 = vsyncadd [#allocation8], 0
      %s2649 = sshll.u32 [#allocation12], 4
      %s2650 = int_to_ptr.vmem [resolvable:$true] %s2649
      %s2651 = sshll.u32 %s4, 4
      %s2652 = int_to_ptr.hbm [resolvable:$true] %s2651
      %2657 = dma.vmem_to_hbm [thread:$0]  %s2650, 256, %s2652, [#allocation8], 128, 128, 8
    $region29: #{tpu_custom_call.1} parent=1 // pred_fallthru
      _
    // Predicated region
    $region30: #{tpu_custom_call.1} parent=1 // pred_check
      _
    $region31: #{tpu_custom_call.1} parent=1 // pred_check_branch
      %2659 = sbr.rel (0) target = $region33
    $region32: #{tpu_custom_call.1} parent=1 // pred_region
      %2661 = dma.done [#allocation8], 256
    $region33: #{tpu_custom_call.1} parent=1 // pred_fallthru
      _
    %2662 = vsyncpa [#allocation7], 1
    %2663 = vsyncpa [#allocation10], 1
    %2664 = vsyncpa [#allocation8], 1

</llo_original>
